<compile_context>
chip_gen: v5e
topology: v5e:2x2
jax: 0.10.0
libtpu: 0.0.40
codegen_flags: <defaults>
</compile_context>

<pallas_src>
import functools

import jax
import jax.numpy as jnp
import numpy as np
from jax import lax
from jax.experimental import pallas as pl
from jax.experimental.pallas import tpu as pltpu

LN_EPS = 1e-5        # PyTorch nn.LayerNorm default
LANE = 128           # lane width
ROW_ALIGN = 16       # bf16 sublane packing (16, 128)


def _round_up(a, b):
    return (a + b - 1) // b * b


# -----------------------------------------------------------------------------
# Fused kernel: phase p==0 runs update() on the original features, p==1 re-runs it
# with "things" rows re-fed from the phase-0 output held in VMEM scratch (bf16).
# LayerNorm param stacking order (rows of lng/lnb):
#   0: input_norm_in, 1: norm_in, 2: norm_out, 3: input_norm_out, 4: fc_norm
# -----------------------------------------------------------------------------
def _fused_update_kernel(thing_ref, stuff_ref,     # (tile, 1) f32 masks
                         u_ref, x_ref,             # (tile, Cp) bf16 features
                         wd_ref, bd_ref,           # dynamic_layer  (Cp, 2Cp) bf16, (1, 2Cp) f32
                         wi_ref, bi_ref,           # input_layer    (Cp, 2Cp) bf16, (1, 2Cp) f32
                         wg_ref, bg_ref,           # [input_gate | update_gate]
                         wfc_ref, bfc_ref,         # fc_layer       (Cp, Cp) bf16, (1, Cp) f32
                         lng_ref, lnb_ref,         # LayerNorm gammas / betas (5, Cp) f32
                         o_ref,
                         prev_ref,                 # VMEM scratch (tile, Cp) bf16: phase-0 output
                         *, true_c, c_pad):
    p = pl.program_id(1)          # update phase (0: things+stuff, 1: things+parts)
    inv_c = 1.0 / float(true_c)

    # Phase-gated tree re-feed: only phase 1 touches prev_ref / the thing mask, so
    # phase 0 pays zero extra loads or selects. Everything stays bf16 (MXU inputs).
    def _refeed():
        prev = prev_ref[...]
        th = thing_ref[...] != 0.0
        return (jnp.where(th, prev, u_ref[...]),
                jnp.where(th, prev, x_ref[...]))

    def _plain():
        return u_ref[...], x_ref[...]

    ub, xb = lax.cond(p == 1, _refeed, _plain)

    g = lng_ref[...]              # (5, Cp), hoisted once per step
    b = lnb_ref[...]

    def ln(v, idx):
        # Two independent cross-lane reductions; divide by the TRUE channel count
        # (padded lanes are zero, padded gamma/beta are zero -> padded lanes stay 0).
        s1 = jnp.sum(v, axis=-1, keepdims=True)
        s2 = jnp.sum(v * v, axis=-1, keepdims=True)
        mu = s1 * inv_c
        var = jnp.maximum(s2 * inv_c - mu * mu, 0.0)   # guard cancellation
        return (v - mu) * lax.rsqrt(var + LN_EPS) * g[idx:idx + 1, :] + b[idx:idx + 1, :]

    # dynamic_layer(update_feature) / input_layer(input_feature)  -- bf16 MXU, f32 acc
    dyn = jnp.dot(ub, wd_ref[...], preferred_element_type=jnp.float32) + bd_ref[...]
    inf = jnp.dot(xb, wi_ref[...], preferred_element_type=jnp.float32) + bi_ref[...]
    param_in, param_out = dyn[:, :c_pad], dyn[:, c_pad:]     # 128-aligned lane slices
    input_in, input_out = inf[:, :c_pad], inf[:, c_pad:]

    # gate_feats = input_in * param_in   (gate_norm_act=False branch)
    gate_feats = (input_in * param_in).astype(jnp.bfloat16)
    gate_proj = jnp.dot(gate_feats, wg_ref[...],
                        preferred_element_type=jnp.float32) + bg_ref[...]
    input_gate = jax.nn.sigmoid(ln(gate_proj[:, :c_pad], 0))   # input_norm_in
    update_gate = jax.nn.sigmoid(ln(gate_proj[:, c_pad:], 1))  # norm_in

    param_out = ln(param_out, 2)     # norm_out       (activate_out=False branch)
    input_out = ln(input_out, 3)     # input_norm_out

    feats = (update_gate * param_out + input_gate * input_out).astype(jnp.bfloat16)
    feats = jnp.dot(feats, wfc_ref[...],
                    preferred_element_type=jnp.float32) + bfc_ref[...]
    y = jnp.maximum(ln(feats, 4), 0.0)      # fc_norm + ReLU

    @pl.when(p == 0)
    def _():
        prev_ref[...] = y.astype(jnp.bfloat16)   # carry to phase 1 (bf16 = MXU input dtype)
        o_ref[...] = y                           # unconditional; phase 1 fixes non-stuff rows

    @pl.when(p == 1)
    def _():
        is_stuff = stuff_ref[...] != 0.0
        o_ref[...] = jnp.where(is_stuff, o_ref[...], y)   # keep stuff from phase 0


# -----------------------------------------------------------------------------
# Forward pass: one pallas_call, no per-phase concat / transpose glue.
# -----------------------------------------------------------------------------
def tree_like_forward(update_feature, input_feature, params,
                      num_things, num_stuff, num_parts, *,
                      tile_rows=512, single_buffer_consts=True):
    N, Q, C = update_feature.shape
    assert Q == num_things + num_stuff + num_parts
    assert input_feature.shape == (N, Q, 1, C)
    Cp = params["wfc_t"].shape[-1]           # padded (lane-dense) channel width

    u = update_feature.reshape(N * Q, C)
    x = input_feature.reshape(N * Q, C)
    if Cp != C:
        u = jnp.pad(u, ((0, 0), (0, Cp - C)))
        x = jnp.pad(x, ((0, 0), (0, Cp - C)))
    u = u.astype(jnp.bfloat16)
    x = x.astype(jnp.bfloat16)

    R = N * Q
    R_pad = _round_up(R, ROW_ALIGN)          # tiny alignment pad only (<= 15 rows)
    if R_pad != R:
        u = jnp.pad(u, ((0, R_pad - R), (0, 0)))
        x = jnp.pad(x, ((0, R_pad - R), (0, 0)))

    # Precomputed per-row masks (rows are (batch, query) pairs -> query = row % Q).
    # Pad rows get arbitrary mask values; they are sliced off after the kernel.
    q_idx = jnp.arange(R_pad, dtype=jnp.int32) % Q
    thing_mask = (q_idx < num_things).astype(jnp.float32)[:, None]
    stuff_mask = jnp.logical_and(q_idx >= num_things,
                                 q_idx < num_things + num_stuff
                                 ).astype(jnp.float32)[:, None]

    tile = min(_round_up(tile_rows, ROW_ALIGN), R_pad)
    if R_pad > ROW_ALIGN:
        # Guarantee >= 2 row tiles so the "parallel" axis feeds both v7x TensorCores.
        tile = min(tile, _round_up((R_pad + 1) // 2, ROW_ALIGN))
    n_tiles = pl.cdiv(R_pad, tile)           # partial trailing tile handled by Pallas

    kern = functools.partial(_fused_update_kernel, true_c=C, c_pad=Cp)

    # Weights / biases / LN params never change across the grid -> single-buffer them.
    const_mode = pl.Buffered(1) if single_buffer_consts else None
    const = lambda shape: pl.BlockSpec(shape, lambda i, p: (0, 0),
                                       pipeline_mode=const_mode)
    row = lambda w: pl.BlockSpec((tile, w), lambda i, p: (i, 0))

    out = pl.pallas_call(
        kern,
        out_shape=jax.ShapeDtypeStruct((R_pad, Cp), jnp.float32),
        grid_spec=pltpu.PrefetchScalarGridSpec(
            num_scalar_prefetch=0,
            grid=(n_tiles, 2),               # (row tile, update phase); phase innermost
            in_specs=[
                row(1), row(1),                                  # thing / stuff masks
                row(Cp), row(Cp),                                # update / input features
                const((Cp, 2 * Cp)), const((1, 2 * Cp)),         # dynamic_layer
                const((Cp, 2 * Cp)), const((1, 2 * Cp)),         # input_layer
                const((Cp, 2 * Cp)), const((1, 2 * Cp)),         # gates
                const((Cp, Cp)), const((1, Cp)),                 # fc_layer
                const((5, Cp)), const((5, Cp)),                  # LN gamma / beta
            ],
            out_specs=pl.BlockSpec((tile, Cp), lambda i, p: (i, 0)),
            scratch_shapes=[pltpu.VMEM((tile, Cp), jnp.bfloat16)],
        ),
        compiler_params=pltpu.CompilerParams(
            dimension_semantics=("parallel", "arbitrary")),
    )(thing_mask, stuff_mask, u, x,
      params["wd_t"], params["bd"],
      params["wi_t"], params["bi"],
      params["wg_t"], params["bg"],
      params["wfc_t"], params["bfc"],
      params["lng"], params["lnb"])

    # Rows already sit in the final per-batch [things | stuff | parts] query order.
    final = out[:R, :C].reshape(N, Q, C)
    return jnp.transpose(final, (1, 0, 2))   # (Q, N, C)


# -----------------------------------------------------------------------------
# Parameter construction + packing (pad channels to 128, pack halves, bf16 weights)
# -----------------------------------------------------------------------------
def make_raw_params(C, key):
    ks = jax.random.split(key, 7)

    def linear(k, fan_in, fan_out):
        kw, kb = jax.random.split(k)
        w = jax.random.normal(kw, (fan_out, fan_in), jnp.float32) / jnp.sqrt(fan_in)
        b = 0.01 * jax.random.normal(kb, (fan_out,), jnp.float32)
        return w, b

    wd, bd = linear(ks[0], C, 2 * C)      # dynamic_layer
    wi, bi = linear(ks[1], C, 2 * C)      # input_layer
    wig, big = linear(ks[2], C, C)        # input_gate
    wug, bug = linear(ks[3], C, C)        # update_gate
    wfc, bfc = linear(ks[4], C, C)        # fc_layer
    # LayerNorms: [input_norm_in, norm_in, norm_out, input_norm_out, fc_norm]
    lng = 1.0 + 0.05 * jax.random.normal(ks[5], (5, C), jnp.float32)
    lnb = 0.05 * jax.random.normal(ks[6], (5, C), jnp.float32)
    return dict(wd=wd, bd=bd, wi=wi, bi=bi, wig=wig, big=big,
                wug=wug, bug=bug, wfc=wfc, bfc=bfc, lng=lng, lnb=lnb)


def pack_params(raw, C):
    Cp = _round_up(C, LANE)
    z = jnp.zeros((Cp - C,), jnp.float32)

    def pad_block(w):                    # (C_out, C_in) torch layout -> (Cp, Cp), transposed
        return jnp.pad(w.T, ((0, Cp - C), (0, Cp - C)))

    def pack_w2(w):                      # (2C, C) stacked [in | out] -> (Cp, 2Cp)
        return jnp.concatenate([pad_block(w[:C]), pad_block(w[C:])], axis=1)

    def pack_b2(b):                      # (2C,) -> (1, 2Cp)
        return jnp.concatenate([b[:C], z, b[C:], z])[None, :]

    return {
        "wd_t": pack_w2(raw["wd"]).astype(jnp.bfloat16), "bd": pack_b2(raw["bd"]),
        "wi_t": pack_w2(raw["wi"]).astype(jnp.bfloat16), "bi": pack_b2(raw["bi"]),
        "wg_t": jnp.concatenate([pad_block(raw["wig"]), pad_block(raw["wug"])],
                                axis=1).astype(jnp.bfloat16),
        "bg": jnp.concatenate([raw["big"], z, raw["bug"], z])[None, :],
        "wfc_t": pad_block(raw["wfc"]).astype(jnp.bfloat16),
        "bfc": jnp.concatenate([raw["bfc"], z])[None, :],
        "lng": jnp.pad(raw["lng"], ((0, 0), (0, Cp - C))),   # padded gamma = 0
        "lnb": jnp.pad(raw["lnb"], ((0, 0), (0, Cp - C))),   # padded beta  = 0
    }


# -----------------------------------------------------------------------------
# Pure-JAX reference mirroring the PyTorch math (same bf16 matmul precision)
# -----------------------------------------------------------------------------
def _ln_ref(v, g, b):
    mu = jnp.mean(v, axis=-1, keepdims=True)
    var = jnp.mean((v - mu) ** 2, axis=-1, keepdims=True)
    return (v - mu) * lax.rsqrt(var + LN_EPS) * g + b


def _bf16_linear(x, w, b):
    return jnp.dot(x.astype(jnp.bfloat16), w.T.astype(jnp.bfloat16),
                   preferred_element_type=jnp.float32) + b


def update_ref(u, x, raw, C):
    dyn = _bf16_linear(u, raw["wd"], raw["bd"])
    param_in, param_out = dyn[:, :C], dyn[:, C:]
    inf = _bf16_linear(x, raw["wi"], raw["bi"])
    input_in, input_out = inf[:, :C], inf[:, C:]
    gate = input_in * param_in
    ig = jax.nn.sigmoid(_ln_ref(_bf16_linear(gate, raw["wig"], raw["big"]),
                                raw["lng"][0], raw["lnb"][0]))
    ug = jax.nn.sigmoid(_ln_ref(_bf16_linear(gate, raw["wug"], raw["bug"]),
                                raw["lng"][1], raw["lnb"][1]))
    po = _ln_ref(param_out, raw["lng"][2], raw["lnb"][2])
    io = _ln_ref(input_out, raw["lng"][3], raw["lnb"][3])
    f = ug * po + ig * io
    f = _bf16_linear(f, raw["wfc"], raw["bfc"])
    f = _ln_ref(f, raw["lng"][4], raw["lnb"][4])
    return jnp.maximum(f, 0.0)


def tree_like_forward_ref(uf, xf, raw, num_things, num_stuff, num_parts, C):
    N, Q, _ = uf.shape
    TS = num_things + num_stuff
    ts_out = update_ref(uf[:, :TS].reshape(-1, C),
                        xf[:, :TS].reshape(-1, C), raw, C).reshape(N, TS, C)
    things_update = ts_out[:, :num_things]
    tp_u = jnp.concatenate([things_update, uf[:, TS:]], axis=1).reshape(-1, C)
    tp_x = jnp.concatenate([things_update[:, :, None, :], xf[:, TS:]], axis=1).reshape(-1, C)
    tp_out = update_ref(tp_u, tp_x, raw, C).reshape(N, num_things + num_parts, C)
    final = jnp.concatenate([tp_out[:, :num_things], ts_out[:, num_things:],
                             tp_out[:, num_things:]], axis=1)
    return jnp.transpose(final, (1, 0, 2))


if __name__ == "__main__":
    # Small, module-consistent shapes (feat_channels default 64, padded to 128 lanes).
    N = 2
    C = 64                               # in_channels == feat_channels == out_channels
    num_things, num_stuff, num_parts = 8, 4, 4
    Q = num_things + num_stuff + num_parts

    key = jax.random.PRNGKey(0)
    k_u, k_x, k_p = jax.random.split(key, 3)
    update_feature = jax.random.normal(k_u, (N, Q, C), jnp.float32)
    input_feature = jax.random.normal(k_x, (N, Q, 1, C), jnp.float32)
    raw = make_raw_params(C, k_p)
    params = pack_params(raw, C)

    def run(single_buffer_consts):
        fwd = jax.jit(functools.partial(tree_like_forward,
                                        num_things=num_things,
                                        num_stuff=num_stuff,
                                        num_parts=num_parts,
                                        single_buffer_consts=single_buffer_consts))
        return jax.block_until_ready(fwd(update_feature, input_feature, params))

    try:
        out = run(True)          # single-buffered constant weights (preferred)
    except Exception:
        # Fallback for jax builds that reject pl.Buffered(1) on pallas_call BlockSpecs:
        # identical kernel, default double-buffered constants.
        out = run(False)

    ref = tree_like_forward_ref(update_feature, input_feature, raw,
                                num_things, num_stuff, num_parts, C)
    assert out.shape == (Q, N, C), out.shape
    # Tolerance reflects bf16 MXU matmuls (reference uses the same precision).
    np.testing.assert_allclose(np.asarray(out), np.asarray(ref), rtol=1e-3, atol=1e-3)
    print("KERNEL_OK")
</pallas_src>

<mosaic_0001>
module attributes {stable_mosaic.version = 11 : i64} {
  func.func @_fused_update_kernel(%arg0: i32, %arg1: i32, %arg2: memref<16x1xf32, #tpu.memory_space<vmem>>, %arg3: memref<16x1xf32, #tpu.memory_space<vmem>>, %arg4: memref<16x128xbf16, #tpu.memory_space<vmem>>, %arg5: memref<16x128xbf16, #tpu.memory_space<vmem>>, %arg6: memref<128x256xbf16, #tpu.memory_space<vmem>>, %arg7: memref<1x256xf32, #tpu.memory_space<vmem>>, %arg8: memref<128x256xbf16, #tpu.memory_space<vmem>>, %arg9: memref<1x256xf32, #tpu.memory_space<vmem>>, %arg10: memref<128x256xbf16, #tpu.memory_space<vmem>>, %arg11: memref<1x256xf32, #tpu.memory_space<vmem>>, %arg12: memref<128x128xbf16, #tpu.memory_space<vmem>>, %arg13: memref<1x128xf32, #tpu.memory_space<vmem>>, %arg14: memref<5x128xf32, #tpu.memory_space<vmem>>, %arg15: memref<5x128xf32, #tpu.memory_space<vmem>>, %arg16: memref<16x128xf32, #tpu.memory_space<vmem>>, %arg17: memref<16x128xbf16, #tpu.memory_space<vmem>>) attributes {dimension_semantics = [#tpu.dimension_semantics<parallel>, #tpu.dimension_semantics<arbitrary>], iteration_bounds = array<i64: 2, 2>, scalar_prefetch = 0 : i64, scratch_operands = 1 : i64, tpu.core_type = #tpu.core_type<tc>, window_params = [{transform_indices = @transform_0, window_bounds = array<i64: 16, 1>}, {transform_indices = @transform_1, window_bounds = array<i64: 16, 1>}, {transform_indices = @transform_2, window_bounds = array<i64: 16, 128>}, {transform_indices = @transform_3, window_bounds = array<i64: 16, 128>}, {pipeline_mode = #tpu.pipeline_mode<synchronous>, transform_indices = @transform_4, window_bounds = array<i64: 128, 256>}, {pipeline_mode = #tpu.pipeline_mode<synchronous>, transform_indices = @transform_5, window_bounds = array<i64: 1, 256>}, {pipeline_mode = #tpu.pipeline_mode<synchronous>, transform_indices = @transform_6, window_bounds = array<i64: 128, 256>}, {pipeline_mode = #tpu.pipeline_mode<synchronous>, transform_indices = @transform_7, window_bounds = array<i64: 1, 256>}, {pipeline_mode = #tpu.pipeline_mode<synchronous>, transform_indices = @transform_8, window_bounds = array<i64: 128, 256>}, {pipeline_mode = #tpu.pipeline_mode<synchronous>, transform_indices = @transform_9, window_bounds = array<i64: 1, 256>}, {pipeline_mode = #tpu.pipeline_mode<synchronous>, transform_indices = @transform_10, window_bounds = array<i64: 128, 128>}, {pipeline_mode = #tpu.pipeline_mode<synchronous>, transform_indices = @transform_11, window_bounds = array<i64: 1, 128>}, {pipeline_mode = #tpu.pipeline_mode<synchronous>, transform_indices = @transform_12, window_bounds = array<i64: 5, 128>}, {pipeline_mode = #tpu.pipeline_mode<synchronous>, transform_indices = @transform_13, window_bounds = array<i64: 5, 128>}, {transform_indices = @transform_14, window_bounds = array<i64: 16, 128>}]} {
    %c1_i32 = arith.constant 1 : i32
    %0 = arith.cmpi eq, %arg1, %c1_i32 : i32
    %1 = arith.extui %0 : i1 to i32
    %c0_i32 = arith.constant 0 : i32
    %2 = arith.cmpi ne, %1, %c0_i32 : i32
    %3:2 = scf.if %2 -> (vector<16x128xbf16>, vector<16x128xbf16>) {
      %c0_59 = arith.constant 0 : index
      %c0_60 = arith.constant 0 : index
      %186 = vector.load %arg17[%c0_59, %c0_60] : memref<16x128xbf16, #tpu.memory_space<vmem>>, vector<16x128xbf16>
      %c0_61 = arith.constant 0 : index
      %c0_62 = arith.constant 0 : index
      %187 = vector.load %arg2[%c0_61, %c0_62] : memref<16x1xf32, #tpu.memory_space<vmem>>, vector<16x1xf32>
      %cst_63 = arith.constant 0.000000e+00 : f32
      %188 = vector.broadcast %cst_63 : f32 to vector<16x1xf32>
      %189 = arith.cmpf one, %187, %188 : vector<16x1xf32>
      %c0_64 = arith.constant 0 : index
      %c0_65 = arith.constant 0 : index
      %190 = vector.load %arg4[%c0_64, %c0_65] : memref<16x128xbf16, #tpu.memory_space<vmem>>, vector<16x128xbf16>
      %191 = vector.shape_cast %189 : vector<16x1xi1> to vector<16x1xi1>
      %192 = vector.broadcast %191 : vector<16x1xi1> to vector<16x128xi1>
      %193 = arith.select %192, %186, %190 : vector<16x128xi1>, vector<16x128xbf16>
      %c0_66 = arith.constant 0 : index
      %c0_67 = arith.constant 0 : index
      %194 = vector.load %arg5[%c0_66, %c0_67] : memref<16x128xbf16, #tpu.memory_space<vmem>>, vector<16x128xbf16>
      %195 = vector.shape_cast %189 : vector<16x1xi1> to vector<16x1xi1>
      %196 = vector.broadcast %195 : vector<16x1xi1> to vector<16x128xi1>
      %197 = arith.select %196, %186, %194 : vector<16x128xi1>, vector<16x128xbf16>
      scf.yield %193, %197 : vector<16x128xbf16>, vector<16x128xbf16>
    } else {
      %c0_59 = arith.constant 0 : index
      %c0_60 = arith.constant 0 : index
      %186 = vector.load %arg4[%c0_59, %c0_60] : memref<16x128xbf16, #tpu.memory_space<vmem>>, vector<16x128xbf16>
      %c0_61 = arith.constant 0 : index
      %c0_62 = arith.constant 0 : index
      %187 = vector.load %arg5[%c0_61, %c0_62] : memref<16x128xbf16, #tpu.memory_space<vmem>>, vector<16x128xbf16>
      scf.yield %186, %187 : vector<16x128xbf16>, vector<16x128xbf16>
    }
    %c0 = arith.constant 0 : index
    %c0_0 = arith.constant 0 : index
    %4 = vector.load %arg14[%c0, %c0_0] : memref<5x128xf32, #tpu.memory_space<vmem>>, vector<5x128xf32>
    %c0_1 = arith.constant 0 : index
    %c0_2 = arith.constant 0 : index
    %5 = vector.load %arg15[%c0_1, %c0_2] : memref<5x128xf32, #tpu.memory_space<vmem>>, vector<5x128xf32>
    %c0_3 = arith.constant 0 : index
    %c0_4 = arith.constant 0 : index
    %6 = vector.load %arg6[%c0_3, %c0_4] : memref<128x256xbf16, #tpu.memory_space<vmem>>, vector<128x256xbf16>
    %cst = arith.constant dense<0.000000e+00> : vector<16x256xf32>
    %7 = tpu.matmul %3#0, %6, %cst {dimension_numbers = #tpu.dot_dimension_numbers<[1], [0], [0], [1], [0, 0, 1, 1], [], []>} : vector<16x128xbf16>, vector<128x256xbf16>, vector<16x256xf32> -> vector<16x256xf32>
    %c0_5 = arith.constant 0 : index
    %c0_6 = arith.constant 0 : index
    %8 = vector.load %arg7[%c0_5, %c0_6] : memref<1x256xf32, #tpu.memory_space<vmem>>, vector<1x256xf32>
    %9 = vector.broadcast %8 : vector<1x256xf32> to vector<16x256xf32>
    %10 = arith.addf %7, %9 : vector<16x256xf32>
    %c0_7 = arith.constant 0 : index
    %c0_8 = arith.constant 0 : index
    %11 = vector.load %arg8[%c0_7, %c0_8] : memref<128x256xbf16, #tpu.memory_space<vmem>>, vector<128x256xbf16>
    %cst_9 = arith.constant dense<0.000000e+00> : vector<16x256xf32>
    %12 = tpu.matmul %3#1, %11, %cst_9 {dimension_numbers = #tpu.dot_dimension_numbers<[1], [0], [0], [1], [0, 0, 1, 1], [], []>} : vector<16x128xbf16>, vector<128x256xbf16>, vector<16x256xf32> -> vector<16x256xf32>
    %c0_10 = arith.constant 0 : index
    %c0_11 = arith.constant 0 : index
    %13 = vector.load %arg9[%c0_10, %c0_11] : memref<1x256xf32, #tpu.memory_space<vmem>>, vector<1x256xf32>
    %14 = vector.broadcast %13 : vector<1x256xf32> to vector<16x256xf32>
    %15 = arith.addf %12, %14 : vector<16x256xf32>
    %16 = vector.extract_strided_slice %10 {offsets = [0, 0], sizes = [16, 128], strides = [1, 1]} : vector<16x256xf32> to vector<16x128xf32>
    %17 = vector.extract_strided_slice %10 {offsets = [0, 128], sizes = [16, 128], strides = [1, 1]} : vector<16x256xf32> to vector<16x128xf32>
    %18 = vector.extract_strided_slice %15 {offsets = [0, 0], sizes = [16, 128], strides = [1, 1]} : vector<16x256xf32> to vector<16x128xf32>
    %19 = vector.extract_strided_slice %15 {offsets = [0, 128], sizes = [16, 128], strides = [1, 1]} : vector<16x256xf32> to vector<16x128xf32>
    %20 = arith.mulf %18, %16 : vector<16x128xf32>
    %21 = arith.truncf %20 : vector<16x128xf32> to vector<16x128xbf16>
    %c0_12 = arith.constant 0 : index
    %c0_13 = arith.constant 0 : index
    %22 = vector.load %arg10[%c0_12, %c0_13] : memref<128x256xbf16, #tpu.memory_space<vmem>>, vector<128x256xbf16>
    %cst_14 = arith.constant dense<0.000000e+00> : vector<16x256xf32>
    %23 = tpu.matmul %21, %22, %cst_14 {dimension_numbers = #tpu.dot_dimension_numbers<[1], [0], [0], [1], [0, 0, 1, 1], [], []>} : vector<16x128xbf16>, vector<128x256xbf16>, vector<16x256xf32> -> vector<16x256xf32>
    %c0_15 = arith.constant 0 : index
    %c0_16 = arith.constant 0 : index
    %24 = vector.load %arg11[%c0_15, %c0_16] : memref<1x256xf32, #tpu.memory_space<vmem>>, vector<1x256xf32>
    %25 = vector.broadcast %24 : vector<1x256xf32> to vector<16x256xf32>
    %26 = arith.addf %23, %25 : vector<16x256xf32>
    %27 = vector.extract_strided_slice %26 {offsets = [0, 0], sizes = [16, 128], strides = [1, 1]} : vector<16x256xf32> to vector<16x128xf32>
    %cst_17 = arith.constant dense<0.000000e+00> : vector<16xf32>
    %28 = vector.multi_reduction <add>, %27, %cst_17 [1] : vector<16x128xf32> to vector<16xf32>
    %29 = vector.shape_cast %28 : vector<16xf32> to vector<16x1xf32>
    %30 = arith.mulf %27, %27 : vector<16x128xf32>
    %cst_18 = arith.constant dense<0.000000e+00> : vector<16xf32>
    %31 = vector.multi_reduction <add>, %30, %cst_18 [1] : vector<16x128xf32> to vector<16xf32>
    %32 = vector.shape_cast %31 : vector<16xf32> to vector<16x1xf32>
    %cst_19 = arith.constant 1.562500e-02 : f32
    %33 = vector.broadcast %cst_19 : f32 to vector<16x1xf32>
    %34 = arith.mulf %29, %33 : vector<16x1xf32>
    %cst_20 = arith.constant 1.562500e-02 : f32
    %35 = vector.broadcast %cst_20 : f32 to vector<16x1xf32>
    %36 = arith.mulf %32, %35 : vector<16x1xf32>
    %37 = arith.mulf %34, %34 : vector<16x1xf32>
    %38 = arith.subf %36, %37 : vector<16x1xf32>
    %cst_21 = arith.constant 0.000000e+00 : f32
    %39 = vector.broadcast %cst_21 : f32 to vector<16x1xf32>
    %40 = arith.maximumf %38, %39 : vector<16x1xf32>
    %41 = vector.broadcast %34 : vector<16x1xf32> to vector<16x128xf32>
    %42 = arith.subf %27, %41 : vector<16x128xf32>
    %cst_22 = arith.constant 9.99999974E-6 : f32
    %43 = vector.broadcast %cst_22 : f32 to vector<16x1xf32>
    %44 = arith.addf %40, %43 : vector<16x1xf32>
    %45 = math.rsqrt %44 : vector<16x1xf32>
    %46 = vector.broadcast %45 : vector<16x1xf32> to vector<16x128xf32>
    %47 = arith.mulf %42, %46 : vector<16x128xf32>
    %48 = vector.extract_strided_slice %4 {offsets = [0, 0], sizes = [1, 128], strides = [1, 1]} : vector<5x128xf32> to vector<1x128xf32>
    %49 = vector.broadcast %48 : vector<1x128xf32> to vector<16x128xf32>
    %50 = arith.mulf %47, %49 : vector<16x128xf32>
    %51 = vector.extract_strided_slice %5 {offsets = [0, 0], sizes = [1, 128], strides = [1, 1]} : vector<5x128xf32> to vector<1x128xf32>
    %52 = vector.broadcast %51 : vector<1x128xf32> to vector<16x128xf32>
    %53 = arith.addf %50, %52 : vector<16x128xf32>
    %54 = arith.negf %53 : vector<16x128xf32>
    %55 = math.exp %54 : vector<16x128xf32>
    %cst_23 = arith.constant 1.000000e+00 : f32
    %56 = vector.broadcast %cst_23 : f32 to vector<16x128xf32>
    %57 = arith.addf %56, %55 : vector<16x128xf32>
    %58 = arith.divf %56, %57 : vector<16x128xf32>
    %59 = vector.extract_strided_slice %26 {offsets = [0, 128], sizes = [16, 128], strides = [1, 1]} : vector<16x256xf32> to vector<16x128xf32>
    %cst_24 = arith.constant dense<0.000000e+00> : vector<16xf32>
    %60 = vector.multi_reduction <add>, %59, %cst_24 [1] : vector<16x128xf32> to vector<16xf32>
    %61 = vector.shape_cast %60 : vector<16xf32> to vector<16x1xf32>
    %62 = arith.mulf %59, %59 : vector<16x128xf32>
    %cst_25 = arith.constant dense<0.000000e+00> : vector<16xf32>
    %63 = vector.multi_reduction <add>, %62, %cst_25 [1] : vector<16x128xf32> to vector<16xf32>
    %64 = vector.shape_cast %63 : vector<16xf32> to vector<16x1xf32>
    %cst_26 = arith.constant 1.562500e-02 : f32
    %65 = vector.broadcast %cst_26 : f32 to vector<16x1xf32>
    %66 = arith.mulf %61, %65 : vector<16x1xf32>
    %cst_27 = arith.constant 1.562500e-02 : f32
    %67 = vector.broadcast %cst_27 : f32 to vector<16x1xf32>
    %68 = arith.mulf %64, %67 : vector<16x1xf32>
    %69 = arith.mulf %66, %66 : vector<16x1xf32>
    %70 = arith.subf %68, %69 : vector<16x1xf32>
    %cst_28 = arith.constant 0.000000e+00 : f32
    %71 = vector.broadcast %cst_28 : f32 to vector<16x1xf32>
    %72 = arith.maximumf %70, %71 : vector<16x1xf32>
    %73 = vector.broadcast %66 : vector<16x1xf32> to vector<16x128xf32>
    %74 = arith.subf %59, %73 : vector<16x128xf32>
    %cst_29 = arith.constant 9.99999974E-6 : f32
    %75 = vector.broadcast %cst_29 : f32 to vector<16x1xf32>
    %76 = arith.addf %72, %75 : vector<16x1xf32>
    %77 = math.rsqrt %76 : vector<16x1xf32>
    %78 = vector.broadcast %77 : vector<16x1xf32> to vector<16x128xf32>
    %79 = arith.mulf %74, %78 : vector<16x128xf32>
    %80 = vector.extract_strided_slice %4 {offsets = [1, 0], sizes = [1, 128], strides = [1, 1]} : vector<5x128xf32> to vector<1x128xf32>
    %81 = vector.broadcast %80 : vector<1x128xf32> to vector<16x128xf32>
    %82 = arith.mulf %79, %81 : vector<16x128xf32>
    %83 = vector.extract_strided_slice %5 {offsets = [1, 0], sizes = [1, 128], strides = [1, 1]} : vector<5x128xf32> to vector<1x128xf32>
    %84 = vector.broadcast %83 : vector<1x128xf32> to vector<16x128xf32>
    %85 = arith.addf %82, %84 : vector<16x128xf32>
    %86 = arith.negf %85 : vector<16x128xf32>
    %87 = math.exp %86 : vector<16x128xf32>
    %cst_30 = arith.constant 1.000000e+00 : f32
    %88 = vector.broadcast %cst_30 : f32 to vector<16x128xf32>
    %89 = arith.addf %88, %87 : vector<16x128xf32>
    %90 = arith.divf %88, %89 : vector<16x128xf32>
    %cst_31 = arith.constant dense<0.000000e+00> : vector<16xf32>
    %91 = vector.multi_reduction <add>, %17, %cst_31 [1] : vector<16x128xf32> to vector<16xf32>
    %92 = vector.shape_cast %91 : vector<16xf32> to vector<16x1xf32>
    %93 = arith.mulf %17, %17 : vector<16x128xf32>
    %cst_32 = arith.constant dense<0.000000e+00> : vector<16xf32>
    %94 = vector.multi_reduction <add>, %93, %cst_32 [1] : vector<16x128xf32> to vector<16xf32>
    %95 = vector.shape_cast %94 : vector<16xf32> to vector<16x1xf32>
    %cst_33 = arith.constant 1.562500e-02 : f32
    %96 = vector.broadcast %cst_33 : f32 to vector<16x1xf32>
    %97 = arith.mulf %92, %96 : vector<16x1xf32>
    %cst_34 = arith.constant 1.562500e-02 : f32
    %98 = vector.broadcast %cst_34 : f32 to vector<16x1xf32>
    %99 = arith.mulf %95, %98 : vector<16x1xf32>
    %100 = arith.mulf %97, %97 : vector<16x1xf32>
    %101 = arith.subf %99, %100 : vector<16x1xf32>
    %cst_35 = arith.constant 0.000000e+00 : f32
    %102 = vector.broadcast %cst_35 : f32 to vector<16x1xf32>
    %103 = arith.maximumf %101, %102 : vector<16x1xf32>
    %104 = vector.broadcast %97 : vector<16x1xf32> to vector<16x128xf32>
    %105 = arith.subf %17, %104 : vector<16x128xf32>
    %cst_36 = arith.constant 9.99999974E-6 : f32
    %106 = vector.broadcast %cst_36 : f32 to vector<16x1xf32>
    %107 = arith.addf %103, %106 : vector<16x1xf32>
    %108 = math.rsqrt %107 : vector<16x1xf32>
    %109 = vector.broadcast %108 : vector<16x1xf32> to vector<16x128xf32>
    %110 = arith.mulf %105, %109 : vector<16x128xf32>
    %111 = vector.extract_strided_slice %4 {offsets = [2, 0], sizes = [1, 128], strides = [1, 1]} : vector<5x128xf32> to vector<1x128xf32>
    %112 = vector.broadcast %111 : vector<1x128xf32> to vector<16x128xf32>
    %113 = arith.mulf %110, %112 : vector<16x128xf32>
    %114 = vector.extract_strided_slice %5 {offsets = [2, 0], sizes = [1, 128], strides = [1, 1]} : vector<5x128xf32> to vector<1x128xf32>
    %115 = vector.broadcast %114 : vector<1x128xf32> to vector<16x128xf32>
    %116 = arith.addf %113, %115 : vector<16x128xf32>
    %cst_37 = arith.constant dense<0.000000e+00> : vector<16xf32>
    %117 = vector.multi_reduction <add>, %19, %cst_37 [1] : vector<16x128xf32> to vector<16xf32>
    %118 = vector.shape_cast %117 : vector<16xf32> to vector<16x1xf32>
    %119 = arith.mulf %19, %19 : vector<16x128xf32>
    %cst_38 = arith.constant dense<0.000000e+00> : vector<16xf32>
    %120 = vector.multi_reduction <add>, %119, %cst_38 [1] : vector<16x128xf32> to vector<16xf32>
    %121 = vector.shape_cast %120 : vector<16xf32> to vector<16x1xf32>
    %cst_39 = arith.constant 1.562500e-02 : f32
    %122 = vector.broadcast %cst_39 : f32 to vector<16x1xf32>
    %123 = arith.mulf %118, %122 : vector<16x1xf32>
    %cst_40 = arith.constant 1.562500e-02 : f32
    %124 = vector.broadcast %cst_40 : f32 to vector<16x1xf32>
    %125 = arith.mulf %121, %124 : vector<16x1xf32>
    %126 = arith.mulf %123, %123 : vector<16x1xf32>
    %127 = arith.subf %125, %126 : vector<16x1xf32>
    %cst_41 = arith.constant 0.000000e+00 : f32
    %128 = vector.broadcast %cst_41 : f32 to vector<16x1xf32>
    %129 = arith.maximumf %127, %128 : vector<16x1xf32>
    %130 = vector.broadcast %123 : vector<16x1xf32> to vector<16x128xf32>
    %131 = arith.subf %19, %130 : vector<16x128xf32>
    %cst_42 = arith.constant 9.99999974E-6 : f32
    %132 = vector.broadcast %cst_42 : f32 to vector<16x1xf32>
    %133 = arith.addf %129, %132 : vector<16x1xf32>
    %134 = math.rsqrt %133 : vector<16x1xf32>
    %135 = vector.broadcast %134 : vector<16x1xf32> to vector<16x128xf32>
    %136 = arith.mulf %131, %135 : vector<16x128xf32>
    %137 = vector.extract_strided_slice %4 {offsets = [3, 0], sizes = [1, 128], strides = [1, 1]} : vector<5x128xf32> to vector<1x128xf32>
    %138 = vector.broadcast %137 : vector<1x128xf32> to vector<16x128xf32>
    %139 = arith.mulf %136, %138 : vector<16x128xf32>
    %140 = vector.extract_strided_slice %5 {offsets = [3, 0], sizes = [1, 128], strides = [1, 1]} : vector<5x128xf32> to vector<1x128xf32>
    %141 = vector.broadcast %140 : vector<1x128xf32> to vector<16x128xf32>
    %142 = arith.addf %139, %141 : vector<16x128xf32>
    %143 = arith.mulf %90, %116 : vector<16x128xf32>
    %144 = arith.mulf %58, %142 : vector<16x128xf32>
    %145 = arith.addf %143, %144 : vector<16x128xf32>
    %146 = arith.truncf %145 : vector<16x128xf32> to vector<16x128xbf16>
    %c0_43 = arith.constant 0 : index
    %c0_44 = arith.constant 0 : index
    %147 = vector.load %arg12[%c0_43, %c0_44] : memref<128x128xbf16, #tpu.memory_space<vmem>>, vector<128x128xbf16>
    %cst_45 = arith.constant dense<0.000000e+00> : vector<16x128xf32>
    %148 = tpu.matmul %146, %147, %cst_45 {dimension_numbers = #tpu.dot_dimension_numbers<[1], [0], [0], [1], [0, 0, 1, 1], [], []>} : vector<16x128xbf16>, vector<128x128xbf16>, vector<16x128xf32> -> vector<16x128xf32>
    %c0_46 = arith.constant 0 : index
    %c0_47 = arith.constant 0 : index
    %149 = vector.load %arg13[%c0_46, %c0_47] : memref<1x128xf32, #tpu.memory_space<vmem>>, vector<1x128xf32>
    %150 = vector.broadcast %149 : vector<1x128xf32> to vector<16x128xf32>
    %151 = arith.addf %148, %150 : vector<16x128xf32>
    %cst_48 = arith.constant dense<0.000000e+00> : vector<16xf32>
    %152 = vector.multi_reduction <add>, %151, %cst_48 [1] : vector<16x128xf32> to vector<16xf32>
    %153 = vector.shape_cast %152 : vector<16xf32> to vector<16x1xf32>
    %154 = arith.mulf %151, %151 : vector<16x128xf32>
    %cst_49 = arith.constant dense<0.000000e+00> : vector<16xf32>
    %155 = vector.multi_reduction <add>, %154, %cst_49 [1] : vector<16x128xf32> to vector<16xf32>
    %156 = vector.shape_cast %155 : vector<16xf32> to vector<16x1xf32>
    %cst_50 = arith.constant 1.562500e-02 : f32
    %157 = vector.broadcast %cst_50 : f32 to vector<16x1xf32>
    %158 = arith.mulf %153, %157 : vector<16x1xf32>
    %cst_51 = arith.constant 1.562500e-02 : f32
    %159 = vector.broadcast %cst_51 : f32 to vector<16x1xf32>
    %160 = arith.mulf %156, %159 : vector<16x1xf32>
    %161 = arith.mulf %158, %158 : vector<16x1xf32>
    %162 = arith.subf %160, %161 : vector<16x1xf32>
    %cst_52 = arith.constant 0.000000e+00 : f32
    %163 = vector.broadcast %cst_52 : f32 to vector<16x1xf32>
    %164 = arith.maximumf %162, %163 : vector<16x1xf32>
    %165 = vector.broadcast %158 : vector<16x1xf32> to vector<16x128xf32>
    %166 = arith.subf %151, %165 : vector<16x128xf32>
    %cst_53 = arith.constant 9.99999974E-6 : f32
    %167 = vector.broadcast %cst_53 : f32 to vector<16x1xf32>
    %168 = arith.addf %164, %167 : vector<16x1xf32>
    %169 = math.rsqrt %168 : vector<16x1xf32>
    %170 = vector.broadcast %169 : vector<16x1xf32> to vector<16x128xf32>
    %171 = arith.mulf %166, %170 : vector<16x128xf32>
    %172 = vector.extract_strided_slice %4 {offsets = [4, 0], sizes = [1, 128], strides = [1, 1]} : vector<5x128xf32> to vector<1x128xf32>
    %173 = vector.broadcast %172 : vector<1x128xf32> to vector<16x128xf32>
    %174 = arith.mulf %171, %173 : vector<16x128xf32>
    %175 = vector.extract_strided_slice %5 {offsets = [4, 0], sizes = [1, 128], strides = [1, 1]} : vector<5x128xf32> to vector<1x128xf32>
    %176 = vector.broadcast %175 : vector<1x128xf32> to vector<16x128xf32>
    %177 = arith.addf %174, %176 : vector<16x128xf32>
    %cst_54 = arith.constant 0.000000e+00 : f32
    %178 = vector.broadcast %cst_54 : f32 to vector<16x128xf32>
    %179 = arith.maximumf %177, %178 : vector<16x128xf32>
    %c0_i32_55 = arith.constant 0 : i32
    %180 = arith.cmpi eq, %arg1, %c0_i32_55 : i32
    %181 = arith.extui %180 : i1 to i32
    %c0_i32_56 = arith.constant 0 : i32
    %182 = arith.cmpi ne, %181, %c0_i32_56 : i32
    scf.if %182 {
      %186 = arith.truncf %179 : vector<16x128xf32> to vector<16x128xbf16>
      %c0_59 = arith.constant 0 : index
      %c0_60 = arith.constant 0 : index
      %187 = vector.load %arg17[%c0_59, %c0_60] : memref<16x128xbf16, #tpu.memory_space<vmem>>, vector<16x128xbf16>
      tpu.vector_store %arg17[%c0_59, %c0_60], %186 {strides = array<i32>} : memref<16x128xbf16, #tpu.memory_space<vmem>>, vector<16x128xbf16>,
      %c0_61 = arith.constant 0 : index
      %c0_62 = arith.constant 0 : index
      %188 = vector.load %arg16[%c0_61, %c0_62] : memref<16x128xf32, #tpu.memory_space<vmem>>, vector<16x128xf32>
      tpu.vector_store %arg16[%c0_61, %c0_62], %179 {strides = array<i32>} : memref<16x128xf32, #tpu.memory_space<vmem>>, vector<16x128xf32>,
    } else {
    }
    %c1_i32_57 = arith.constant 1 : i32
    %183 = arith.cmpi eq, %arg1, %c1_i32_57 : i32
    %184 = arith.extui %183 : i1 to i32
    %c0_i32_58 = arith.constant 0 : i32
    %185 = arith.cmpi ne, %184, %c0_i32_58 : i32
    scf.if %185 {
      %c0_59 = arith.constant 0 : index
      %c0_60 = arith.constant 0 : index
      %186 = vector.load %arg3[%c0_59, %c0_60] : memref<16x1xf32, #tpu.memory_space<vmem>>, vector<16x1xf32>
      %cst_61 = arith.constant 0.000000e+00 : f32
      %187 = vector.broadcast %cst_61 : f32 to vector<16x1xf32>
      %188 = arith.cmpf one, %186, %187 : vector<16x1xf32>
      %c0_62 = arith.constant 0 : index
      %c0_63 = arith.constant 0 : index
      %189 = vector.load %arg16[%c0_62, %c0_63] : memref<16x128xf32, #tpu.memory_space<vmem>>, vector<16x128xf32>
      %190 = vector.shape_cast %188 : vector<16x1xi1> to vector<16x1xi1>
      %191 = vector.broadcast %190 : vector<16x1xi1> to vector<16x128xi1>
      %192 = arith.select %191, %189, %179 : vector<16x128xi1>, vector<16x128xf32>
      %c0_64 = arith.constant 0 : index
      %c0_65 = arith.constant 0 : index
      %193 = vector.load %arg16[%c0_64, %c0_65] : memref<16x128xf32, #tpu.memory_space<vmem>>, vector<16x128xf32>
      tpu.vector_store %arg16[%c0_64, %c0_65], %192 {strides = array<i32>} : memref<16x128xf32, #tpu.memory_space<vmem>>, vector<16x128xf32>,
    } else {
    }
    return
  }
  func.func @transform_0(%arg0: i32, %arg1: i32) -> (i32, i32) {
    %c0_i32 = arith.constant 0 : i32
    %c0_i32_0 = arith.constant 0 : i32
    return %arg0, %c0_i32 : i32, i32
  }
  func.func @transform_1(%arg0: i32, %arg1: i32) -> (i32, i32) {
    %c0_i32 = arith.constant 0 : i32
    %c0_i32_0 = arith.constant 0 : i32
    return %arg0, %c0_i32 : i32, i32
  }
  func.func @transform_2(%arg0: i32, %arg1: i32) -> (i32, i32) {
    %c0_i32 = arith.constant 0 : i32
    %c0_i32_0 = arith.constant 0 : i32
    return %arg0, %c0_i32 : i32, i32
  }
  func.func @transform_3(%arg0: i32, %arg1: i32) -> (i32, i32) {
    %c0_i32 = arith.constant 0 : i32
    %c0_i32_0 = arith.constant 0 : i32
    return %arg0, %c0_i32 : i32, i32
  }
  func.func @transform_4(%arg0: i32, %arg1: i32) -> (i32, i32) {
    %c0_i32 = arith.constant 0 : i32
    %c0_i32_0 = arith.constant 0 : i32
    %c0_i32_1 = arith.constant 0 : i32
    return %c0_i32, %c0_i32_0 : i32, i32
  }
  func.func @transform_5(%arg0: i32, %arg1: i32) -> (i32, i32) {
    %c0_i32 = arith.constant 0 : i32
    %c0_i32_0 = arith.constant 0 : i32
    %c0_i32_1 = arith.constant 0 : i32
    return %c0_i32, %c0_i32_0 : i32, i32
  }
  func.func @transform_6(%arg0: i32, %arg1: i32) -> (i32, i32) {
    %c0_i32 = arith.constant 0 : i32
    %c0_i32_0 = arith.constant 0 : i32
    %c0_i32_1 = arith.constant 0 : i32
    return %c0_i32, %c0_i32_0 : i32, i32
  }
  func.func @transform_7(%arg0: i32, %arg1: i32) -> (i32, i32) {
    %c0_i32 = arith.constant 0 : i32
    %c0_i32_0 = arith.constant 0 : i32
    %c0_i32_1 = arith.constant 0 : i32
    return %c0_i32, %c0_i32_0 : i32, i32
  }
  func.func @transform_8(%arg0: i32, %arg1: i32) -> (i32, i32) {
    %c0_i32 = arith.constant 0 : i32
    %c0_i32_0 = arith.constant 0 : i32
    %c0_i32_1 = arith.constant 0 : i32
    return %c0_i32, %c0_i32_0 : i32, i32
  }
  func.func @transform_9(%arg0: i32, %arg1: i32) -> (i32, i32) {
    %c0_i32 = arith.constant 0 : i32
    %c0_i32_0 = arith.constant 0 : i32
    %c0_i32_1 = arith.constant 0 : i32
    return %c0_i32, %c0_i32_0 : i32, i32
  }
  func.func @transform_10(%arg0: i32, %arg1: i32) -> (i32, i32) {
    %c0_i32 = arith.constant 0 : i32
    %c0_i32_0 = arith.constant 0 : i32
    %c0_i32_1 = arith.constant 0 : i32
    return %c0_i32, %c0_i32_0 : i32, i32
  }
  func.func @transform_11(%arg0: i32, %arg1: i32) -> (i32, i32) {
    %c0_i32 = arith.constant 0 : i32
    %c0_i32_0 = arith.constant 0 : i32
    %c0_i32_1 = arith.constant 0 : i32
    return %c0_i32, %c0_i32_0 : i32, i32
  }
  func.func @transform_12(%arg0: i32, %arg1: i32) -> (i32, i32) {
    %c0_i32 = arith.constant 0 : i32
    %c0_i32_0 = arith.constant 0 : i32
    %c0_i32_1 = arith.constant 0 : i32
    return %c0_i32, %c0_i32_0 : i32, i32
  }
  func.func @transform_13(%arg0: i32, %arg1: i32) -> (i32, i32) {
    %c0_i32 = arith.constant 0 : i32
    %c0_i32_0 = arith.constant 0 : i32
    %c0_i32_1 = arith.constant 0 : i32
    return %c0_i32, %c0_i32_0 : i32, i32
  }
  func.func @transform_14(%arg0: i32, %arg1: i32) -> (i32, i32) {
    %c0_i32 = arith.constant 0 : i32
    %c0_i32_0 = arith.constant 0 : i32
    return %arg0, %c0_i32 : i32, i32
  }
}

module attributes {stable_mosaic.version = 11 : i64} {
  func.func @_fused_update_kernel(%arg0: i32, %arg1: i32, %arg2: memref<16x1xf32, #tpu.memory_space<vmem>>, %arg3: memref<16x1xf32, #tpu.memory_space<vmem>>, %arg4: memref<16x128xbf16, #tpu.memory_space<vmem>>, %arg5: memref<16x128xbf16, #tpu.memory_space<vmem>>, %arg6: memref<128x256xbf16, #tpu.memory_space<vmem>>, %arg7: memref<1x256xf32, #tpu.memory_space<vmem>>, %arg8: memref<128x256xbf16, #tpu.memory_space<vmem>>, %arg9: memref<1x256xf32, #tpu.memory_space<vmem>>, %arg10: memref<128x256xbf16, #tpu.memory_space<vmem>>, %arg11: memref<1x256xf32, #tpu.memory_space<vmem>>, %arg12: memref<128x128xbf16, #tpu.memory_space<vmem>>, %arg13: memref<1x128xf32, #tpu.memory_space<vmem>>, %arg14: memref<5x128xf32, #tpu.memory_space<vmem>>, %arg15: memref<5x128xf32, #tpu.memory_space<vmem>>, %arg16: memref<16x128xf32, #tpu.memory_space<vmem>>, %arg17: memref<16x128xbf16, #tpu.memory_space<vmem>>) attributes {dimension_semantics = [#tpu.dimension_semantics<parallel>, #tpu.dimension_semantics<arbitrary>], iteration_bounds = array<i64: 2, 2>, scalar_prefetch = 0 : i64, scratch_operands = 1 : i64, tpu.core_type = #tpu.core_type<tc>, window_params = [{transform_indices = @transform_0, window_bounds = array<i64: 16, 1>}, {transform_indices = @transform_1, window_bounds = array<i64: 16, 1>}, {transform_indices = @transform_2, window_bounds = array<i64: 16, 128>}, {transform_indices = @transform_3, window_bounds = array<i64: 16, 128>}, {pipeline_mode = #tpu.pipeline_mode<synchronous>, transform_indices = @transform_4, window_bounds = array<i64: 128, 256>}, {pipeline_mode = #tpu.pipeline_mode<synchronous>, transform_indices = @transform_5, window_bounds = array<i64: 1, 256>}, {pipeline_mode = #tpu.pipeline_mode<synchronous>, transform_indices = @transform_6, window_bounds = array<i64: 128, 256>}, {pipeline_mode = #tpu.pipeline_mode<synchronous>, transform_indices = @transform_7, window_bounds = array<i64: 1, 256>}, {pipeline_mode = #tpu.pipeline_mode<synchronous>, transform_indices = @transform_8, window_bounds = array<i64: 128, 256>}, {pipeline_mode = #tpu.pipeline_mode<synchronous>, transform_indices = @transform_9, window_bounds = array<i64: 1, 256>}, {pipeline_mode = #tpu.pipeline_mode<synchronous>, transform_indices = @transform_10, window_bounds = array<i64: 128, 128>}, {pipeline_mode = #tpu.pipeline_mode<synchronous>, transform_indices = @transform_11, window_bounds = array<i64: 1, 128>}, {pipeline_mode = #tpu.pipeline_mode<synchronous>, transform_indices = @transform_12, window_bounds = array<i64: 5, 128>}, {pipeline_mode = #tpu.pipeline_mode<synchronous>, transform_indices = @transform_13, window_bounds = array<i64: 5, 128>}, {transform_indices = @transform_14, window_bounds = array<i64: 16, 128>}]} {
    %c1_i32 = arith.constant 1 : i32
    %0 = arith.cmpi eq, %arg1, %c1_i32 : i32
    %1 = arith.extui %0 : i1 to i32
    %c0_i32 = arith.constant 0 : i32
    %2 = arith.cmpi ne, %1, %c0_i32 : i32
    %3:2 = scf.if %2 -> (vector<16x128xbf16>, vector<16x128xbf16>) {
      %c0_59 = arith.constant 0 : index
      %c0_60 = arith.constant 0 : index
      %186 = vector.load %arg17[%c0_59, %c0_60] : memref<16x128xbf16, #tpu.memory_space<vmem>>, vector<16x128xbf16>
      %c0_61 = arith.constant 0 : index
      %c0_62 = arith.constant 0 : index
      %187 = vector.load %arg2[%c0_61, %c0_62] : memref<16x1xf32, #tpu.memory_space<vmem>>, vector<16x1xf32>
      %cst_63 = arith.constant 0.000000e+00 : f32
      %188 = vector.broadcast %cst_63 : f32 to vector<16x1xf32>
      %189 = arith.cmpf one, %187, %188 : vector<16x1xf32>
      %c0_64 = arith.constant 0 : index
      %c0_65 = arith.constant 0 : index
      %190 = vector.load %arg4[%c0_64, %c0_65] : memref<16x128xbf16, #tpu.memory_space<vmem>>, vector<16x128xbf16>
      %191 = vector.shape_cast %189 : vector<16x1xi1> to vector<16x1xi1>
      %192 = vector.broadcast %191 : vector<16x1xi1> to vector<16x128xi1>
      %193 = arith.select %192, %186, %190 : vector<16x128xi1>, vector<16x128xbf16>
      %c0_66 = arith.constant 0 : index
      %c0_67 = arith.constant 0 : index
      %194 = vector.load %arg5[%c0_66, %c0_67] : memref<16x128xbf16, #tpu.memory_space<vmem>>, vector<16x128xbf16>
      %195 = vector.shape_cast %189 : vector<16x1xi1> to vector<16x1xi1>
      %196 = vector.broadcast %195 : vector<16x1xi1> to vector<16x128xi1>
      %197 = arith.select %196, %186, %194 : vector<16x128xi1>, vector<16x128xbf16>
      scf.yield %193, %197 : vector<16x128xbf16>, vector<16x128xbf16>
    } else {
      %c0_59 = arith.constant 0 : index
      %c0_60 = arith.constant 0 : index
      %186 = vector.load %arg4[%c0_59, %c0_60] : memref<16x128xbf16, #tpu.memory_space<vmem>>, vector<16x128xbf16>
      %c0_61 = arith.constant 0 : index
      %c0_62 = arith.constant 0 : index
      %187 = vector.load %arg5[%c0_61, %c0_62] : memref<16x128xbf16, #tpu.memory_space<vmem>>, vector<16x128xbf16>
      scf.yield %186, %187 : vector<16x128xbf16>, vector<16x128xbf16>
    }
    %c0 = arith.constant 0 : index
    %c0_0 = arith.constant 0 : index
    %4 = vector.load %arg14[%c0, %c0_0] : memref<5x128xf32, #tpu.memory_space<vmem>>, vector<5x128xf32>
    %c0_1 = arith.constant 0 : index
    %c0_2 = arith.constant 0 : index
    %5 = vector.load %arg15[%c0_1, %c0_2] : memref<5x128xf32, #tpu.memory_space<vmem>>, vector<5x128xf32>
    %c0_3 = arith.constant 0 : index
    %c0_4 = arith.constant 0 : index
    %6 = vector.load %arg6[%c0_3, %c0_4] : memref<128x256xbf16, #tpu.memory_space<vmem>>, vector<128x256xbf16>
    %cst = arith.constant dense<0.000000e+00> : vector<16x256xf32>
    %7 = tpu.matmul %3#0, %6, %cst {dimension_numbers = #tpu.dot_dimension_numbers<[1], [0], [0], [1], [0, 0, 1, 1], [], []>} : vector<16x128xbf16>, vector<128x256xbf16>, vector<16x256xf32> -> vector<16x256xf32>
    %c0_5 = arith.constant 0 : index
    %c0_6 = arith.constant 0 : index
    %8 = vector.load %arg7[%c0_5, %c0_6] : memref<1x256xf32, #tpu.memory_space<vmem>>, vector<1x256xf32>
    %9 = vector.broadcast %8 : vector<1x256xf32> to vector<16x256xf32>
    %10 = arith.addf %7, %9 : vector<16x256xf32>
    %c0_7 = arith.constant 0 : index
    %c0_8 = arith.constant 0 : index
    %11 = vector.load %arg8[%c0_7, %c0_8] : memref<128x256xbf16, #tpu.memory_space<vmem>>, vector<128x256xbf16>
    %cst_9 = arith.constant dense<0.000000e+00> : vector<16x256xf32>
    %12 = tpu.matmul %3#1, %11, %cst_9 {dimension_numbers = #tpu.dot_dimension_numbers<[1], [0], [0], [1], [0, 0, 1, 1], [], []>} : vector<16x128xbf16>, vector<128x256xbf16>, vector<16x256xf32> -> vector<16x256xf32>
    %c0_10 = arith.constant 0 : index
    %c0_11 = arith.constant 0 : index
    %13 = vector.load %arg9[%c0_10, %c0_11] : memref<1x256xf32, #tpu.memory_space<vmem>>, vector<1x256xf32>
    %14 = vector.broadcast %13 : vector<1x256xf32> to vector<16x256xf32>
    %15 = arith.addf %12, %14 : vector<16x256xf32>
    %16 = vector.extract_strided_slice %10 {offsets = [0, 0], sizes = [16, 128], strides = [1, 1]} : vector<16x256xf32> to vector<16x128xf32>
    %17 = vector.extract_strided_slice %10 {offsets = [0, 128], sizes = [16, 128], strides = [1, 1]} : vector<16x256xf32> to vector<16x128xf32>
    %18 = vector.extract_strided_slice %15 {offsets = [0, 0], sizes = [16, 128], strides = [1, 1]} : vector<16x256xf32> to vector<16x128xf32>
    %19 = vector.extract_strided_slice %15 {offsets = [0, 128], sizes = [16, 128], strides = [1, 1]} : vector<16x256xf32> to vector<16x128xf32>
    %20 = arith.mulf %18, %16 : vector<16x128xf32>
    %21 = arith.truncf %20 : vector<16x128xf32> to vector<16x128xbf16>
    %c0_12 = arith.constant 0 : index
    %c0_13 = arith.constant 0 : index
    %22 = vector.load %arg10[%c0_12, %c0_13] : memref<128x256xbf16, #tpu.memory_space<vmem>>, vector<128x256xbf16>
    %cst_14 = arith.constant dense<0.000000e+00> : vector<16x256xf32>
    %23 = tpu.matmul %21, %22, %cst_14 {dimension_numbers = #tpu.dot_dimension_numbers<[1], [0], [0], [1], [0, 0, 1, 1], [], []>} : vector<16x128xbf16>, vector<128x256xbf16>, vector<16x256xf32> -> vector<16x256xf32>
    %c0_15 = arith.constant 0 : index
    %c0_16 = arith.constant 0 : index
    %24 = vector.load %arg11[%c0_15, %c0_16] : memref<1x256xf32, #tpu.memory_space<vmem>>, vector<1x256xf32>
    %25 = vector.broadcast %24 : vector<1x256xf32> to vector<16x256xf32>
    %26 = arith.addf %23, %25 : vector<16x256xf32>
    %27 = vector.extract_strided_slice %26 {offsets = [0, 0], sizes = [16, 128], strides = [1, 1]} : vector<16x256xf32> to vector<16x128xf32>
    %cst_17 = arith.constant dense<0.000000e+00> : vector<16xf32>
    %28 = vector.multi_reduction <add>, %27, %cst_17 [1] : vector<16x128xf32> to vector<16xf32>
    %29 = vector.shape_cast %28 : vector<16xf32> to vector<16x1xf32>
    %30 = arith.mulf %27, %27 : vector<16x128xf32>
    %cst_18 = arith.constant dense<0.000000e+00> : vector<16xf32>
    %31 = vector.multi_reduction <add>, %30, %cst_18 [1] : vector<16x128xf32> to vector<16xf32>
    %32 = vector.shape_cast %31 : vector<16xf32> to vector<16x1xf32>
    %cst_19 = arith.constant 1.562500e-02 : f32
    %33 = vector.broadcast %cst_19 : f32 to vector<16x1xf32>
    %34 = arith.mulf %29, %33 : vector<16x1xf32>
    %cst_20 = arith.constant 1.562500e-02 : f32
    %35 = vector.broadcast %cst_20 : f32 to vector<16x1xf32>
    %36 = arith.mulf %32, %35 : vector<16x1xf32>
    %37 = arith.mulf %34, %34 : vector<16x1xf32>
    %38 = arith.subf %36, %37 : vector<16x1xf32>
    %cst_21 = arith.constant 0.000000e+00 : f32
    %39 = vector.broadcast %cst_21 : f32 to vector<16x1xf32>
    %40 = arith.maximumf %38, %39 : vector<16x1xf32>
    %41 = vector.broadcast %34 : vector<16x1xf32> to vector<16x128xf32>
    %42 = arith.subf %27, %41 : vector<16x128xf32>
    %cst_22 = arith.constant 9.99999974E-6 : f32
    %43 = vector.broadcast %cst_22 : f32 to vector<16x1xf32>
    %44 = arith.addf %40, %43 : vector<16x1xf32>
    %45 = math.rsqrt %44 : vector<16x1xf32>
    %46 = vector.broadcast %45 : vector<16x1xf32> to vector<16x128xf32>
    %47 = arith.mulf %42, %46 : vector<16x128xf32>
    %48 = vector.extract_strided_slice %4 {offsets = [0, 0], sizes = [1, 128], strides = [1, 1]} : vector<5x128xf32> to vector<1x128xf32>
    %49 = vector.broadcast %48 : vector<1x128xf32> to vector<16x128xf32>
    %50 = arith.mulf %47, %49 : vector<16x128xf32>
    %51 = vector.extract_strided_slice %5 {offsets = [0, 0], sizes = [1, 128], strides = [1, 1]} : vector<5x128xf32> to vector<1x128xf32>
    %52 = vector.broadcast %51 : vector<1x128xf32> to vector<16x128xf32>
    %53 = arith.addf %50, %52 : vector<16x128xf32>
    %54 = arith.negf %53 : vector<16x128xf32>
    %55 = math.exp %54 : vector<16x128xf32>
    %cst_23 = arith.constant 1.000000e+00 : f32
    %56 = vector.broadcast %cst_23 : f32 to vector<16x128xf32>
    %57 = arith.addf %56, %55 : vector<16x128xf32>
    %58 = arith.divf %56, %57 : vector<16x128xf32>
    %59 = vector.extract_strided_slice %26 {offsets = [0, 128], sizes = [16, 128], strides = [1, 1]} : vector<16x256xf32> to vector<16x128xf32>
    %cst_24 = arith.constant dense<0.000000e+00> : vector<16xf32>
    %60 = vector.multi_reduction <add>, %59, %cst_24 [1] : vector<16x128xf32> to vector<16xf32>
    %61 = vector.shape_cast %60 : vector<16xf32> to vector<16x1xf32>
    %62 = arith.mulf %59, %59 : vector<16x128xf32>
    %cst_25 = arith.constant dense<0.000000e+00> : vector<16xf32>
    %63 = vector.multi_reduction <add>, %62, %cst_25 [1] : vector<16x128xf32> to vector<16xf32>
    %64 = vector.shape_cast %63 : vector<16xf32> to vector<16x1xf32>
    %cst_26 = arith.constant 1.562500e-02 : f32
    %65 = vector.broadcast %cst_26 : f32 to vector<16x1xf32>
    %66 = arith.mulf %61, %65 : vector<16x1xf32>
    %cst_27 = arith.constant 1.562500e-02 : f32
    %67 = vector.broadcast %cst_27 : f32 to vector<16x1xf32>
    %68 = arith.mulf %64, %67 : vector<16x1xf32>
    %69 = arith.mulf %66, %66 : vector<16x1xf32>
    %70 = arith.subf %68, %69 : vector<16x1xf32>
    %cst_28 = arith.constant 0.000000e+00 : f32
    %71 = vector.broadcast %cst_28 : f32 to vector<16x1xf32>
    %72 = arith.maximumf %70, %71 : vector<16x1xf32>
    %73 = vector.broadcast %66 : vector<16x1xf32> to vector<16x128xf32>
    %74 = arith.subf %59, %73 : vector<16x128xf32>
    %cst_29 = arith.constant 9.99999974E-6 : f32
    %75 = vector.broadcast %cst_29 : f32 to vector<16x1xf32>
    %76 = arith.addf %72, %75 : vector<16x1xf32>
    %77 = math.rsqrt %76 : vector<16x1xf32>
    %78 = vector.broadcast %77 : vector<16x1xf32> to vector<16x128xf32>
    %79 = arith.mulf %74, %78 : vector<16x128xf32>
    %80 = vector.extract_strided_slice %4 {offsets = [1, 0], sizes = [1, 128], strides = [1, 1]} : vector<5x128xf32> to vector<1x128xf32>
    %81 = vector.broadcast %80 : vector<1x128xf32> to vector<16x128xf32>
    %82 = arith.mulf %79, %81 : vector<16x128xf32>
    %83 = vector.extract_strided_slice %5 {offsets = [1, 0], sizes = [1, 128], strides = [1, 1]} : vector<5x128xf32> to vector<1x128xf32>
    %84 = vector.broadcast %83 : vector<1x128xf32> to vector<16x128xf32>
    %85 = arith.addf %82, %84 : vector<16x128xf32>
    %86 = arith.negf %85 : vector<16x128xf32>
    %87 = math.exp %86 : vector<16x128xf32>
    %cst_30 = arith.constant 1.000000e+00 : f32
    %88 = vector.broadcast %cst_30 : f32 to vector<16x128xf32>
    %89 = arith.addf %88, %87 : vector<16x128xf32>
    %90 = arith.divf %88, %89 : vector<16x128xf32>
    %cst_31 = arith.constant dense<0.000000e+00> : vector<16xf32>
    %91 = vector.multi_reduction <add>, %17, %cst_31 [1] : vector<16x128xf32> to vector<16xf32>
    %92 = vector.shape_cast %91 : vector<16xf32> to vector<16x1xf32>
    %93 = arith.mulf %17, %17 : vector<16x128xf32>
    %cst_32 = arith.constant dense<0.000000e+00> : vector<16xf32>
    %94 = vector.multi_reduction <add>, %93, %cst_32 [1] : vector<16x128xf32> to vector<16xf32>
    %95 = vector.shape_cast %94 : vector<16xf32> to vector<16x1xf32>
    %cst_33 = arith.constant 1.562500e-02 : f32
    %96 = vector.broadcast %cst_33 : f32 to vector<16x1xf32>
    %97 = arith.mulf %92, %96 : vector<16x1xf32>
    %cst_34 = arith.constant 1.562500e-02 : f32
    %98 = vector.broadcast %cst_34 : f32 to vector<16x1xf32>
    %99 = arith.mulf %95, %98 : vector<16x1xf32>
    %100 = arith.mulf %97, %97 : vector<16x1xf32>
    %101 = arith.subf %99, %100 : vector<16x1xf32>
    %cst_35 = arith.constant 0.000000e+00 : f32
    %102 = vector.broadcast %cst_35 : f32 to vector<16x1xf32>
    %103 = arith.maximumf %101, %102 : vector<16x1xf32>
    %104 = vector.broadcast %97 : vector<16x1xf32> to vector<16x128xf32>
    %105 = arith.subf %17, %104 : vector<16x128xf32>
    %cst_36 = arith.constant 9.99999974E-6 : f32
    %106 = vector.broadcast %cst_36 : f32 to vector<16x1xf32>
    %107 = arith.addf %103, %106 : vector<16x1xf32>
    %108 = math.rsqrt %107 : vector<16x1xf32>
    %109 = vector.broadcast %108 : vector<16x1xf32> to vector<16x128xf32>
    %110 = arith.mulf %105, %109 : vector<16x128xf32>
    %111 = vector.extract_strided_slice %4 {offsets = [2, 0], sizes = [1, 128], strides = [1, 1]} : vector<5x128xf32> to vector<1x128xf32>
    %112 = vector.broadcast %111 : vector<1x128xf32> to vector<16x128xf32>
    %113 = arith.mulf %110, %112 : vector<16x128xf32>
    %114 = vector.extract_strided_slice %5 {offsets = [2, 0], sizes = [1, 128], strides = [1, 1]} : vector<5x128xf32> to vector<1x128xf32>
    %115 = vector.broadcast %114 : vector<1x128xf32> to vector<16x128xf32>
    %116 = arith.addf %113, %115 : vector<16x128xf32>
    %cst_37 = arith.constant dense<0.000000e+00> : vector<16xf32>
    %117 = vector.multi_reduction <add>, %19, %cst_37 [1] : vector<16x128xf32> to vector<16xf32>
    %118 = vector.shape_cast %117 : vector<16xf32> to vector<16x1xf32>
    %119 = arith.mulf %19, %19 : vector<16x128xf32>
    %cst_38 = arith.constant dense<0.000000e+00> : vector<16xf32>
    %120 = vector.multi_reduction <add>, %119, %cst_38 [1] : vector<16x128xf32> to vector<16xf32>
    %121 = vector.shape_cast %120 : vector<16xf32> to vector<16x1xf32>
    %cst_39 = arith.constant 1.562500e-02 : f32
    %122 = vector.broadcast %cst_39 : f32 to vector<16x1xf32>
    %123 = arith.mulf %118, %122 : vector<16x1xf32>
    %cst_40 = arith.constant 1.562500e-02 : f32
    %124 = vector.broadcast %cst_40 : f32 to vector<16x1xf32>
    %125 = arith.mulf %121, %124 : vector<16x1xf32>
    %126 = arith.mulf %123, %123 : vector<16x1xf32>
    %127 = arith.subf %125, %126 : vector<16x1xf32>
    %cst_41 = arith.constant 0.000000e+00 : f32
    %128 = vector.broadcast %cst_41 : f32 to vector<16x1xf32>
    %129 = arith.maximumf %127, %128 : vector<16x1xf32>
    %130 = vector.broadcast %123 : vector<16x1xf32> to vector<16x128xf32>
    %131 = arith.subf %19, %130 : vector<16x128xf32>
    %cst_42 = arith.constant 9.99999974E-6 : f32
    %132 = vector.broadcast %cst_42 : f32 to vector<16x1xf32>
    %133 = arith.addf %129, %132 : vector<16x1xf32>
    %134 = math.rsqrt %133 : vector<16x1xf32>
    %135 = vector.broadcast %134 : vector<16x1xf32> to vector<16x128xf32>
    %136 = arith.mulf %131, %135 : vector<16x128xf32>
    %137 = vector.extract_strided_slice %4 {offsets = [3, 0], sizes = [1, 128], strides = [1, 1]} : vector<5x128xf32> to vector<1x128xf32>
    %138 = vector.broadcast %137 : vector<1x128xf32> to vector<16x128xf32>
    %139 = arith.mulf %136, %138 : vector<16x128xf32>
    %140 = vector.extract_strided_slice %5 {offsets = [3, 0], sizes = [1, 128], strides = [1, 1]} : vector<5x128xf32> to vector<1x128xf32>
    %141 = vector.broadcast %140 : vector<1x128xf32> to vector<16x128xf32>
    %142 = arith.addf %139, %141 : vector<16x128xf32>
    %143 = arith.mulf %90, %116 : vector<16x128xf32>
    %144 = arith.mulf %58, %142 : vector<16x128xf32>
    %145 = arith.addf %143, %144 : vector<16x128xf32>
    %146 = arith.truncf %145 : vector<16x128xf32> to vector<16x128xbf16>
    %c0_43 = arith.constant 0 : index
    %c0_44 = arith.constant 0 : index
    %147 = vector.load %arg12[%c0_43, %c0_44] : memref<128x128xbf16, #tpu.memory_space<vmem>>, vector<128x128xbf16>
    %cst_45 = arith.constant dense<0.000000e+00> : vector<16x128xf32>
    %148 = tpu.matmul %146, %147, %cst_45 {dimension_numbers = #tpu.dot_dimension_numbers<[1], [0], [0], [1], [0, 0, 1, 1], [], []>} : vector<16x128xbf16>, vector<128x128xbf16>, vector<16x128xf32> -> vector<16x128xf32>
    %c0_46 = arith.constant 0 : index
    %c0_47 = arith.constant 0 : index
    %149 = vector.load %arg13[%c0_46, %c0_47] : memref<1x128xf32, #tpu.memory_space<vmem>>, vector<1x128xf32>
    %150 = vector.broadcast %149 : vector<1x128xf32> to vector<16x128xf32>
    %151 = arith.addf %148, %150 : vector<16x128xf32>
    %cst_48 = arith.constant dense<0.000000e+00> : vector<16xf32>
    %152 = vector.multi_reduction <add>, %151, %cst_48 [1] : vector<16x128xf32> to vector<16xf32>
    %153 = vector.shape_cast %152 : vector<16xf32> to vector<16x1xf32>
    %154 = arith.mulf %151, %151 : vector<16x128xf32>
    %cst_49 = arith.constant dense<0.000000e+00> : vector<16xf32>
    %155 = vector.multi_reduction <add>, %154, %cst_49 [1] : vector<16x128xf32> to vector<16xf32>
    %156 = vector.shape_cast %155 : vector<16xf32> to vector<16x1xf32>
    %cst_50 = arith.constant 1.562500e-02 : f32
    %157 = vector.broadcast %cst_50 : f32 to vector<16x1xf32>
    %158 = arith.mulf %153, %157 : vector<16x1xf32>
    %cst_51 = arith.constant 1.562500e-02 : f32
    %159 = vector.broadcast %cst_51 : f32 to vector<16x1xf32>
    %160 = arith.mulf %156, %159 : vector<16x1xf32>
    %161 = arith.mulf %158, %158 : vector<16x1xf32>
    %162 = arith.subf %160, %161 : vector<16x1xf32>
    %cst_52 = arith.constant 0.000000e+00 : f32
    %163 = vector.broadcast %cst_52 : f32 to vector<16x1xf32>
    %164 = arith.maximumf %162, %163 : vector<16x1xf32>
    %165 = vector.broadcast %158 : vector<16x1xf32> to vector<16x128xf32>
    %166 = arith.subf %151, %165 : vector<16x128xf32>
    %cst_53 = arith.constant 9.99999974E-6 : f32
    %167 = vector.broadcast %cst_53 : f32 to vector<16x1xf32>
    %168 = arith.addf %164, %167 : vector<16x1xf32>
    %169 = math.rsqrt %168 : vector<16x1xf32>
    %170 = vector.broadcast %169 : vector<16x1xf32> to vector<16x128xf32>
    %171 = arith.mulf %166, %170 : vector<16x128xf32>
    %172 = vector.extract_strided_slice %4 {offsets = [4, 0], sizes = [1, 128], strides = [1, 1]} : vector<5x128xf32> to vector<1x128xf32>
    %173 = vector.broadcast %172 : vector<1x128xf32> to vector<16x128xf32>
    %174 = arith.mulf %171, %173 : vector<16x128xf32>
    %175 = vector.extract_strided_slice %5 {offsets = [4, 0], sizes = [1, 128], strides = [1, 1]} : vector<5x128xf32> to vector<1x128xf32>
    %176 = vector.broadcast %175 : vector<1x128xf32> to vector<16x128xf32>
    %177 = arith.addf %174, %176 : vector<16x128xf32>
    %cst_54 = arith.constant 0.000000e+00 : f32
    %178 = vector.broadcast %cst_54 : f32 to vector<16x128xf32>
    %179 = arith.maximumf %177, %178 : vector<16x128xf32>
    %c0_i32_55 = arith.constant 0 : i32
    %180 = arith.cmpi eq, %arg1, %c0_i32_55 : i32
    %181 = arith.extui %180 : i1 to i32
    %c0_i32_56 = arith.constant 0 : i32
    %182 = arith.cmpi ne, %181, %c0_i32_56 : i32
    scf.if %182 {
      %186 = arith.truncf %179 : vector<16x128xf32> to vector<16x128xbf16>
      %c0_59 = arith.constant 0 : index
      %c0_60 = arith.constant 0 : index
      %187 = vector.load %arg17[%c0_59, %c0_60] : memref<16x128xbf16, #tpu.memory_space<vmem>>, vector<16x128xbf16>
      tpu.vector_store %arg17[%c0_59, %c0_60], %186 {strides = array<i32>} : memref<16x128xbf16, #tpu.memory_space<vmem>>, vector<16x128xbf16>,
      %c0_61 = arith.constant 0 : index
      %c0_62 = arith.constant 0 : index
      %188 = vector.load %arg16[%c0_61, %c0_62] : memref<16x128xf32, #tpu.memory_space<vmem>>, vector<16x128xf32>
      tpu.vector_store %arg16[%c0_61, %c0_62], %179 {strides = array<i32>} : memref<16x128xf32, #tpu.memory_space<vmem>>, vector<16x128xf32>,
    } else {
    }
    %c1_i32_57 = arith.constant 1 : i32
    %183 = arith.cmpi eq, %arg1, %c1_i32_57 : i32
    %184 = arith.extui %183 : i1 to i32
    %c0_i32_58 = arith.constant 0 : i32
    %185 = arith.cmpi ne, %184, %c0_i32_58 : i32
    scf.if %185 {
      %c0_59 = arith.constant 0 : index
      %c0_60 = arith.constant 0 : index
      %186 = vector.load %arg3[%c0_59, %c0_60] : memref<16x1xf32, #tpu.memory_space<vmem>>, vector<16x1xf32>
      %cst_61 = arith.constant 0.000000e+00 : f32
      %187 = vector.broadcast %cst_61 : f32 to vector<16x1xf32>
      %188 = arith.cmpf one, %186, %187 : vector<16x1xf32>
      %c0_62 = arith.constant 0 : index
      %c0_63 = arith.constant 0 : index
      %189 = vector.load %arg16[%c0_62, %c0_63] : memref<16x128xf32, #tpu.memory_space<vmem>>, vector<16x128xf32>
      %190 = vector.shape_cast %188 : vector<16x1xi1> to vector<16x1xi1>
      %191 = vector.broadcast %190 : vector<16x1xi1> to vector<16x128xi1>
      %192 = arith.select %191, %189, %179 : vector<16x128xi1>, vector<16x128xf32>
      %c0_64 = arith.constant 0 : index
      %c0_65 = arith.constant 0 : index
      %193 = vector.load %arg16[%c0_64, %c0_65] : memref<16x128xf32, #tpu.memory_space<vmem>>, vector<16x128xf32>
      tpu.vector_store %arg16[%c0_64, %c0_65], %192 {strides = array<i32>} : memref<16x128xf32, #tpu.memory_space<vmem>>, vector<16x128xf32>,
    } else {
    }
    return
  }
  func.func @transform_0(%arg0: i32, %arg1: i32) -> (i32, i32) {
    %c0_i32 = arith.constant 0 : i32
    %c0_i32_0 = arith.constant 0 : i32
    return %arg0, %c0_i32 : i32, i32
  }
  func.func @transform_1(%arg0: i32, %arg1: i32) -> (i32, i32) {
    %c0_i32 = arith.constant 0 : i32
    %c0_i32_0 = arith.constant 0 : i32
    return %arg0, %c0_i32 : i32, i32
  }
  func.func @transform_2(%arg0: i32, %arg1: i32) -> (i32, i32) {
    %c0_i32 = arith.constant 0 : i32
    %c0_i32_0 = arith.constant 0 : i32
    return %arg0, %c0_i32 : i32, i32
  }
  func.func @transform_3(%arg0: i32, %arg1: i32) -> (i32, i32) {
    %c0_i32 = arith.constant 0 : i32
    %c0_i32_0 = arith.constant 0 : i32
    return %arg0, %c0_i32 : i32, i32
  }
  func.func @transform_4(%arg0: i32, %arg1: i32) -> (i32, i32) {
    %c0_i32 = arith.constant 0 : i32
    %c0_i32_0 = arith.constant 0 : i32
    %c0_i32_1 = arith.constant 0 : i32
    return %c0_i32, %c0_i32_0 : i32, i32
  }
  func.func @transform_5(%arg0: i32, %arg1: i32) -> (i32, i32) {
    %c0_i32 = arith.constant 0 : i32
    %c0_i32_0 = arith.constant 0 : i32
    %c0_i32_1 = arith.constant 0 : i32
    return %c0_i32, %c0_i32_0 : i32, i32
  }
  func.func @transform_6(%arg0: i32, %arg1: i32) -> (i32, i32) {
    %c0_i32 = arith.constant 0 : i32
    %c0_i32_0 = arith.constant 0 : i32
    %c0_i32_1 = arith.constant 0 : i32
    return %c0_i32, %c0_i32_0 : i32, i32
  }
  func.func @transform_7(%arg0: i32, %arg1: i32) -> (i32, i32) {
    %c0_i32 = arith.constant 0 : i32
    %c0_i32_0 = arith.constant 0 : i32
    %c0_i32_1 = arith.constant 0 : i32
    return %c0_i32, %c0_i32_0 : i32, i32
  }
  func.func @transform_8(%arg0: i32, %arg1: i32) -> (i32, i32) {
    %c0_i32 = arith.constant 0 : i32
    %c0_i32_0 = arith.constant 0 : i32
    %c0_i32_1 = arith.constant 0 : i32
    return %c0_i32, %c0_i32_0 : i32, i32
  }
  func.func @transform_9(%arg0: i32, %arg1: i32) -> (i32, i32) {
    %c0_i32 = arith.constant 0 : i32
    %c0_i32_0 = arith.constant 0 : i32
    %c0_i32_1 = arith.constant 0 : i32
    return %c0_i32, %c0_i32_0 : i32, i32
  }
  func.func @transform_10(%arg0: i32, %arg1: i32) -> (i32, i32) {
    %c0_i32 = arith.constant 0 : i32
    %c0_i32_0 = arith.constant 0 : i32
    %c0_i32_1 = arith.constant 0 : i32
    return %c0_i32, %c0_i32_0 : i32, i32
  }
  func.func @transform_11(%arg0: i32, %arg1: i32) -> (i32, i32) {
    %c0_i32 = arith.constant 0 : i32
    %c0_i32_0 = arith.constant 0 : i32
    %c0_i32_1 = arith.constant 0 : i32
    return %c0_i32, %c0_i32_0 : i32, i32
  }
  func.func @transform_12(%arg0: i32, %arg1: i32) -> (i32, i32) {
    %c0_i32 = arith.constant 0 : i32
    %c0_i32_0 = arith.constant 0 : i32
    %c0_i32_1 = arith.constant 0 : i32
    return %c0_i32, %c0_i32_0 : i32, i32
  }
  func.func @transform_13(%arg0: i32, %arg1: i32) -> (i32, i32) {
    %c0_i32 = arith.constant 0 : i32
    %c0_i32_0 = arith.constant 0 : i32
    %c0_i32_1 = arith.constant 0 : i32
    return %c0_i32, %c0_i32_0 : i32, i32
  }
  func.func @transform_14(%arg0: i32, %arg1: i32) -> (i32, i32) {
    %c0_i32 = arith.constant 0 : i32
    %c0_i32_0 = arith.constant 0 : i32
    return %arg0, %c0_i32 : i32, i32
  }
}

</mosaic_0001>

<llo_original>
// kernel: tree_like_forward.1
$region0: #{tree_like_forward.1}
  #allocation0 [shape = 'u32[]', space=smem, size = 0x4, offset = 0x4, fixed_abs, tag = 'smem constant byte address 0x4 - core index']
  #allocation1 [shape = 'u32[72,128]{1,0:T(1,128)}', space=vmem, size = 0x9000, scoped, tag = 'internal scratch']
  #allocation2 [shape = 'bf16[16,128]{1,0:T(8,128)(2,1)}', space=vmem, size = 0x1000, scoped, tag = 'scratch operand']
  %s0 = inlined_call_operand.vmem [shape: f32[32,1], index: 0, kind: input, shape index: {}]
  %s1 = inlined_call_operand.vmem [shape: f32[32,1], index: 1, kind: input, shape index: {}]
  %s2 = inlined_call_operand.vmem [shape: bf16[32,128], index: 2, kind: input, shape index: {}]
  %s3 = inlined_call_operand.vmem [shape: bf16[32,128], index: 3, kind: input, shape index: {}]
  %s4 = inlined_call_operand.vmem [shape: bf16[128,256], index: 4, kind: input, shape index: {}]
  %s5 = inlined_call_operand.vmem [shape: f32[1,256], index: 5, kind: input, shape index: {}]
  %s6 = inlined_call_operand.vmem [shape: bf16[128,256], index: 6, kind: input, shape index: {}]
  %s7 = inlined_call_operand.vmem [shape: f32[1,256], index: 7, kind: input, shape index: {}]
  %s8 = inlined_call_operand.hbm [shape: bf16[128,256], index: 8, kind: input, shape index: {}]
  %s9 = inlined_call_operand.vmem [shape: f32[1,256], index: 9, kind: input, shape index: {}]
  %s10 = inlined_call_operand.hbm [shape: bf16[128,128], index: 10, kind: input, shape index: {}]
  %s11 = inlined_call_operand.vmem [shape: f32[1,128], index: 11, kind: input, shape index: {}]
  %s12 = inlined_call_operand.hbm [shape: f32[5,128], index: 12, kind: input, shape index: {}]
  %s13 = inlined_call_operand.hbm [shape: f32[5,128], index: 13, kind: input, shape index: {}]
  %s14 = inlined_call_operand.vmem [shape: f32[32,128], index: 14, kind: output, shape index: {}]
  %s15 = sld [smem:[#allocation0]]
  $region121: #{tree_like_forward.1} parent=0
    _
  %s17 = ssub.s32 1, %s15
  %s18 = scalar_select 0, %s17, %s15
  $region1: #{tree_like_forward.1} parent=0
    #allocation3 [shape = 'u8[65536]{0}', space=vmem, size = 0x10000, scoped, tag = 'input window, operand 8, single buffered']
    #allocation4 [shape = 's32[2]{0}', space=sflag, size = 0x8, scoped, tag = 'scoped memory for tree_like_forward.1']
    #allocation5 [shape = 'u8[32768]{0}', space=vmem, size = 0x8000, scoped, tag = 'input window, operand 10, single buffered']
    #allocation6 [shape = 's32[1]{0}', space=sflag, size = 0x4, scoped, tag = 'scoped memory for tree_like_forward.1']
    #allocation7 [shape = 'u8[4096]{0}', space=vmem, size = 0x1000, scoped, tag = 'input window, operand 12, single buffered']
    #allocation8 [shape = 'u8[4096]{0}', space=vmem, size = 0x1000, scoped, tag = 'input window, operand 13, single buffered']
    #allocation9 [shape = 's32[1]{0}', space=sflag, size = 0x4, scoped, tag = 'scoped memory for tree_like_forward.1']
    %19 = vsyncpa [#allocation4], 0
    %20 = vsyncpa [#allocation6], 0
    %21 = vsyncpa [#allocation9], 0
    loop: start=0, step=1, limit=6
    $region2: #{tree_like_forward.1} parent=1 // loop_pre_header
      _
    $region3: #{tree_like_forward.1} parent=1 // loop_header
      %s23 = sphi 0, %s27
      %p24 = scmp.ge.s32.totalorder %s23, 6
      %s30 = sphi 0, %s42
      %s31 = sphi 0, %s38
      %s32 = sphi 0, %s30
      %s33 = sphi 0, %s31
      %s34 = sphi 0, %s32
      %s35 = sphi 0, %s33
      %s45 = sphi 0, %s47
      %s48 = sphi 0, %s45
      %s49 = sphi 0, %s48
      %s65 = sphi 0, %s49
      %s71 = sphi 0, %s73
      %s74 = sphi 0, %s71
      %s75 = sphi 0, %s74
      %s91 = sphi 0, %s75
      %s97 = sphi 0, %s99
      %s100 = sphi 0, %s97
      %s101 = sphi 0, %s100
      %s117 = sphi 0, %s101
      %s123 = sphi 0, %s125
      %s126 = sphi 0, %s123
      %s127 = sphi 0, %s126
      %s143 = sphi 0, %s127
      %s147 = sphi 0, %s147
      %s149 = sphi 0, %s147
      %s150 = sphi 0, %s149
      %s164 = sphi 0, %s150
      %s168 = sphi 0, %s168
      %s170 = sphi 0, %s168
      %s171 = sphi 0, %s170
      %s185 = sphi 0, %s171
      %s189 = sphi 0, %s189
      %s191 = sphi 0, %s189
      %s192 = sphi 0, %s191
      %s206 = sphi 0, %s192
      %s210 = sphi 0, %s210
      %s212 = sphi 0, %s210
      %s213 = sphi 0, %s212
      %s227 = sphi 0, %s213
      %s231 = sphi 0, %s231
      %s233 = sphi 0, %s231
      %s234 = sphi 0, %s233
      %s248 = sphi 0, %s234
      %s252 = sphi 0, %s252
      %s254 = sphi 0, %s252
      %s255 = sphi 0, %s254
      %s269 = sphi 0, %s255
      %s273 = sphi 0, %s273
      %s275 = sphi 0, %s273
      %s276 = sphi 0, %s275
      %s290 = sphi 0, %s276
      %s294 = sphi 0, %s294
      %s296 = sphi 0, %s294
      %s297 = sphi 0, %s296
      %s311 = sphi 0, %s297
      %s315 = sphi 0, %s315
      %s317 = sphi 0, %s315
      %s318 = sphi 0, %s317
      %s332 = sphi 0, %s318
      %s336 = sphi 0, %s336
      %s338 = sphi 0, %s336
      %s339 = sphi 0, %s338
      %s353 = sphi 0, %s339
      %s359 = sphi 0, %s361
      %s362 = sphi 0, %s359
      %s363 = sphi 0, %s362
      %s379 = sphi 0, %s363
    $region4: #{tree_like_forward.1} parent=1 // loop_header_branch
      %26 = sbr.rel (%p24) target = $region8
    $region5: #{tree_like_forward.1} parent=1 // loop_body
      %s28 = ssub.s32 %s23, 1
      %s29 = ssub.s32 %s23, 2
      %s36 = sadd.s32 1, %s31
      %p37 = scmp.ge.s32.totalorder %s36, 2
      %s38 = scalar_select %p37, 0, %s36
      %s39 = sadd.s32 1, %s30
      %s40 = scalar_select %p37, %s39, %s30
      %p41 = scmp.ge.s32.totalorder %s40, 2
      %s42 = scalar_select %p41, 0, %s40
      %s43 = ssub.s32 %s30, %s42
      %p44 = scmp.eq.s32.totalorder %s43, 0
      %s46 = sadd.s32 %s45, 1
      %s47 = scalar_select %p44, %s45, %s46
      %p50 = pneg %p44
      %p51 = scmp.eq.s32.totalorder %s23, 3
      %p52 = por %p50, %p51
      %p53 = scmp.ne.s32.totalorder %s45, %s48
      %p54 = scmp.eq.s32.totalorder %s23, 0
      %p55 = por %p53, %p54
      %p56 = scmp.ne.s32.totalorder %s45, %s48
      %p57 = scmp.eq.s32.totalorder %s28, 3
      %p58 = por %p56, %p57
      %p59 = scmp.ne.s32.totalorder %s48, %s49
      %p60 = scmp.eq.s32.totalorder %s28, 0
      %p61 = por %p59, %p60
      %p62 = scmp.ne.s32.totalorder %s48, %s49
      %p63 = scmp.eq.s32.totalorder %s29, 3
      %p64 = por %p62, %p63
      %p66 = scmp.ne.s32.totalorder %s49, %s65
      %p67 = scmp.eq.s32.totalorder %s29, 0
      %p68 = por %p66, %p67
      %s69 = ssub.s32 %s30, %s42
      %p70 = scmp.eq.s32.totalorder %s69, 0
      %s72 = sadd.s32 %s71, 1
      %s73 = scalar_select %p70, %s71, %s72
      %p76 = pneg %p70
      %p77 = scmp.eq.s32.totalorder %s23, 3
      %p78 = por %p76, %p77
      %p79 = scmp.ne.s32.totalorder %s71, %s74
      %p80 = scmp.eq.s32.totalorder %s23, 0
      %p81 = por %p79, %p80
      %p82 = scmp.ne.s32.totalorder %s71, %s74
      %p83 = scmp.eq.s32.totalorder %s28, 3
      %p84 = por %p82, %p83
      %p85 = scmp.ne.s32.totalorder %s74, %s75
      %p86 = scmp.eq.s32.totalorder %s28, 0
      %p87 = por %p85, %p86
      %p88 = scmp.ne.s32.totalorder %s74, %s75
      %p89 = scmp.eq.s32.totalorder %s29, 3
      %p90 = por %p88, %p89
      %p92 = scmp.ne.s32.totalorder %s75, %s91
      %p93 = scmp.eq.s32.totalorder %s29, 0
      %p94 = por %p92, %p93
      %s95 = ssub.s32 %s30, %s42
      %p96 = scmp.eq.s32.totalorder %s95, 0
      %s98 = sadd.s32 %s97, 1
      %s99 = scalar_select %p96, %s97, %s98
      %p102 = pneg %p96
      %p103 = scmp.eq.s32.totalorder %s23, 3
      %p104 = por %p102, %p103
      %p105 = scmp.ne.s32.totalorder %s97, %s100
      %p106 = scmp.eq.s32.totalorder %s23, 0
      %p107 = por %p105, %p106
      %p108 = scmp.ne.s32.totalorder %s97, %s100
      %p109 = scmp.eq.s32.totalorder %s28, 3
      %p110 = por %p108, %p109
      %p111 = scmp.ne.s32.totalorder %s100, %s101
      %p112 = scmp.eq.s32.totalorder %s28, 0
      %p113 = por %p111, %p112
      %p114 = scmp.ne.s32.totalorder %s100, %s101
      %p115 = scmp.eq.s32.totalorder %s29, 3
      %p116 = por %p114, %p115
      %p118 = scmp.ne.s32.totalorder %s101, %s117
      %p119 = scmp.eq.s32.totalorder %s29, 0
      %p120 = por %p118, %p119
      %s121 = ssub.s32 %s30, %s42
      %p122 = scmp.eq.s32.totalorder %s121, 0
      %s124 = sadd.s32 %s123, 1
      %s125 = scalar_select %p122, %s123, %s124
      %p128 = pneg %p122
      %p129 = scmp.eq.s32.totalorder %s23, 3
      %p130 = por %p128, %p129
      %p131 = scmp.ne.s32.totalorder %s123, %s126
      %p132 = scmp.eq.s32.totalorder %s23, 0
      %p133 = por %p131, %p132
      %p134 = scmp.ne.s32.totalorder %s123, %s126
      %p135 = scmp.eq.s32.totalorder %s28, 3
      %p136 = por %p134, %p135
      %p137 = scmp.ne.s32.totalorder %s126, %s127
      %p138 = scmp.eq.s32.totalorder %s28, 0
      %p139 = por %p137, %p138
      %p140 = scmp.ne.s32.totalorder %s126, %s127
      %p141 = scmp.eq.s32.totalorder %s29, 3
      %p142 = por %p140, %p141
      %p144 = scmp.ne.s32.totalorder %s127, %s143
      %p145 = scmp.eq.s32.totalorder %s29, 0
      %p146 = por %p144, %p145
      %s148 = sadd.s32 %s147, 1
      %p151 = scmp.eq.s32.totalorder %s23, 3
      %p152 = scmp.ne.s32.totalorder %s147, %s149
      %p153 = scmp.eq.s32.totalorder %s23, 0
      %p154 = por %p152, %p153
      %p155 = scmp.ne.s32.totalorder %s147, %s149
      %p156 = scmp.eq.s32.totalorder %s28, 3
      %p157 = por %p155, %p156
      %p158 = scmp.ne.s32.totalorder %s149, %s150
      %p159 = scmp.eq.s32.totalorder %s28, 0
      %p160 = por %p158, %p159
      %p161 = scmp.ne.s32.totalorder %s149, %s150
      %p162 = scmp.eq.s32.totalorder %s29, 3
      %p163 = por %p161, %p162
      %p165 = scmp.ne.s32.totalorder %s150, %s164
      %p166 = scmp.eq.s32.totalorder %s29, 0
      %p167 = por %p165, %p166
      %s169 = sadd.s32 %s168, 1
      %p172 = scmp.eq.s32.totalorder %s23, 3
      %p173 = scmp.ne.s32.totalorder %s168, %s170
      %p174 = scmp.eq.s32.totalorder %s23, 0
      %p175 = por %p173, %p174
      %p176 = scmp.ne.s32.totalorder %s168, %s170
      %p177 = scmp.eq.s32.totalorder %s28, 3
      %p178 = por %p176, %p177
      %p179 = scmp.ne.s32.totalorder %s170, %s171
      %p180 = scmp.eq.s32.totalorder %s28, 0
      %p181 = por %p179, %p180
      %p182 = scmp.ne.s32.totalorder %s170, %s171
      %p183 = scmp.eq.s32.totalorder %s29, 3
      %p184 = por %p182, %p183
      %p186 = scmp.ne.s32.totalorder %s171, %s185
      %p187 = scmp.eq.s32.totalorder %s29, 0
      %p188 = por %p186, %p187
      %s190 = sadd.s32 %s189, 1
      %p193 = scmp.eq.s32.totalorder %s23, 3
      %p194 = scmp.ne.s32.totalorder %s189, %s191
      %p195 = scmp.eq.s32.totalorder %s23, 0
      %p196 = por %p194, %p195
      %p197 = scmp.ne.s32.totalorder %s189, %s191
      %p198 = scmp.eq.s32.totalorder %s28, 3
      %p199 = por %p197, %p198
      %p200 = scmp.ne.s32.totalorder %s191, %s192
      %p201 = scmp.eq.s32.totalorder %s28, 0
      %p202 = por %p200, %p201
      %p203 = scmp.ne.s32.totalorder %s191, %s192
      %p204 = scmp.eq.s32.totalorder %s29, 3
      %p205 = por %p203, %p204
      %p207 = scmp.ne.s32.totalorder %s192, %s206
      %p208 = scmp.eq.s32.totalorder %s29, 0
      %p209 = por %p207, %p208
      %s211 = sadd.s32 %s210, 1
      %p214 = scmp.eq.s32.totalorder %s23, 3
      %p215 = scmp.ne.s32.totalorder %s210, %s212
      %p216 = scmp.eq.s32.totalorder %s23, 0
      %p217 = por %p215, %p216
      %p218 = scmp.ne.s32.totalorder %s210, %s212
      %p219 = scmp.eq.s32.totalorder %s28, 3
      %p220 = por %p218, %p219
      %p221 = scmp.ne.s32.totalorder %s212, %s213
      %p222 = scmp.eq.s32.totalorder %s28, 0
      %p223 = por %p221, %p222
      %p224 = scmp.ne.s32.totalorder %s212, %s213
      %p225 = scmp.eq.s32.totalorder %s29, 3
      %p226 = por %p224, %p225
      %p228 = scmp.ne.s32.totalorder %s213, %s227
      %p229 = scmp.eq.s32.totalorder %s29, 0
      %p230 = por %p228, %p229
      %s232 = sadd.s32 %s231, 1
      %p235 = scmp.eq.s32.totalorder %s23, 3
      %p236 = scmp.ne.s32.totalorder %s231, %s233
      %p237 = scmp.eq.s32.totalorder %s23, 0
      %p238 = por %p236, %p237
      %p239 = scmp.ne.s32.totalorder %s231, %s233
      %p240 = scmp.eq.s32.totalorder %s28, 3
      %p241 = por %p239, %p240
      %p242 = scmp.ne.s32.totalorder %s233, %s234
      %p243 = scmp.eq.s32.totalorder %s28, 0
      %p244 = por %p242, %p243
      %p245 = scmp.ne.s32.totalorder %s233, %s234
      %p246 = scmp.eq.s32.totalorder %s29, 3
      %p247 = por %p245, %p246
      %p249 = scmp.ne.s32.totalorder %s234, %s248
      %p250 = scmp.eq.s32.totalorder %s29, 0
      %p251 = por %p249, %p250
      %s253 = sadd.s32 %s252, 1
      %p256 = scmp.eq.s32.totalorder %s23, 3
      %p257 = scmp.ne.s32.totalorder %s252, %s254
      %p258 = scmp.eq.s32.totalorder %s23, 0
      %p259 = por %p257, %p258
      %p260 = scmp.ne.s32.totalorder %s252, %s254
      %p261 = scmp.eq.s32.totalorder %s28, 3
      %p262 = por %p260, %p261
      %p263 = scmp.ne.s32.totalorder %s254, %s255
      %p264 = scmp.eq.s32.totalorder %s28, 0
      %p265 = por %p263, %p264
      %p266 = scmp.ne.s32.totalorder %s254, %s255
      %p267 = scmp.eq.s32.totalorder %s29, 3
      %p268 = por %p266, %p267
      %p270 = scmp.ne.s32.totalorder %s255, %s269
      %p271 = scmp.eq.s32.totalorder %s29, 0
      %p272 = por %p270, %p271
      %s274 = sadd.s32 %s273, 1
      %p277 = scmp.eq.s32.totalorder %s23, 3
      %p278 = scmp.ne.s32.totalorder %s273, %s275
      %p279 = scmp.eq.s32.totalorder %s23, 0
      %p280 = por %p278, %p279
      %p281 = scmp.ne.s32.totalorder %s273, %s275
      %p282 = scmp.eq.s32.totalorder %s28, 3
      %p283 = por %p281, %p282
      %p284 = scmp.ne.s32.totalorder %s275, %s276
      %p285 = scmp.eq.s32.totalorder %s28, 0
      %p286 = por %p284, %p285
      %p287 = scmp.ne.s32.totalorder %s275, %s276
      %p288 = scmp.eq.s32.totalorder %s29, 3
      %p289 = por %p287, %p288
      %p291 = scmp.ne.s32.totalorder %s276, %s290
      %p292 = scmp.eq.s32.totalorder %s29, 0
      %p293 = por %p291, %p292
      %s295 = sadd.s32 %s294, 1
      %p298 = scmp.eq.s32.totalorder %s23, 3
      %p299 = scmp.ne.s32.totalorder %s294, %s296
      %p300 = scmp.eq.s32.totalorder %s23, 0
      %p301 = por %p299, %p300
      %p302 = scmp.ne.s32.totalorder %s294, %s296
      %p303 = scmp.eq.s32.totalorder %s28, 3
      %p304 = por %p302, %p303
      %p305 = scmp.ne.s32.totalorder %s296, %s297
      %p306 = scmp.eq.s32.totalorder %s28, 0
      %p307 = por %p305, %p306
      %p308 = scmp.ne.s32.totalorder %s296, %s297
      %p309 = scmp.eq.s32.totalorder %s29, 3
      %p310 = por %p308, %p309
      %p312 = scmp.ne.s32.totalorder %s297, %s311
      %p313 = scmp.eq.s32.totalorder %s29, 0
      %p314 = por %p312, %p313
      %s316 = sadd.s32 %s315, 1
      %p319 = scmp.eq.s32.totalorder %s23, 3
      %p320 = scmp.ne.s32.totalorder %s315, %s317
      %p321 = scmp.eq.s32.totalorder %s23, 0
      %p322 = por %p320, %p321
      %p323 = scmp.ne.s32.totalorder %s315, %s317
      %p324 = scmp.eq.s32.totalorder %s28, 3
      %p325 = por %p323, %p324
      %p326 = scmp.ne.s32.totalorder %s317, %s318
      %p327 = scmp.eq.s32.totalorder %s28, 0
      %p328 = por %p326, %p327
      %p329 = scmp.ne.s32.totalorder %s317, %s318
      %p330 = scmp.eq.s32.totalorder %s29, 3
      %p331 = por %p329, %p330
      %p333 = scmp.ne.s32.totalorder %s318, %s332
      %p334 = scmp.eq.s32.totalorder %s29, 0
      %p335 = por %p333, %p334
      %s337 = sadd.s32 %s336, 1
      %p340 = scmp.eq.s32.totalorder %s23, 3
      %p341 = scmp.ne.s32.totalorder %s336, %s338
      %p342 = scmp.eq.s32.totalorder %s23, 0
      %p343 = por %p341, %p342
      %p344 = scmp.ne.s32.totalorder %s336, %s338
      %p345 = scmp.eq.s32.totalorder %s28, 3
      %p346 = por %p344, %p345
      %p347 = scmp.ne.s32.totalorder %s338, %s339
      %p348 = scmp.eq.s32.totalorder %s28, 0
      %p349 = por %p347, %p348
      %p350 = scmp.ne.s32.totalorder %s338, %s339
      %p351 = scmp.eq.s32.totalorder %s29, 3
      %p352 = por %p350, %p351
      %p354 = scmp.ne.s32.totalorder %s339, %s353
      %p355 = scmp.eq.s32.totalorder %s29, 0
      %p356 = por %p354, %p355
      %s357 = ssub.s32 %s30, %s42
      %p358 = scmp.eq.s32.totalorder %s357, 0
      %s360 = sadd.s32 %s359, 1
      %s361 = scalar_select %p358, %s359, %s360
      %p364 = pneg %p358
      %p365 = scmp.eq.s32.totalorder %s23, 3
      %p366 = por %p364, %p365
      %p367 = scmp.ne.s32.totalorder %s359, %s362
      %p368 = scmp.eq.s32.totalorder %s23, 0
      %p369 = por %p367, %p368
      %p370 = scmp.ne.s32.totalorder %s359, %s362
      %p371 = scmp.eq.s32.totalorder %s28, 3
      %p372 = por %p370, %p371
      %p373 = scmp.ne.s32.totalorder %s362, %s363
      %p374 = scmp.eq.s32.totalorder %s28, 0
      %p375 = por %p373, %p374
      %p376 = scmp.ne.s32.totalorder %s362, %s363
      %p377 = scmp.eq.s32.totalorder %s29, 3
      %p378 = por %p376, %p377
      %p380 = scmp.ne.s32.totalorder %s363, %s379
      %p381 = scmp.eq.s32.totalorder %s29, 0
      %p382 = por %p380, %p381
      %p383 = scmp.le.s32.totalorder 1, %s23
      %p384 = scmp.lt.s32.totalorder %s23, 5
      %p385 = pnand %p383, %p384
      %p386 = pneg %p385
      // Predicated region
      $region9: #{tree_like_forward.1} parent=5 // pred_check
        _
      $region10: #{tree_like_forward.1} parent=5 // pred_check_branch
        %388 = sbr.rel (%p385) target = $region12
      $region11: #{tree_like_forward.1} parent=5 // pred_region
        %s389 = ssub.s32 %s23, 1
        // Predicated region
        $region13: #{tree_like_forward.1} parent=11 // pred_check
          %p390 = pneg %p160
        $region14: #{tree_like_forward.1} parent=11 // pred_check_branch
          %392 = sbr.rel (%p390) target = $region16
        $region15: #{tree_like_forward.1} parent=11 // pred_region
          _
        $region16: #{tree_like_forward.1} parent=11 // pred_fallthru
          _
        // Predicated region
        $region17: #{tree_like_forward.1} parent=11 // pred_check
          %p393 = pneg %p181
        $region18: #{tree_like_forward.1} parent=11 // pred_check_branch
          %395 = sbr.rel (%p393) target = $region20
        $region19: #{tree_like_forward.1} parent=11 // pred_region
          _
        $region20: #{tree_like_forward.1} parent=11 // pred_fallthru
          _
        // Predicated region
        $region21: #{tree_like_forward.1} parent=11 // pred_check
          %p396 = pneg %p202
        $region22: #{tree_like_forward.1} parent=11 // pred_check_branch
          %398 = sbr.rel (%p396) target = $region24
        $region23: #{tree_like_forward.1} parent=11 // pred_region
          _
        $region24: #{tree_like_forward.1} parent=11 // pred_fallthru
          _
        // Predicated region
        $region25: #{tree_like_forward.1} parent=11 // pred_check
          %p399 = pneg %p223
        $region26: #{tree_like_forward.1} parent=11 // pred_check_branch
          %401 = sbr.rel (%p399) target = $region28
        $region27: #{tree_like_forward.1} parent=11 // pred_region
          _
        $region28: #{tree_like_forward.1} parent=11 // pred_fallthru
          _
        // Predicated region
        $region29: #{tree_like_forward.1} parent=11 // pred_check
          %p402 = pneg %p244
        $region30: #{tree_like_forward.1} parent=11 // pred_check_branch
          %404 = sbr.rel (%p402) target = $region32
        $region31: #{tree_like_forward.1} parent=11 // pred_region
          %406 = vsyncadd [#allocation4], 0
          %s407 = sshll.u32 %s8, 4
          %s408 = int_to_ptr.hbm [resolvable:$true] %s407
          %s409 = sshll.u32 [#allocation3], 4
          %s410 = int_to_ptr.vmem [resolvable:$true] %s409
          %415 = dma.hbm_to_vmem [thread:$0]  %s408, 2048, %s410, [#allocation4], 128, 128, 8
        $region32: #{tree_like_forward.1} parent=11 // pred_fallthru
          _
        // Predicated region
        $region33: #{tree_like_forward.1} parent=11 // pred_check
          %p416 = pneg %p265
        $region34: #{tree_like_forward.1} parent=11 // pred_check_branch
          %418 = sbr.rel (%p416) target = $region36
        $region35: #{tree_like_forward.1} parent=11 // pred_region
          _
        $region36: #{tree_like_forward.1} parent=11 // pred_fallthru
          _
        // Predicated region
        $region37: #{tree_like_forward.1} parent=11 // pred_check
          %p419 = pneg %p286
        $region38: #{tree_like_forward.1} parent=11 // pred_check_branch
          %421 = sbr.rel (%p419) target = $region40
        $region39: #{tree_like_forward.1} parent=11 // pred_region
          %423 = vsyncadd [#allocation6], 0
          %s424 = sshll.u32 %s10, 4
          %s425 = int_to_ptr.hbm [resolvable:$true] %s424
          %s426 = sshll.u32 [#allocation5], 4
          %s427 = int_to_ptr.vmem [resolvable:$true] %s426
          %432 = dma.hbm_to_vmem [thread:$0]  %s425, 1024, %s427, [#allocation6], 64, 64, 4
        $region40: #{tree_like_forward.1} parent=11 // pred_fallthru
          _
        // Predicated region
        $region41: #{tree_like_forward.1} parent=11 // pred_check
          %p433 = pneg %p307
        $region42: #{tree_like_forward.1} parent=11 // pred_check_branch
          %435 = sbr.rel (%p433) target = $region44
        $region43: #{tree_like_forward.1} parent=11 // pred_region
          _
        $region44: #{tree_like_forward.1} parent=11 // pred_fallthru
          _
        // Predicated region
        $region45: #{tree_like_forward.1} parent=11 // pred_check
          %p436 = pneg %p328
        $region46: #{tree_like_forward.1} parent=11 // pred_check_branch
          %438 = sbr.rel (%p436) target = $region48
        $region47: #{tree_like_forward.1} parent=11 // pred_region
          %440 = vsyncadd [#allocation6], 0
          %s442 = sshll.u32 %s12, 4
          %s443 = int_to_ptr.hbm [resolvable:$true] %s442
          %s444 = sshll.u32 [#allocation7], 4
          %s445 = int_to_ptr.vmem [resolvable:$true] %s444
          %447 = dma.hbm_to_vmem [thread:$0]  %s443, 128, %s445, [#allocation6]
        $region48: #{tree_like_forward.1} parent=11 // pred_fallthru
          _
        // Predicated region
        $region49: #{tree_like_forward.1} parent=11 // pred_check
          %p448 = pneg %p349
        $region50: #{tree_like_forward.1} parent=11 // pred_check_branch
          %450 = sbr.rel (%p448) target = $region52
        $region51: #{tree_like_forward.1} parent=11 // pred_region
          %452 = vsyncadd [#allocation9], 0
          %s454 = sshll.u32 %s13, 4
          %s455 = int_to_ptr.hbm [resolvable:$true] %s454
          %s456 = sshll.u32 [#allocation8], 4
          %s457 = int_to_ptr.vmem [resolvable:$true] %s456
          %459 = dma.hbm_to_vmem [thread:$0]  %s455, 128, %s457, [#allocation9]
        $region52: #{tree_like_forward.1} parent=11 // pred_fallthru
          _
      $region12: #{tree_like_forward.1} parent=5 // pred_fallthru
        _
      %p460 = scmp.lt.s32.totalorder %s23, 4
      // Predicated region
      $region53: #{tree_like_forward.1} parent=5 // pred_check
        %p461 = pneg %p460
      $region54: #{tree_like_forward.1} parent=5 // pred_check_branch
        %463 = sbr.rel (%p461) target = $region56
      $region55: #{tree_like_forward.1} parent=5 // pred_region
        // Predicated region
        $region57: #{tree_like_forward.1} parent=55 // pred_check
          %p464 = pneg %p55
        $region58: #{tree_like_forward.1} parent=55 // pred_check_branch
          %466 = sbr.rel (%p464) target = $region60
        $region59: #{tree_like_forward.1} parent=55 // pred_region
          %s467 = smul.u32 2, %s30
          %p468 = scmp.lt.s32.totalorder %s467, 3
          %s469 = scalar_select %p468, %s467, 3
          %s470 = smul.addr %s469, 8
          %s471 = scalar_lea.vmem %s0, %s470
          %s472 = smul.u32 2, %s30
        $region60: #{tree_like_forward.1} parent=55 // pred_fallthru
          _
        // Predicated region
        $region61: #{tree_like_forward.1} parent=55 // pred_check
          %p473 = pneg %p81
        $region62: #{tree_like_forward.1} parent=55 // pred_check_branch
          %475 = sbr.rel (%p473) target = $region64
        $region63: #{tree_like_forward.1} parent=55 // pred_region
          %s476 = smul.u32 2, %s30
          %p477 = scmp.lt.s32.totalorder %s476, 3
          %s478 = scalar_select %p477, %s476, 3
          %s479 = smul.addr %s478, 8
          %s480 = scalar_lea.vmem %s1, %s479
          %s481 = smul.u32 2, %s30
        $region64: #{tree_like_forward.1} parent=55 // pred_fallthru
          _
        // Predicated region
        $region65: #{tree_like_forward.1} parent=55 // pred_check
          %p482 = pneg %p107
        $region66: #{tree_like_forward.1} parent=55 // pred_check_branch
          %484 = sbr.rel (%p482) target = $region68
        $region67: #{tree_like_forward.1} parent=55 // pred_region
          %s485 = smul.u32 2, %s30
          %p486 = scmp.lt.s32.totalorder %s485, 3
          %s487 = scalar_select %p486, %s485, 3
          %s488 = smul.addr %s487, 4
          %s489 = scalar_lea.vmem %s2, %s488
          %s490 = smul.u32 2, %s30
        $region68: #{tree_like_forward.1} parent=55 // pred_fallthru
          _
        // Predicated region
        $region69: #{tree_like_forward.1} parent=55 // pred_check
          %p491 = pneg %p133
        $region70: #{tree_like_forward.1} parent=55 // pred_check_branch
          %493 = sbr.rel (%p491) target = $region72
        $region71: #{tree_like_forward.1} parent=55 // pred_region
          %s494 = smul.u32 2, %s30
          %p495 = scmp.lt.s32.totalorder %s494, 3
          %s496 = scalar_select %p495, %s494, 3
          %s497 = smul.addr %s496, 4
          %s498 = scalar_lea.vmem %s3, %s497
          %s499 = smul.u32 2, %s30
        $region72: #{tree_like_forward.1} parent=55 // pred_fallthru
          _
      $region56: #{tree_like_forward.1} parent=5 // pred_fallthru
        _
      %p500 = scmp.le.s32.totalorder 1, %s23
      %p501 = scmp.lt.s32.totalorder %s23, 5
      %p502 = pnand %p500, %p501
      %p503 = pneg %p502
      // Predicated region
      $region73: #{tree_like_forward.1} parent=5 // pred_check
        _
      $region74: #{tree_like_forward.1} parent=5 // pred_check_branch
        %505 = sbr.rel (%p502) target = $region76
      $region75: #{tree_like_forward.1} parent=5 // pred_region
        %s506 = ssub.s32 %s23, 1
        // Predicated region
        $region77: #{tree_like_forward.1} parent=75 // pred_check
          %p507 = pneg %p244
        $region78: #{tree_like_forward.1} parent=75 // pred_check_branch
          %509 = sbr.rel (%p507) target = $region80
        $region79: #{tree_like_forward.1} parent=75 // pred_region
          %511 = dma.done [#allocation4], 2048
        $region80: #{tree_like_forward.1} parent=75 // pred_fallthru
          _
        // Predicated region
        $region81: #{tree_like_forward.1} parent=75 // pred_check
          %p512 = pneg %p286
        $region82: #{tree_like_forward.1} parent=75 // pred_check_branch
          %514 = sbr.rel (%p512) target = $region84
        $region83: #{tree_like_forward.1} parent=75 // pred_region
          %516 = dma.done [#allocation6], 1024
        $region84: #{tree_like_forward.1} parent=75 // pred_fallthru
          _
        // Predicated region
        $region85: #{tree_like_forward.1} parent=75 // pred_check
          %p517 = pneg %p328
        $region86: #{tree_like_forward.1} parent=75 // pred_check_branch
          %519 = sbr.rel (%p517) target = $region88
        $region87: #{tree_like_forward.1} parent=75 // pred_region
          %521 = dma.done [#allocation6], 128
        $region88: #{tree_like_forward.1} parent=75 // pred_fallthru
          _
        // Predicated region
        $region89: #{tree_like_forward.1} parent=75 // pred_check
          %p522 = pneg %p349
        $region90: #{tree_like_forward.1} parent=75 // pred_check_branch
          %524 = sbr.rel (%p522) target = $region92
        $region91: #{tree_like_forward.1} parent=75 // pred_region
          %526 = dma.done [#allocation9], 128
        $region92: #{tree_like_forward.1} parent=75 // pred_fallthru
          _
        %s527 = smul.u32 2, %s32
        %p528 = scmp.lt.s32.totalorder %s527, 3
        %s529 = scalar_select %p528, %s527, 3
        %s530 = smul.addr %s529, 8
        %s531 = scalar_lea.vmem %s0, %s530
        %p532 = pneg %p61
        %p533 = pneg %p58
        %s534 = smul.u32 2, %s32
        %p535 = scmp.lt.s32.totalorder %s534, 3
        %s536 = scalar_select %p535, %s534, 3
        %s537 = smul.addr %s536, 8
        %s538 = scalar_lea.vmem %s1, %s537
        %p539 = pneg %p87
        %p540 = pneg %p84
        %s541 = smul.u32 2, %s32
        %p542 = scmp.lt.s32.totalorder %s541, 3
        %s543 = scalar_select %p542, %s541, 3
        %s544 = smul.addr %s543, 4
        %s545 = scalar_lea.vmem %s2, %s544
        %p546 = pneg %p113
        %p547 = pneg %p110
        %s548 = smul.u32 2, %s32
        %p549 = scmp.lt.s32.totalorder %s548, 3
        %s550 = scalar_select %p549, %s548, 3
        %s551 = smul.addr %s550, 4
        %s552 = scalar_lea.vmem %s3, %s551
        %p553 = pneg %p139
        %p554 = pneg %p136
        %p555 = pneg %p160
        %p556 = pneg %p157
        %p557 = pneg %p181
        %p558 = pneg %p178
        %p559 = pneg %p202
        %p560 = pneg %p199
        %p561 = pneg %p223
        %p562 = pneg %p220
        %p563 = pneg %p244
        %p564 = pneg %p241
        %p565 = pneg %p265
        %p566 = pneg %p262
        %p567 = pneg %p286
        %p568 = pneg %p283
        %p569 = pneg %p307
        %p570 = pneg %p304
        %p571 = pneg %p328
        %p572 = pneg %p325
        %p573 = pneg %p349
        %p574 = pneg %p346
        %p575 = pneg %p375
        %p576 = pneg %p372
        %s577 = smul.u32 2, %s32
        %p578 = scmp.lt.s32.totalorder %s577, 3
        %s579 = scalar_select %p578, %s577, 3
        %s580 = smul.addr %s579, 8
        %s581 = scalar_lea.vmem %s14, %s580
        %s582 = smul.u32 2, %s32
        %p583 = scmp.lt.s32.totalorder %s582, 3
        %s584 = scalar_select %p583, %s582, 3
        %s585 = smul.addr %s584, 8
        %s586 = scalar_lea.vmem %s0, %s585
        %s587 = smul.u32 2, %s32
        %s588 = smul.u32 2, %s32
        %p589 = scmp.lt.s32.totalorder %s588, 3
        %s590 = scalar_select %p589, %s588, 3
        %s591 = smul.addr %s590, 8
        %s592 = scalar_lea.vmem %s1, %s591
        %s593 = smul.u32 2, %s32
        %s594 = smul.u32 2, %s32
        %p595 = scmp.lt.s32.totalorder %s594, 3
        %s596 = scalar_select %p595, %s594, 3
        %s597 = smul.addr %s596, 4
        %s598 = scalar_lea.vmem %s2, %s597
        %s599 = smul.u32 2, %s32
        %s600 = smul.u32 2, %s32
        %p601 = scmp.lt.s32.totalorder %s600, 3
        %s602 = scalar_select %p601, %s600, 3
        %s603 = smul.addr %s602, 4
        %s604 = scalar_lea.vmem %s3, %s603
        %s605 = smul.u32 2, %s32
        %s606 = smul.u32 2, %s32
        %p607 = scmp.lt.s32.totalorder %s606, 3
        %s608 = scalar_select %p607, %s606, 3
        %s609 = smul.addr %s608, 8
        %s610 = scalar_lea.vmem %s14, %s609
        %s611 = smul.u32 2, %s32
        %p612 = scmp.eq.s32.totalorder %s33, 1
        // Predicated region
        $region93: #{tree_like_forward.1} parent=75 // pred_check
          %p613 = pneg %p612
        $region94: #{tree_like_forward.1} parent=75 // pred_check_branch
          %615 = sbr.rel (%p613) target = $region96
        $region95: #{tree_like_forward.1} parent=75 // pred_region
          %v616 = vld [vmem:[#allocation2] sm:$0xf]
          %v617 = vld [vmem:[#allocation2 + $0x4] sm:$0xf]
          %v618 = vld [vmem:[%s586] sm:$0xff]
          %v619 = vld [vmem:[%s586 + $0x8] sm:$0xff]
          %vm620 = vcmp.ne.f32.partialorder %v618, 0.0
          %vm621 = vcmp.ne.f32.partialorder %v619, 0.0
          %v622 = vld [vmem:[%s598] sm:$0xf]
          %v623 = vld [vmem:[%s598 + $0x4] sm:$0xf]
          %v624 = vsel %vm620, 1, 0
          %v625 = vsel %vm621, 1, 0
          %626 = vset.pattern.permute.xlu0 0
          %627 = vperm.xlu0 %626, %v624
          %v628 = vpop.permute.xlu0 %627
          %629 = vset.pattern.permute.xlu0 0
          %630 = vperm.xlu0 %629, %v625
          %v631 = vpop.permute.xlu0 %630
          %vm632 = vcmp.eq.s32.totalorder %v628, 1
          %vm633 = vcmp.eq.s32.totalorder %v631, 1
          %vm634 = vmpackc.low %vm632, %vm632
          %vm635 = vmpackc.low %vm633, %vm633
          %v636 = vsel %vm634, %v616, %v622
          %v637 = vsel %vm635, %v617, %v623
          %v638 = vld [vmem:[%s604] sm:$0xf]
          %v639 = vld [vmem:[%s604 + $0x4] sm:$0xf]
          %v640 = vsel %vm634, %v616, %v638
          %v641 = vsel %vm635, %v617, %v639
        $region96: #{tree_like_forward.1} parent=75 // pred_fallthru
          %v642 = vphi 0, %v636
          %v643 = vphi 0, %v637
          %v644 = vphi 0, %v640
          %v645 = vphi 0, %v641
        %p646 = pneg %p612
        // Predicated region
        $region97: #{tree_like_forward.1} parent=75 // pred_check
          _
        $region98: #{tree_like_forward.1} parent=75 // pred_check_branch
          %648 = sbr.rel (%p612) target = $region100
        $region99: #{tree_like_forward.1} parent=75 // pred_region
          %v649 = vld [vmem:[%s598] sm:$0xf]
          %v650 = vld [vmem:[%s598 + $0x4] sm:$0xf]
          %v651 = vld [vmem:[%s604] sm:$0xf]
          %v652 = vld [vmem:[%s604 + $0x4] sm:$0xf]
        $region100: #{tree_like_forward.1} parent=75 // pred_fallthru
          %v653 = vphi %v642, %v649
          %v654 = vphi %v643, %v650
          %v655 = vphi %v644, %v651
          %v656 = vphi %v645, %v652
        %v657 = vld [vmem:[#allocation7] sm:$0x1f]
        %v658 = vld [vmem:[#allocation8] sm:$0x1f]
        %v659 = vld [vmem:[%s4] sm:$0xff]
        %v660 = vld [vmem:[%s4 + $0x8] sm:$0xff]
        %v661 = vld [vmem:[%s4 + $0x10] sm:$0xff]
        %v662 = vld [vmem:[%s4 + $0x18] sm:$0xff]
        %v663 = vld [vmem:[%s4 + $0x20] sm:$0xff]
        %v664 = vld [vmem:[%s4 + $0x28] sm:$0xff]
        %v665 = vld [vmem:[%s4 + $0x30] sm:$0xff]
        %v666 = vld [vmem:[%s4 + $0x38] sm:$0xff]
        %v667 = vld [vmem:[%s4 + $0x40] sm:$0xff]
        %v668 = vld [vmem:[%s4 + $0x48] sm:$0xff]
        %v669 = vld [vmem:[%s4 + $0x50] sm:$0xff]
        %v670 = vld [vmem:[%s4 + $0x58] sm:$0xff]
        %v671 = vld [vmem:[%s4 + $0x60] sm:$0xff]
        %v672 = vld [vmem:[%s4 + $0x68] sm:$0xff]
        %v673 = vld [vmem:[%s4 + $0x70] sm:$0xff]
        %v674 = vld [vmem:[%s4 + $0x78] sm:$0xff]
        %v675 = vld [vmem:[%s5] sm:$0x3]
        %v677 = vperm.slane %v675, 0
        %v678 = vperm.slane %v675, 1
        %v683 = vunpack.c.l.b16 %v653
        %v684 = vunpack.c.l.b16 %v654
        %v685 = vpack.c.b16 %v684, %v683
        %v703 = vunpack.c.l.b16 %v659
        %v704 = vunpack.c.h.b16 %v659
        %v705 = vunpack.c.l.b16 %v660
        %v706 = vunpack.c.h.b16 %v660
        %v707 = vunpack.c.l.b16 %v661
        %v708 = vunpack.c.h.b16 %v661
        %v709 = vunpack.c.l.b16 %v662
        %v710 = vunpack.c.h.b16 %v662
        %v711 = vunpack.c.l.b16 %v663
        %v712 = vunpack.c.h.b16 %v663
        %v713 = vunpack.c.l.b16 %v664
        %v714 = vunpack.c.h.b16 %v664
        %v715 = vunpack.c.l.b16 %v665
        %v716 = vunpack.c.h.b16 %v665
        %v717 = vunpack.c.l.b16 %v666
        %v718 = vunpack.c.h.b16 %v666
        %v719 = vunpack.c.l.b16 %v667
        %v720 = vunpack.c.h.b16 %v667
        %v721 = vunpack.c.l.b16 %v668
        %v722 = vunpack.c.h.b16 %v668
        %v723 = vunpack.c.l.b16 %v669
        %v724 = vunpack.c.h.b16 %v669
        %v725 = vunpack.c.l.b16 %v670
        %v726 = vunpack.c.h.b16 %v670
        %v727 = vunpack.c.l.b16 %v671
        %v728 = vunpack.c.h.b16 %v671
        %v729 = vunpack.c.l.b16 %v672
        %v730 = vunpack.c.h.b16 %v672
        %v731 = vunpack.c.l.b16 %v673
        %v732 = vunpack.c.h.b16 %v673
        %v733 = vunpack.c.l.b16 %v674
        %v734 = vunpack.c.h.b16 %v674
        %v735 = vpack.c.b16 %v705, %v703
        %v736 = vpack.c.b16 %v706, %v704
        %v737 = vpack.c.b16 %v709, %v707
        %v738 = vpack.c.b16 %v710, %v708
        %v739 = vpack.c.b16 %v713, %v711
        %v740 = vpack.c.b16 %v714, %v712
        %v741 = vpack.c.b16 %v717, %v715
        %v742 = vpack.c.b16 %v718, %v716
        %v743 = vpack.c.b16 %v721, %v719
        %v744 = vpack.c.b16 %v722, %v720
        %v745 = vpack.c.b16 %v725, %v723
        %v746 = vpack.c.b16 %v726, %v724
        %v747 = vpack.c.b16 %v729, %v727
        %v748 = vpack.c.b16 %v730, %v728
        %v749 = vpack.c.b16 %v733, %v731
        %v750 = vpack.c.b16 %v734, %v732
        %767 = vmatpush.bf16.msra.mxu0 %v749
        %768 = vmatpush.bf16.msra.mxu0 %v747
        %769 = vmatpush.bf16.msra.mxu0 %v745
        %770 = vmatpush.bf16.msra.mxu0 %v743
        %771 = vmatpush.bf16.msra.mxu0 %v741
        %772 = vmatpush.bf16.msra.mxu0 %v739
        %773 = vmatpush.bf16.msra.mxu0 %v737
        %774 = vmatpush.bf16.msra.mxu0 %v735
        %775 = vmatmul.bf16.gmra.mxu0 %v685
        %v776 = vpop.f32.mrf.mxu0
        %v777 = vadd.f32 %v677, %v776
        %v778 = vpop.f32.mrf.mxu0
        %v779 = vadd.f32 %v677, %v778
        %780 = vdwg.mxu0
        %781 = vmatpush.bf16.msra.mxu0 %v750
        %782 = vmatpush.bf16.msra.mxu0 %v748
        %783 = vmatpush.bf16.msra.mxu0 %v746
        %784 = vmatpush.bf16.msra.mxu0 %v744
        %785 = vmatpush.bf16.msra.mxu0 %v742
        %786 = vmatpush.bf16.msra.mxu0 %v740
        %787 = vmatpush.bf16.msra.mxu0 %v738
        %788 = vmatpush.bf16.msra.mxu0 %v736
        %789 = vmatmul.bf16.gmra.mxu0 %v685
        %v790 = vpop.f32.mrf.mxu0
        %v791 = vadd.f32 %v678, %v790
        %v792 = vpop.f32.mrf.mxu0
        %v793 = vadd.f32 %v678, %v792
        %794 = vdwg.mxu0
        %v795 = vld [vmem:[%s6] sm:$0xff]
        %v796 = vld [vmem:[%s6 + $0x8] sm:$0xff]
        %v797 = vld [vmem:[%s6 + $0x10] sm:$0xff]
        %v798 = vld [vmem:[%s6 + $0x18] sm:$0xff]
        %v799 = vld [vmem:[%s6 + $0x20] sm:$0xff]
        %v800 = vld [vmem:[%s6 + $0x28] sm:$0xff]
        %v801 = vld [vmem:[%s6 + $0x30] sm:$0xff]
        %v802 = vld [vmem:[%s6 + $0x38] sm:$0xff]
        %v803 = vld [vmem:[%s6 + $0x40] sm:$0xff]
        %v804 = vld [vmem:[%s6 + $0x48] sm:$0xff]
        %v805 = vld [vmem:[%s6 + $0x50] sm:$0xff]
        %v806 = vld [vmem:[%s6 + $0x58] sm:$0xff]
        %v807 = vld [vmem:[%s6 + $0x60] sm:$0xff]
        %v808 = vld [vmem:[%s6 + $0x68] sm:$0xff]
        %v809 = vld [vmem:[%s6 + $0x70] sm:$0xff]
        %v810 = vld [vmem:[%s6 + $0x78] sm:$0xff]
        %v811 = vld [vmem:[%s7] sm:$0x3]
        %v813 = vperm.slane %v811, 0
        %v814 = vperm.slane %v811, 1
        %v819 = vunpack.c.l.b16 %v655
        %v820 = vunpack.c.l.b16 %v656
        %v821 = vpack.c.b16 %v820, %v819
        %v839 = vunpack.c.l.b16 %v795
        %v840 = vunpack.c.h.b16 %v795
        %v841 = vunpack.c.l.b16 %v796
        %v842 = vunpack.c.h.b16 %v796
        %v843 = vunpack.c.l.b16 %v797
        %v844 = vunpack.c.h.b16 %v797
        %v845 = vunpack.c.l.b16 %v798
        %v846 = vunpack.c.h.b16 %v798
        %v847 = vunpack.c.l.b16 %v799
        %v848 = vunpack.c.h.b16 %v799
        %v849 = vunpack.c.l.b16 %v800
        %v850 = vunpack.c.h.b16 %v800
        %v851 = vunpack.c.l.b16 %v801
        %v852 = vunpack.c.h.b16 %v801
        %v853 = vunpack.c.l.b16 %v802
        %v854 = vunpack.c.h.b16 %v802
        %v855 = vunpack.c.l.b16 %v803
        %v856 = vunpack.c.h.b16 %v803
        %v857 = vunpack.c.l.b16 %v804
        %v858 = vunpack.c.h.b16 %v804
        %v859 = vunpack.c.l.b16 %v805
        %v860 = vunpack.c.h.b16 %v805
        %v861 = vunpack.c.l.b16 %v806
        %v862 = vunpack.c.h.b16 %v806
        %v863 = vunpack.c.l.b16 %v807
        %v864 = vunpack.c.h.b16 %v807
        %v865 = vunpack.c.l.b16 %v808
        %v866 = vunpack.c.h.b16 %v808
        %v867 = vunpack.c.l.b16 %v809
        %v868 = vunpack.c.h.b16 %v809
        %v869 = vunpack.c.l.b16 %v810
        %v870 = vunpack.c.h.b16 %v810
        %v871 = vpack.c.b16 %v841, %v839
        %v872 = vpack.c.b16 %v842, %v840
        %v873 = vpack.c.b16 %v845, %v843
        %v874 = vpack.c.b16 %v846, %v844
        %v875 = vpack.c.b16 %v849, %v847
        %v876 = vpack.c.b16 %v850, %v848
        %v877 = vpack.c.b16 %v853, %v851
        %v878 = vpack.c.b16 %v854, %v852
        %v879 = vpack.c.b16 %v857, %v855
        %v880 = vpack.c.b16 %v858, %v856
        %v881 = vpack.c.b16 %v861, %v859
        %v882 = vpack.c.b16 %v862, %v860
        %v883 = vpack.c.b16 %v865, %v863
        %v884 = vpack.c.b16 %v866, %v864
        %v885 = vpack.c.b16 %v869, %v867
        %v886 = vpack.c.b16 %v870, %v868
        %903 = vmatpush.bf16.msra.mxu0 %v885
        %904 = vmatpush.bf16.msra.mxu0 %v883
        %905 = vmatpush.bf16.msra.mxu0 %v881
        %906 = vmatpush.bf16.msra.mxu0 %v879
        %907 = vmatpush.bf16.msra.mxu0 %v877
        %908 = vmatpush.bf16.msra.mxu0 %v875
        %909 = vmatpush.bf16.msra.mxu0 %v873
        %910 = vmatpush.bf16.msra.mxu0 %v871
        %911 = vmatmul.bf16.gmra.mxu0 %v821
        %v912 = vpop.f32.mrf.mxu0
        %v913 = vadd.f32 %v813, %v912
        %v914 = vpop.f32.mrf.mxu0
        %v915 = vadd.f32 %v813, %v914
        %916 = vdwg.mxu0
        %917 = vmatpush.bf16.msra.mxu0 %v886
        %918 = vmatpush.bf16.msra.mxu0 %v884
        %919 = vmatpush.bf16.msra.mxu0 %v882
        %920 = vmatpush.bf16.msra.mxu0 %v880
        %921 = vmatpush.bf16.msra.mxu0 %v878
        %922 = vmatpush.bf16.msra.mxu0 %v876
        %923 = vmatpush.bf16.msra.mxu0 %v874
        %924 = vmatpush.bf16.msra.mxu0 %v872
        %925 = vmatmul.bf16.gmra.mxu0 %v821
        %v926 = vpop.f32.mrf.mxu0
        %v927 = vadd.f32 %v814, %v926
        %v928 = vpop.f32.mrf.mxu0
        %v929 = vadd.f32 %v814, %v928
        %930 = vdwg.mxu0
        %v931 = vmul.f32 %v913, %v777
        %v932 = vmul.f32 %v915, %v779
        %v933 = vpack.c.bf16 %v932, %v931
        %v934 = vld [vmem:[#allocation3] sm:$0xff]
        %v935 = vld [vmem:[#allocation3 + $0x8] sm:$0xff]
        %v936 = vld [vmem:[#allocation3 + $0x10] sm:$0xff]
        %v937 = vld [vmem:[#allocation3 + $0x18] sm:$0xff]
        %v938 = vld [vmem:[#allocation3 + $0x20] sm:$0xff]
        %v939 = vld [vmem:[#allocation3 + $0x28] sm:$0xff]
        %v940 = vld [vmem:[#allocation3 + $0x30] sm:$0xff]
        %v941 = vld [vmem:[#allocation3 + $0x38] sm:$0xff]
        %v942 = vld [vmem:[#allocation3 + $0x40] sm:$0xff]
        %v943 = vld [vmem:[#allocation3 + $0x48] sm:$0xff]
        %v944 = vld [vmem:[#allocation3 + $0x50] sm:$0xff]
        %v945 = vld [vmem:[#allocation3 + $0x58] sm:$0xff]
        %v946 = vld [vmem:[#allocation3 + $0x60] sm:$0xff]
        %v947 = vld [vmem:[#allocation3 + $0x68] sm:$0xff]
        %v948 = vld [vmem:[#allocation3 + $0x70] sm:$0xff]
        %v949 = vld [vmem:[#allocation3 + $0x78] sm:$0xff]
        %v950 = vld [vmem:[%s9] sm:$0x3]
        %v952 = vperm.slane %v950, 0
        %v953 = vperm.slane %v950, 1
        %v972 = vunpack.c.l.b16 %v934
        %v973 = vunpack.c.h.b16 %v934
        %v974 = vunpack.c.l.b16 %v935
        %v975 = vunpack.c.h.b16 %v935
        %v976 = vunpack.c.l.b16 %v936
        %v977 = vunpack.c.h.b16 %v936
        %v978 = vunpack.c.l.b16 %v937
        %v979 = vunpack.c.h.b16 %v937
        %v980 = vunpack.c.l.b16 %v938
        %v981 = vunpack.c.h.b16 %v938
        %v982 = vunpack.c.l.b16 %v939
        %v983 = vunpack.c.h.b16 %v939
        %v984 = vunpack.c.l.b16 %v940
        %v985 = vunpack.c.h.b16 %v940
        %v986 = vunpack.c.l.b16 %v941
        %v987 = vunpack.c.h.b16 %v941
        %v988 = vunpack.c.l.b16 %v942
        %v989 = vunpack.c.h.b16 %v942
        %v990 = vunpack.c.l.b16 %v943
        %v991 = vunpack.c.h.b16 %v943
        %v992 = vunpack.c.l.b16 %v944
        %v993 = vunpack.c.h.b16 %v944
        %v994 = vunpack.c.l.b16 %v945
        %v995 = vunpack.c.h.b16 %v945
        %v996 = vunpack.c.l.b16 %v946
        %v997 = vunpack.c.h.b16 %v946
        %v998 = vunpack.c.l.b16 %v947
        %v999 = vunpack.c.h.b16 %v947
        %v1000 = vunpack.c.l.b16 %v948
        %v1001 = vunpack.c.h.b16 %v948
        %v1002 = vunpack.c.l.b16 %v949
        %v1003 = vunpack.c.h.b16 %v949
        %v1004 = vpack.c.b16 %v974, %v972
        %v1005 = vpack.c.b16 %v975, %v973
        %v1006 = vpack.c.b16 %v978, %v976
        %v1007 = vpack.c.b16 %v979, %v977
        %v1008 = vpack.c.b16 %v982, %v980
        %v1009 = vpack.c.b16 %v983, %v981
        %v1010 = vpack.c.b16 %v986, %v984
        %v1011 = vpack.c.b16 %v987, %v985
        %v1012 = vpack.c.b16 %v990, %v988
        %v1013 = vpack.c.b16 %v991, %v989
        %v1014 = vpack.c.b16 %v994, %v992
        %v1015 = vpack.c.b16 %v995, %v993
        %v1016 = vpack.c.b16 %v998, %v996
        %v1017 = vpack.c.b16 %v999, %v997
        %v1018 = vpack.c.b16 %v1002, %v1000
        %v1019 = vpack.c.b16 %v1003, %v1001
        %1036 = vmatpush.bf16.msra.mxu0 %v1018
        %1037 = vmatpush.bf16.msra.mxu0 %v1016
        %1038 = vmatpush.bf16.msra.mxu0 %v1014
        %1039 = vmatpush.bf16.msra.mxu0 %v1012
        %1040 = vmatpush.bf16.msra.mxu0 %v1010
        %1041 = vmatpush.bf16.msra.mxu0 %v1008
        %1042 = vmatpush.bf16.msra.mxu0 %v1006
        %1043 = vmatpush.bf16.msra.mxu0 %v1004
        %1044 = vmatmul.bf16.gmra.mxu0 %v933
        %v1045 = vpop.f32.mrf.mxu0
        %v1046 = vadd.f32 %v952, %v1045
        %v1047 = vpop.f32.mrf.mxu0
        %v1048 = vadd.f32 %v952, %v1047
        %1049 = vdwg.mxu0
        %1050 = vmatpush.bf16.msra.mxu0 %v1019
        %1051 = vmatpush.bf16.msra.mxu0 %v1017
        %1052 = vmatpush.bf16.msra.mxu0 %v1015
        %1053 = vmatpush.bf16.msra.mxu0 %v1013
        %1054 = vmatpush.bf16.msra.mxu0 %v1011
        %1055 = vmatpush.bf16.msra.mxu0 %v1009
        %1056 = vmatpush.bf16.msra.mxu0 %v1007
        %1057 = vmatpush.bf16.msra.mxu0 %v1005
        %1058 = vmatmul.bf16.gmra.mxu0 %v933
        %v1059 = vpop.f32.mrf.mxu0
        %v1060 = vadd.f32 %v953, %v1059
        %v1061 = vpop.f32.mrf.mxu0
        %v1062 = vadd.f32 %v953, %v1061
        %1063 = vdwg.mxu0
        %1064 = vadd.xlane.f32.xlu0 %v1046
        %v1065 = vpop.xlane.xlu0 %1064
        %1066 = vadd.xlane.f32.xlu0 %v1048
        %v1067 = vpop.xlane.xlu0 %1066
        %v1068 = vmul.f32 %v1046, %v1046
        %v1069 = vmul.f32 %v1048, %v1048
        %1070 = vadd.xlane.f32.xlu0 %v1068
        %v1071 = vpop.xlane.xlu0 %1070
        %1072 = vadd.xlane.f32.xlu0 %v1069
        %v1073 = vpop.xlane.xlu0 %1072
        %v1074 = vmul.f32 %v1065, 0.015625
        %v1075 = vmul.f32 %v1067, 0.015625
        %v1076 = vmul.f32 %v1071, 0.015625
        %v1077 = vmul.f32 %v1073, 0.015625
        %v1078 = vmul.f32 %v1074, %v1074
        %v1079 = vmul.f32 %v1075, %v1075
        %v1080 = vsub.f32 %v1076, %v1078
        %v1081 = vsub.f32 %v1077, %v1079
        %v1082 = vmax.f32 %v1080, 0.0
        %v1083 = vmax.f32 %v1081, 0.0
        %v1084 = vsub.f32 %v1046, %v1074
        %v1085 = vsub.f32 %v1048, %v1075
        %v1086 = vadd.f32 %v1082, 1e-05
        %v1087 = vadd.f32 %v1083, 1e-05
        %v1088 = vrsqrt.pop %v1086
        %v1089 = vmul.f32 %v1088, %v1086
        %v1090 = vmul.f32 %v1089, %v1088
        %v1091 = vmul.f32 0.5, %v1090
        %v1092 = vsub.f32 1.5, %v1091
        %v1093 = vmul.f32 %v1088, %v1092
        %vm1094 = vweird.f32 %v1086
        %vm1095 = vweird.f32 %v1088
        %vm1096 = vmor %vm1094, %vm1095
        %v1097 = vsel %vm1096, %v1088, %v1093
        %v1098 = vrsqrt.pop %v1087
        %v1099 = vmul.f32 %v1098, %v1087
        %v1100 = vmul.f32 %v1099, %v1098
        %v1101 = vmul.f32 0.5, %v1100
        %v1102 = vsub.f32 1.5, %v1101
        %v1103 = vmul.f32 %v1098, %v1102
        %vm1104 = vweird.f32 %v1087
        %vm1105 = vweird.f32 %v1098
        %vm1106 = vmor %vm1104, %vm1105
        %v1107 = vsel %vm1106, %v1098, %v1103
        %v1108 = vmul.f32 %v1084, %v1097
        %v1109 = vmul.f32 %v1085, %v1107
        %v1110 = vperm.slane %v657, 0
        %v1111 = vmul.f32 %v1108, %v1110
        %v1112 = vmul.f32 %v1109, %v1110
        %v1113 = vperm.slane %v658, 0
        %v1114 = vadd.f32 %v1111, %v1113
        %v1115 = vadd.f32 %v1112, %v1113
        %v1116 = vxor.u32 %v1114, 2147483648
        %v1117 = vxor.u32 %v1115, 2147483648
        %v1118 = vmul.f32 %v1116, 1.442695
        %v1119 = vpow.pop %v1118
        %v1120 = vmul.f32 %v1117, 1.442695
        %v1121 = vpow.pop %v1120
        %v1122 = vadd.f32 %v1119, 1.0
        %v1123 = vadd.f32 %v1121, 1.0
        %v1124 = vrcp.pop %v1122
        %v1125 = vmul.f32 %v1122, %v1124
        %v1126 = vsub.f32 1.0, %v1125
        %v1127 = vmul.f32 %v1124, %v1126
        %v1128 = vadd.f32 %v1124, %v1127
        %vm1129 = vweird.f32 %v1122
        %vm1130 = vweird.f32 %v1124
        %vm1131 = vmor %vm1129, %vm1130
        %v1132 = vsel %vm1131, %v1124, %v1128
        %v1133 = vand.u32 2147483647, %v1122
        %vm1134 = vcmp.eq.f32.partialorder %v1133, 8.507059e+37
        %v1135 = vand.u32 %v1122, 2147483648
        %v1136 = vor.u32 1.1754944e-38, %v1135
        %v1137 = vsel %vm1134, %v1136, %v1132
        %v1138 = vmul.f32 1.0, %v1137
        %v1139 = vrcp.pop %v1123
        %v1140 = vmul.f32 %v1123, %v1139
        %v1141 = vsub.f32 1.0, %v1140
        %v1142 = vmul.f32 %v1139, %v1141
        %v1143 = vadd.f32 %v1139, %v1142
        %vm1144 = vweird.f32 %v1123
        %vm1145 = vweird.f32 %v1139
        %vm1146 = vmor %vm1144, %vm1145
        %v1147 = vsel %vm1146, %v1139, %v1143
        %v1148 = vand.u32 2147483647, %v1123
        %vm1149 = vcmp.eq.f32.partialorder %v1148, 8.507059e+37
        %v1150 = vand.u32 %v1123, 2147483648
        %v1151 = vor.u32 1.1754944e-38, %v1150
        %v1152 = vsel %vm1149, %v1151, %v1147
        %v1153 = vmul.f32 1.0, %v1152
        %1154 = vadd.xlane.f32.xlu0 %v1060
        %v1155 = vpop.xlane.xlu0 %1154
        %1156 = vadd.xlane.f32.xlu0 %v1062
        %v1157 = vpop.xlane.xlu0 %1156
        %v1158 = vmul.f32 %v1060, %v1060
        %v1159 = vmul.f32 %v1062, %v1062
        %1160 = vadd.xlane.f32.xlu0 %v1158
        %v1161 = vpop.xlane.xlu0 %1160
        %1162 = vadd.xlane.f32.xlu0 %v1159
        %v1163 = vpop.xlane.xlu0 %1162
        %v1164 = vmul.f32 %v1155, 0.015625
        %v1165 = vmul.f32 %v1157, 0.015625
        %v1166 = vmul.f32 %v1161, 0.015625
        %v1167 = vmul.f32 %v1163, 0.015625
        %v1168 = vmul.f32 %v1164, %v1164
        %v1169 = vmul.f32 %v1165, %v1165
        %v1170 = vsub.f32 %v1166, %v1168
        %v1171 = vsub.f32 %v1167, %v1169
        %v1172 = vmax.f32 %v1170, 0.0
        %v1173 = vmax.f32 %v1171, 0.0
        %v1174 = vsub.f32 %v1060, %v1164
        %v1175 = vsub.f32 %v1062, %v1165
        %v1176 = vadd.f32 %v1172, 1e-05
        %v1177 = vadd.f32 %v1173, 1e-05
        %v1178 = vrsqrt.pop %v1176
        %v1179 = vmul.f32 %v1178, %v1176
        %v1180 = vmul.f32 %v1179, %v1178
        %v1181 = vmul.f32 0.5, %v1180
        %v1182 = vsub.f32 1.5, %v1181
        %v1183 = vmul.f32 %v1178, %v1182
        %vm1184 = vweird.f32 %v1176
        %vm1185 = vweird.f32 %v1178
        %vm1186 = vmor %vm1184, %vm1185
        %v1187 = vsel %vm1186, %v1178, %v1183
        %v1188 = vrsqrt.pop %v1177
        %v1189 = vmul.f32 %v1188, %v1177
        %v1190 = vmul.f32 %v1189, %v1188
        %v1191 = vmul.f32 0.5, %v1190
        %v1192 = vsub.f32 1.5, %v1191
        %v1193 = vmul.f32 %v1188, %v1192
        %vm1194 = vweird.f32 %v1177
        %vm1195 = vweird.f32 %v1188
        %vm1196 = vmor %vm1194, %vm1195
        %v1197 = vsel %vm1196, %v1188, %v1193
        %v1198 = vmul.f32 %v1174, %v1187
        %v1199 = vmul.f32 %v1175, %v1197
        %v1200 = vperm.slane %v657, 1
        %v1201 = vmul.f32 %v1198, %v1200
        %v1202 = vmul.f32 %v1199, %v1200
        %v1203 = vperm.slane %v658, 1
        %v1204 = vadd.f32 %v1201, %v1203
        %v1205 = vadd.f32 %v1202, %v1203
        %v1206 = vxor.u32 %v1204, 2147483648
        %v1207 = vxor.u32 %v1205, 2147483648
        %v1208 = vmul.f32 %v1206, 1.442695
        %v1209 = vpow.pop %v1208
        %v1210 = vmul.f32 %v1207, 1.442695
        %v1211 = vpow.pop %v1210
        %v1212 = vadd.f32 %v1209, 1.0
        %v1213 = vadd.f32 %v1211, 1.0
        %v1214 = vrcp.pop %v1212
        %v1215 = vmul.f32 %v1212, %v1214
        %v1216 = vsub.f32 1.0, %v1215
        %v1217 = vmul.f32 %v1214, %v1216
        %v1218 = vadd.f32 %v1214, %v1217
        %vm1219 = vweird.f32 %v1212
        %vm1220 = vweird.f32 %v1214
        %vm1221 = vmor %vm1219, %vm1220
        %v1222 = vsel %vm1221, %v1214, %v1218
        %v1223 = vand.u32 2147483647, %v1212
        %vm1224 = vcmp.eq.f32.partialorder %v1223, 8.507059e+37
        %v1225 = vand.u32 %v1212, 2147483648
        %v1226 = vor.u32 1.1754944e-38, %v1225
        %v1227 = vsel %vm1224, %v1226, %v1222
        %v1228 = vmul.f32 1.0, %v1227
        %v1229 = vrcp.pop %v1213
        %v1230 = vmul.f32 %v1213, %v1229
        %v1231 = vsub.f32 1.0, %v1230
        %v1232 = vmul.f32 %v1229, %v1231
        %v1233 = vadd.f32 %v1229, %v1232
        %vm1234 = vweird.f32 %v1213
        %vm1235 = vweird.f32 %v1229
        %vm1236 = vmor %vm1234, %vm1235
        %v1237 = vsel %vm1236, %v1229, %v1233
        %v1238 = vand.u32 2147483647, %v1213
        %vm1239 = vcmp.eq.f32.partialorder %v1238, 8.507059e+37
        %v1240 = vand.u32 %v1213, 2147483648
        %v1241 = vor.u32 1.1754944e-38, %v1240
        %v1242 = vsel %vm1239, %v1241, %v1237
        %v1243 = vmul.f32 1.0, %v1242
        %1244 = vadd.xlane.f32.xlu0 %v791
        %v1245 = vpop.xlane.xlu0 %1244
        %1246 = vadd.xlane.f32.xlu0 %v793
        %v1247 = vpop.xlane.xlu0 %1246
        %v1248 = vmul.f32 %v791, %v791
        %v1249 = vmul.f32 %v793, %v793
        %1250 = vadd.xlane.f32.xlu0 %v1248
        %v1251 = vpop.xlane.xlu0 %1250
        %1252 = vadd.xlane.f32.xlu0 %v1249
        %v1253 = vpop.xlane.xlu0 %1252
        %v1254 = vmul.f32 %v1245, 0.015625
        %v1255 = vmul.f32 %v1247, 0.015625
        %v1256 = vmul.f32 %v1251, 0.015625
        %v1257 = vmul.f32 %v1253, 0.015625
        %v1258 = vmul.f32 %v1254, %v1254
        %v1259 = vmul.f32 %v1255, %v1255
        %v1260 = vsub.f32 %v1256, %v1258
        %v1261 = vsub.f32 %v1257, %v1259
        %v1262 = vmax.f32 %v1260, 0.0
        %v1263 = vmax.f32 %v1261, 0.0
        %v1264 = vsub.f32 %v791, %v1254
        %v1265 = vsub.f32 %v793, %v1255
        %v1266 = vadd.f32 %v1262, 1e-05
        %v1267 = vadd.f32 %v1263, 1e-05
        %v1268 = vrsqrt.pop %v1266
        %v1269 = vmul.f32 %v1268, %v1266
        %v1270 = vmul.f32 %v1269, %v1268
        %v1271 = vmul.f32 0.5, %v1270
        %v1272 = vsub.f32 1.5, %v1271
        %v1273 = vmul.f32 %v1268, %v1272
        %vm1274 = vweird.f32 %v1266
        %vm1275 = vweird.f32 %v1268
        %vm1276 = vmor %vm1274, %vm1275
        %v1277 = vsel %vm1276, %v1268, %v1273
        %v1278 = vrsqrt.pop %v1267
        %v1279 = vmul.f32 %v1278, %v1267
        %v1280 = vmul.f32 %v1279, %v1278
        %v1281 = vmul.f32 0.5, %v1280
        %v1282 = vsub.f32 1.5, %v1281
        %v1283 = vmul.f32 %v1278, %v1282
        %vm1284 = vweird.f32 %v1267
        %vm1285 = vweird.f32 %v1278
        %vm1286 = vmor %vm1284, %vm1285
        %v1287 = vsel %vm1286, %v1278, %v1283
        %v1288 = vmul.f32 %v1264, %v1277
        %v1289 = vmul.f32 %v1265, %v1287
        %v1290 = vperm.slane %v657, 2
        %v1291 = vmul.f32 %v1288, %v1290
        %v1292 = vmul.f32 %v1289, %v1290
        %v1293 = vperm.slane %v658, 2
        %v1294 = vadd.f32 %v1291, %v1293
        %v1295 = vadd.f32 %v1292, %v1293
        %1296 = vadd.xlane.f32.xlu0 %v927
        %v1297 = vpop.xlane.xlu0 %1296
        %1298 = vadd.xlane.f32.xlu0 %v929
        %v1299 = vpop.xlane.xlu0 %1298
        %v1300 = vmul.f32 %v927, %v927
        %v1301 = vmul.f32 %v929, %v929
        %1302 = vadd.xlane.f32.xlu0 %v1300
        %v1303 = vpop.xlane.xlu0 %1302
        %1304 = vadd.xlane.f32.xlu0 %v1301
        %v1305 = vpop.xlane.xlu0 %1304
        %v1306 = vmul.f32 %v1297, 0.015625
        %v1307 = vmul.f32 %v1299, 0.015625
        %v1308 = vmul.f32 %v1303, 0.015625
        %v1309 = vmul.f32 %v1305, 0.015625
        %v1310 = vmul.f32 %v1306, %v1306
        %v1311 = vmul.f32 %v1307, %v1307
        %v1312 = vsub.f32 %v1308, %v1310
        %v1313 = vsub.f32 %v1309, %v1311
        %v1314 = vmax.f32 %v1312, 0.0
        %v1315 = vmax.f32 %v1313, 0.0
        %v1316 = vsub.f32 %v927, %v1306
        %v1317 = vsub.f32 %v929, %v1307
        %v1318 = vadd.f32 %v1314, 1e-05
        %v1319 = vadd.f32 %v1315, 1e-05
        %v1320 = vrsqrt.pop %v1318
        %v1321 = vmul.f32 %v1320, %v1318
        %v1322 = vmul.f32 %v1321, %v1320
        %v1323 = vmul.f32 0.5, %v1322
        %v1324 = vsub.f32 1.5, %v1323
        %v1325 = vmul.f32 %v1320, %v1324
        %vm1326 = vweird.f32 %v1318
        %vm1327 = vweird.f32 %v1320
        %vm1328 = vmor %vm1326, %vm1327
        %v1329 = vsel %vm1328, %v1320, %v1325
        %v1330 = vrsqrt.pop %v1319
        %v1331 = vmul.f32 %v1330, %v1319
        %v1332 = vmul.f32 %v1331, %v1330
        %v1333 = vmul.f32 0.5, %v1332
        %v1334 = vsub.f32 1.5, %v1333
        %v1335 = vmul.f32 %v1330, %v1334
        %vm1336 = vweird.f32 %v1319
        %vm1337 = vweird.f32 %v1330
        %vm1338 = vmor %vm1336, %vm1337
        %v1339 = vsel %vm1338, %v1330, %v1335
        %v1340 = vmul.f32 %v1316, %v1329
        %v1341 = vmul.f32 %v1317, %v1339
        %v1342 = vperm.slane %v657, 3
        %v1343 = vmul.f32 %v1340, %v1342
        %v1344 = vmul.f32 %v1341, %v1342
        %v1345 = vperm.slane %v658, 3
        %v1346 = vadd.f32 %v1343, %v1345
        %v1347 = vadd.f32 %v1344, %v1345
        %v1348 = vmul.f32 %v1228, %v1294
        %v1349 = vmul.f32 %v1243, %v1295
        %v1350 = vmul.f32 %v1138, %v1346
        %v1351 = vmul.f32 %v1153, %v1347
        %v1352 = vadd.f32 %v1348, %v1350
        %v1353 = vadd.f32 %v1349, %v1351
        %v1354 = vpack.c.bf16 %v1353, %v1352
        %v1355 = vld [vmem:[#allocation5] sm:$0xf]
        %v1356 = vld [vmem:[#allocation5 + $0x4] sm:$0xf]
        %v1357 = vld [vmem:[#allocation5 + $0x8] sm:$0xf]
        %v1358 = vld [vmem:[#allocation5 + $0xc] sm:$0xf]
        %v1359 = vld [vmem:[#allocation5 + $0x10] sm:$0xf]
        %v1360 = vld [vmem:[#allocation5 + $0x14] sm:$0xf]
        %v1361 = vld [vmem:[#allocation5 + $0x18] sm:$0xf]
        %v1362 = vld [vmem:[#allocation5 + $0x1c] sm:$0xf]
        %v1363 = vld [vmem:[#allocation5 + $0x20] sm:$0xf]
        %v1364 = vld [vmem:[#allocation5 + $0x24] sm:$0xf]
        %v1365 = vld [vmem:[#allocation5 + $0x28] sm:$0xf]
        %v1366 = vld [vmem:[#allocation5 + $0x2c] sm:$0xf]
        %v1367 = vld [vmem:[#allocation5 + $0x30] sm:$0xf]
        %v1368 = vld [vmem:[#allocation5 + $0x34] sm:$0xf]
        %v1369 = vld [vmem:[#allocation5 + $0x38] sm:$0xf]
        %v1370 = vld [vmem:[#allocation5 + $0x3c] sm:$0xf]
        %v1371 = vld [vmem:[%s11] sm:$0x1]
        %v1373 = vperm.slane %v1371, 0
        %v1391 = vunpack.c.l.b16 %v1355
        %v1392 = vunpack.c.l.b16 %v1356
        %v1393 = vunpack.c.l.b16 %v1357
        %v1394 = vunpack.c.l.b16 %v1358
        %v1395 = vunpack.c.l.b16 %v1359
        %v1396 = vunpack.c.l.b16 %v1360
        %v1397 = vunpack.c.l.b16 %v1361
        %v1398 = vunpack.c.l.b16 %v1362
        %v1399 = vunpack.c.l.b16 %v1363
        %v1400 = vunpack.c.l.b16 %v1364
        %v1401 = vunpack.c.l.b16 %v1365
        %v1402 = vunpack.c.l.b16 %v1366
        %v1403 = vunpack.c.l.b16 %v1367
        %v1404 = vunpack.c.l.b16 %v1368
        %v1405 = vunpack.c.l.b16 %v1369
        %v1406 = vunpack.c.l.b16 %v1370
        %v1407 = vpack.c.b16 %v1392, %v1391
        %v1408 = vpack.c.b16 %v1394, %v1393
        %v1409 = vpack.c.b16 %v1396, %v1395
        %v1410 = vpack.c.b16 %v1398, %v1397
        %v1411 = vpack.c.b16 %v1400, %v1399
        %v1412 = vpack.c.b16 %v1402, %v1401
        %v1413 = vpack.c.b16 %v1404, %v1403
        %v1414 = vpack.c.b16 %v1406, %v1405
        %1423 = vmatpush.bf16.msra.mxu0 %v1414
        %1424 = vmatpush.bf16.msra.mxu0 %v1413
        %1425 = vmatpush.bf16.msra.mxu0 %v1412
        %1426 = vmatpush.bf16.msra.mxu0 %v1411
        %1427 = vmatpush.bf16.msra.mxu0 %v1410
        %1428 = vmatpush.bf16.msra.mxu0 %v1409
        %1429 = vmatpush.bf16.msra.mxu0 %v1408
        %1430 = vmatpush.bf16.msra.mxu0 %v1407
        %1431 = vmatmul.bf16.gmra.mxu0 %v1354
        %v1432 = vpop.f32.mrf.mxu0
        %v1433 = vadd.f32 %v1373, %v1432
        %v1434 = vpop.f32.mrf.mxu0
        %v1435 = vadd.f32 %v1373, %v1434
        %1436 = vdwg.mxu0
        %1437 = vadd.xlane.f32.xlu0 %v1433
        %v1438 = vpop.xlane.xlu0 %1437
        %1439 = vadd.xlane.f32.xlu0 %v1435
        %v1440 = vpop.xlane.xlu0 %1439
        %v1441 = vmul.f32 %v1433, %v1433
        %v1442 = vmul.f32 %v1435, %v1435
        %1443 = vadd.xlane.f32.xlu0 %v1441
        %v1444 = vpop.xlane.xlu0 %1443
        %1445 = vadd.xlane.f32.xlu0 %v1442
        %v1446 = vpop.xlane.xlu0 %1445
        %v1447 = vmul.f32 %v1438, 0.015625
        %v1448 = vmul.f32 %v1440, 0.015625
        %v1449 = vmul.f32 %v1444, 0.015625
        %v1450 = vmul.f32 %v1446, 0.015625
        %v1451 = vmul.f32 %v1447, %v1447
        %v1452 = vmul.f32 %v1448, %v1448
        %v1453 = vsub.f32 %v1449, %v1451
        %v1454 = vsub.f32 %v1450, %v1452
        %v1455 = vmax.f32 %v1453, 0.0
        %v1456 = vmax.f32 %v1454, 0.0
        %v1457 = vsub.f32 %v1433, %v1447
        %v1458 = vsub.f32 %v1435, %v1448
        %v1459 = vadd.f32 %v1455, 1e-05
        %v1460 = vadd.f32 %v1456, 1e-05
        %v1461 = vrsqrt.pop %v1459
        %v1462 = vmul.f32 %v1461, %v1459
        %v1463 = vmul.f32 %v1462, %v1461
        %v1464 = vmul.f32 0.5, %v1463
        %v1465 = vsub.f32 1.5, %v1464
        %v1466 = vmul.f32 %v1461, %v1465
        %vm1467 = vweird.f32 %v1459
        %vm1468 = vweird.f32 %v1461
        %vm1469 = vmor %vm1467, %vm1468
        %v1470 = vsel %vm1469, %v1461, %v1466
        %v1471 = vrsqrt.pop %v1460
        %v1472 = vmul.f32 %v1471, %v1460
        %v1473 = vmul.f32 %v1472, %v1471
        %v1474 = vmul.f32 0.5, %v1473
        %v1475 = vsub.f32 1.5, %v1474
        %v1476 = vmul.f32 %v1471, %v1475
        %vm1477 = vweird.f32 %v1460
        %vm1478 = vweird.f32 %v1471
        %vm1479 = vmor %vm1477, %vm1478
        %v1480 = vsel %vm1479, %v1471, %v1476
        %v1481 = vmul.f32 %v1457, %v1470
        %v1482 = vmul.f32 %v1458, %v1480
        %v1483 = vperm.slane %v657, 4
        %v1484 = vmul.f32 %v1481, %v1483
        %v1485 = vmul.f32 %v1482, %v1483
        %v1486 = vperm.slane %v658, 4
        %v1487 = vadd.f32 %v1484, %v1486
        %v1488 = vadd.f32 %v1485, %v1486
        %v1489 = vmax.f32 %v1487, 0.0
        %v1490 = vmax.f32 %v1488, 0.0
        %p1491 = scmp.eq.s32.totalorder %s33, 0
        // Predicated region
        $region101: #{tree_like_forward.1} parent=75 // pred_check
          %p1492 = pneg %p1491
        $region102: #{tree_like_forward.1} parent=75 // pred_check_branch
          %1494 = sbr.rel (%p1492) target = $region104
        $region103: #{tree_like_forward.1} parent=75 // pred_region
          %v1495 = vpack.c.bf16 %v1489, %v1489
          %v1496 = vpack.c.bf16 %v1490, %v1490
          %1497 = vst [vmem:[#allocation2] sm:$0xf] %v1495
          %1498 = vst [vmem:[#allocation2 + $0x4] sm:$0xf] %v1496
          %1499 = vst [vmem:[%s610] sm:$0xff] %v1489
          %1500 = vst [vmem:[%s610 + $0x8] sm:$0xff] %v1490
        $region104: #{tree_like_forward.1} parent=75 // pred_fallthru
          _
        // Predicated region
        $region105: #{tree_like_forward.1} parent=75 // pred_check
          %p1501 = pneg %p612
        $region106: #{tree_like_forward.1} parent=75 // pred_check_branch
          %1503 = sbr.rel (%p1501) target = $region108
        $region107: #{tree_like_forward.1} parent=75 // pred_region
          %v1504 = vld [vmem:[%s592] sm:$0xff]
          %v1505 = vld [vmem:[%s592 + $0x8] sm:$0xff]
          %vm1506 = vcmp.ne.f32.partialorder %v1504, 0.0
          %vm1507 = vcmp.ne.f32.partialorder %v1505, 0.0
          %v1508 = vld [vmem:[%s610] sm:$0xff]
          %v1509 = vld [vmem:[%s610 + $0x8] sm:$0xff]
          %v1510 = vsel %vm1506, 1, 0
          %v1511 = vsel %vm1507, 1, 0
          %1512 = vset.pattern.permute.xlu0 0
          %1513 = vperm.xlu0 %1512, %v1510
          %v1514 = vpop.permute.xlu0 %1513
          %1515 = vset.pattern.permute.xlu0 0
          %1516 = vperm.xlu0 %1515, %v1511
          %v1517 = vpop.permute.xlu0 %1516
          %vm1518 = vcmp.eq.s32.totalorder %v1514, 1
          %vm1519 = vcmp.eq.s32.totalorder %v1517, 1
          %v1520 = vsel %vm1518, %v1508, %v1489
          %v1521 = vsel %vm1519, %v1509, %v1490
          %1522 = vst [vmem:[%s610] sm:$0xff] %v1520
          %1523 = vst [vmem:[%s610 + $0x8] sm:$0xff] %v1521
        $region108: #{tree_like_forward.1} parent=75 // pred_fallthru
          _
        %s1524 = smul.u32 2, %s32
        %p1525 = scmp.lt.s32.totalorder %s1524, 3
        %s1526 = scalar_select %p1525, %s1524, 3
        %s1527 = smul.addr %s1526, 8
        %s1528 = scalar_lea.vmem %s14, %s1527
        // Predicated region
        $region109: #{tree_like_forward.1} parent=75 // pred_check
          %p1529 = pneg %p372
        $region110: #{tree_like_forward.1} parent=75 // pred_check_branch
          %1531 = sbr.rel (%p1529) target = $region112
        $region111: #{tree_like_forward.1} parent=75 // pred_region
          %s1532 = smul.u32 2, %s32
        $region112: #{tree_like_forward.1} parent=75 // pred_fallthru
          _
      $region76: #{tree_like_forward.1} parent=5 // pred_fallthru
        _
      %p1533 = scmp.le.s32.totalorder 2, %s23
      // Predicated region
      $region113: #{tree_like_forward.1} parent=5 // pred_check
        %p1534 = pneg %p1533
      $region114: #{tree_like_forward.1} parent=5 // pred_check_branch
        %1536 = sbr.rel (%p1534) target = $region116
      $region115: #{tree_like_forward.1} parent=5 // pred_region
        %s1537 = ssub.s32 %s23, 2
        // Predicated region
        $region117: #{tree_like_forward.1} parent=115 // pred_check
          %p1538 = pneg %p378
        $region118: #{tree_like_forward.1} parent=115 // pred_check_branch
          %1540 = sbr.rel (%p1538) target = $region120
        $region119: #{tree_like_forward.1} parent=115 // pred_region
          %s1541 = smul.u32 2, %s34
          %p1542 = scmp.lt.s32.totalorder %s1541, 3
          %s1543 = scalar_select %p1542, %s1541, 3
          %s1544 = smul.addr %s1543, 8
          %s1545 = scalar_lea.vmem %s14, %s1544
        $region120: #{tree_like_forward.1} parent=115 // pred_fallthru
          _
      $region116: #{tree_like_forward.1} parent=5 // pred_fallthru
        _
    $region6: #{tree_like_forward.1} parent=1 // loop_footer
      %s27 = sadd.s32 1, %s23
    $region7: #{tree_like_forward.1} parent=1 // loop_footer_branch
      %22 = sbr.rel target = $region3
    $region8: #{tree_like_forward.1} parent=1 // loop_exit
      _
    %1546 = vsyncpa [#allocation4], 1
    %s1547 = scalar_lea.sflag [#allocation4], 1
    %1548 = vsyncpa %s1547, 1
    %1549 = vsyncpa [#allocation6], 1
    %1550 = vsyncpa [#allocation9], 1

// kernel: tree_like_forward.1
$region0: #{tree_like_forward.1}
  #allocation0 [shape = 'u32[]', space=smem, size = 0x4, offset = 0x4, fixed_abs, tag = 'smem constant byte address 0x4 - core index']
  #allocation1 [shape = 'u32[72,128]{1,0:T(1,128)}', space=vmem, size = 0x9000, scoped, tag = 'internal scratch']
  #allocation2 [shape = 'bf16[16,128]{1,0:T(8,128)(2,1)}', space=vmem, size = 0x1000, scoped, tag = 'scratch operand']
  %s0 = inlined_call_operand.vmem [shape: f32[32,1], index: 0, kind: input, shape index: {}]
  %s1 = inlined_call_operand.vmem [shape: f32[32,1], index: 1, kind: input, shape index: {}]
  %s2 = inlined_call_operand.vmem [shape: bf16[32,128], index: 2, kind: input, shape index: {}]
  %s3 = inlined_call_operand.vmem [shape: bf16[32,128], index: 3, kind: input, shape index: {}]
  %s4 = inlined_call_operand.vmem [shape: bf16[128,256], index: 4, kind: input, shape index: {}]
  %s5 = inlined_call_operand.vmem [shape: f32[1,256], index: 5, kind: input, shape index: {}]
  %s6 = inlined_call_operand.vmem [shape: bf16[128,256], index: 6, kind: input, shape index: {}]
  %s7 = inlined_call_operand.vmem [shape: f32[1,256], index: 7, kind: input, shape index: {}]
  %s8 = inlined_call_operand.hbm [shape: bf16[128,256], index: 8, kind: input, shape index: {}]
  %s9 = inlined_call_operand.vmem [shape: f32[1,256], index: 9, kind: input, shape index: {}]
  %s10 = inlined_call_operand.hbm [shape: bf16[128,128], index: 10, kind: input, shape index: {}]
  %s11 = inlined_call_operand.vmem [shape: f32[1,128], index: 11, kind: input, shape index: {}]
  %s12 = inlined_call_operand.hbm [shape: f32[5,128], index: 12, kind: input, shape index: {}]
  %s13 = inlined_call_operand.hbm [shape: f32[5,128], index: 13, kind: input, shape index: {}]
  %s14 = inlined_call_operand.vmem [shape: f32[32,128], index: 14, kind: output, shape index: {}]
  %s15 = sld [smem:[#allocation0]]
  $region121: #{tree_like_forward.1} parent=0
    _
  %s17 = ssub.s32 1, %s15
  %s18 = scalar_select 0, %s17, %s15
  $region1: #{tree_like_forward.1} parent=0
    #allocation3 [shape = 'u8[65536]{0}', space=vmem, size = 0x10000, scoped, tag = 'input window, operand 8, single buffered']
    #allocation4 [shape = 's32[2]{0}', space=sflag, size = 0x8, scoped, tag = 'scoped memory for tree_like_forward.1']
    #allocation5 [shape = 'u8[32768]{0}', space=vmem, size = 0x8000, scoped, tag = 'input window, operand 10, single buffered']
    #allocation6 [shape = 's32[1]{0}', space=sflag, size = 0x4, scoped, tag = 'scoped memory for tree_like_forward.1']
    #allocation7 [shape = 'u8[4096]{0}', space=vmem, size = 0x1000, scoped, tag = 'input window, operand 12, single buffered']
    #allocation8 [shape = 'u8[4096]{0}', space=vmem, size = 0x1000, scoped, tag = 'input window, operand 13, single buffered']
    #allocation9 [shape = 's32[1]{0}', space=sflag, size = 0x4, scoped, tag = 'scoped memory for tree_like_forward.1']
    %19 = vsyncpa [#allocation4], 0
    %20 = vsyncpa [#allocation6], 0
    %21 = vsyncpa [#allocation9], 0
    loop: start=0, step=1, limit=6
    $region2: #{tree_like_forward.1} parent=1 // loop_pre_header
      _
    $region3: #{tree_like_forward.1} parent=1 // loop_header
      %s23 = sphi 0, %s27
      %p24 = scmp.ge.s32.totalorder %s23, 6
      %s30 = sphi 0, %s42
      %s31 = sphi 0, %s38
      %s32 = sphi 0, %s30
      %s33 = sphi 0, %s31
      %s34 = sphi 0, %s32
      %s35 = sphi 0, %s33
      %s45 = sphi 0, %s47
      %s48 = sphi 0, %s45
      %s49 = sphi 0, %s48
      %s65 = sphi 0, %s49
      %s71 = sphi 0, %s73
      %s74 = sphi 0, %s71
      %s75 = sphi 0, %s74
      %s91 = sphi 0, %s75
      %s97 = sphi 0, %s99
      %s100 = sphi 0, %s97
      %s101 = sphi 0, %s100
      %s117 = sphi 0, %s101
      %s123 = sphi 0, %s125
      %s126 = sphi 0, %s123
      %s127 = sphi 0, %s126
      %s143 = sphi 0, %s127
      %s147 = sphi 0, %s147
      %s149 = sphi 0, %s147
      %s150 = sphi 0, %s149
      %s164 = sphi 0, %s150
      %s168 = sphi 0, %s168
      %s170 = sphi 0, %s168
      %s171 = sphi 0, %s170
      %s185 = sphi 0, %s171
      %s189 = sphi 0, %s189
      %s191 = sphi 0, %s189
      %s192 = sphi 0, %s191
      %s206 = sphi 0, %s192
      %s210 = sphi 0, %s210
      %s212 = sphi 0, %s210
      %s213 = sphi 0, %s212
      %s227 = sphi 0, %s213
      %s231 = sphi 0, %s231
      %s233 = sphi 0, %s231
      %s234 = sphi 0, %s233
      %s248 = sphi 0, %s234
      %s252 = sphi 0, %s252
      %s254 = sphi 0, %s252
      %s255 = sphi 0, %s254
      %s269 = sphi 0, %s255
      %s273 = sphi 0, %s273
      %s275 = sphi 0, %s273
      %s276 = sphi 0, %s275
      %s290 = sphi 0, %s276
      %s294 = sphi 0, %s294
      %s296 = sphi 0, %s294
      %s297 = sphi 0, %s296
      %s311 = sphi 0, %s297
      %s315 = sphi 0, %s315
      %s317 = sphi 0, %s315
      %s318 = sphi 0, %s317
      %s332 = sphi 0, %s318
      %s336 = sphi 0, %s336
      %s338 = sphi 0, %s336
      %s339 = sphi 0, %s338
      %s353 = sphi 0, %s339
      %s359 = sphi 0, %s361
      %s362 = sphi 0, %s359
      %s363 = sphi 0, %s362
      %s379 = sphi 0, %s363
    $region4: #{tree_like_forward.1} parent=1 // loop_header_branch
      %26 = sbr.rel (%p24) target = $region8
    $region5: #{tree_like_forward.1} parent=1 // loop_body
      %s28 = ssub.s32 %s23, 1
      %s29 = ssub.s32 %s23, 2
      %s36 = sadd.s32 1, %s31
      %p37 = scmp.ge.s32.totalorder %s36, 2
      %s38 = scalar_select %p37, 0, %s36
      %s39 = sadd.s32 1, %s30
      %s40 = scalar_select %p37, %s39, %s30
      %p41 = scmp.ge.s32.totalorder %s40, 2
      %s42 = scalar_select %p41, 0, %s40
      %s43 = ssub.s32 %s30, %s42
      %p44 = scmp.eq.s32.totalorder %s43, 0
      %s46 = sadd.s32 %s45, 1
      %s47 = scalar_select %p44, %s45, %s46
      %p50 = pneg %p44
      %p51 = scmp.eq.s32.totalorder %s23, 3
      %p52 = por %p50, %p51
      %p53 = scmp.ne.s32.totalorder %s45, %s48
      %p54 = scmp.eq.s32.totalorder %s23, 0
      %p55 = por %p53, %p54
      %p56 = scmp.ne.s32.totalorder %s45, %s48
      %p57 = scmp.eq.s32.totalorder %s28, 3
      %p58 = por %p56, %p57
      %p59 = scmp.ne.s32.totalorder %s48, %s49
      %p60 = scmp.eq.s32.totalorder %s28, 0
      %p61 = por %p59, %p60
      %p62 = scmp.ne.s32.totalorder %s48, %s49
      %p63 = scmp.eq.s32.totalorder %s29, 3
      %p64 = por %p62, %p63
      %p66 = scmp.ne.s32.totalorder %s49, %s65
      %p67 = scmp.eq.s32.totalorder %s29, 0
      %p68 = por %p66, %p67
      %s69 = ssub.s32 %s30, %s42
      %p70 = scmp.eq.s32.totalorder %s69, 0
      %s72 = sadd.s32 %s71, 1
      %s73 = scalar_select %p70, %s71, %s72
      %p76 = pneg %p70
      %p77 = scmp.eq.s32.totalorder %s23, 3
      %p78 = por %p76, %p77
      %p79 = scmp.ne.s32.totalorder %s71, %s74
      %p80 = scmp.eq.s32.totalorder %s23, 0
      %p81 = por %p79, %p80
      %p82 = scmp.ne.s32.totalorder %s71, %s74
      %p83 = scmp.eq.s32.totalorder %s28, 3
      %p84 = por %p82, %p83
      %p85 = scmp.ne.s32.totalorder %s74, %s75
      %p86 = scmp.eq.s32.totalorder %s28, 0
      %p87 = por %p85, %p86
      %p88 = scmp.ne.s32.totalorder %s74, %s75
      %p89 = scmp.eq.s32.totalorder %s29, 3
      %p90 = por %p88, %p89
      %p92 = scmp.ne.s32.totalorder %s75, %s91
      %p93 = scmp.eq.s32.totalorder %s29, 0
      %p94 = por %p92, %p93
      %s95 = ssub.s32 %s30, %s42
      %p96 = scmp.eq.s32.totalorder %s95, 0
      %s98 = sadd.s32 %s97, 1
      %s99 = scalar_select %p96, %s97, %s98
      %p102 = pneg %p96
      %p103 = scmp.eq.s32.totalorder %s23, 3
      %p104 = por %p102, %p103
      %p105 = scmp.ne.s32.totalorder %s97, %s100
      %p106 = scmp.eq.s32.totalorder %s23, 0
      %p107 = por %p105, %p106
      %p108 = scmp.ne.s32.totalorder %s97, %s100
      %p109 = scmp.eq.s32.totalorder %s28, 3
      %p110 = por %p108, %p109
      %p111 = scmp.ne.s32.totalorder %s100, %s101
      %p112 = scmp.eq.s32.totalorder %s28, 0
      %p113 = por %p111, %p112
      %p114 = scmp.ne.s32.totalorder %s100, %s101
      %p115 = scmp.eq.s32.totalorder %s29, 3
      %p116 = por %p114, %p115
      %p118 = scmp.ne.s32.totalorder %s101, %s117
      %p119 = scmp.eq.s32.totalorder %s29, 0
      %p120 = por %p118, %p119
      %s121 = ssub.s32 %s30, %s42
      %p122 = scmp.eq.s32.totalorder %s121, 0
      %s124 = sadd.s32 %s123, 1
      %s125 = scalar_select %p122, %s123, %s124
      %p128 = pneg %p122
      %p129 = scmp.eq.s32.totalorder %s23, 3
      %p130 = por %p128, %p129
      %p131 = scmp.ne.s32.totalorder %s123, %s126
      %p132 = scmp.eq.s32.totalorder %s23, 0
      %p133 = por %p131, %p132
      %p134 = scmp.ne.s32.totalorder %s123, %s126
      %p135 = scmp.eq.s32.totalorder %s28, 3
      %p136 = por %p134, %p135
      %p137 = scmp.ne.s32.totalorder %s126, %s127
      %p138 = scmp.eq.s32.totalorder %s28, 0
      %p139 = por %p137, %p138
      %p140 = scmp.ne.s32.totalorder %s126, %s127
      %p141 = scmp.eq.s32.totalorder %s29, 3
      %p142 = por %p140, %p141
      %p144 = scmp.ne.s32.totalorder %s127, %s143
      %p145 = scmp.eq.s32.totalorder %s29, 0
      %p146 = por %p144, %p145
      %s148 = sadd.s32 %s147, 1
      %p151 = scmp.eq.s32.totalorder %s23, 3
      %p152 = scmp.ne.s32.totalorder %s147, %s149
      %p153 = scmp.eq.s32.totalorder %s23, 0
      %p154 = por %p152, %p153
      %p155 = scmp.ne.s32.totalorder %s147, %s149
      %p156 = scmp.eq.s32.totalorder %s28, 3
      %p157 = por %p155, %p156
      %p158 = scmp.ne.s32.totalorder %s149, %s150
      %p159 = scmp.eq.s32.totalorder %s28, 0
      %p160 = por %p158, %p159
      %p161 = scmp.ne.s32.totalorder %s149, %s150
      %p162 = scmp.eq.s32.totalorder %s29, 3
      %p163 = por %p161, %p162
      %p165 = scmp.ne.s32.totalorder %s150, %s164
      %p166 = scmp.eq.s32.totalorder %s29, 0
      %p167 = por %p165, %p166
      %s169 = sadd.s32 %s168, 1
      %p172 = scmp.eq.s32.totalorder %s23, 3
      %p173 = scmp.ne.s32.totalorder %s168, %s170
      %p174 = scmp.eq.s32.totalorder %s23, 0
      %p175 = por %p173, %p174
      %p176 = scmp.ne.s32.totalorder %s168, %s170
      %p177 = scmp.eq.s32.totalorder %s28, 3
      %p178 = por %p176, %p177
      %p179 = scmp.ne.s32.totalorder %s170, %s171
      %p180 = scmp.eq.s32.totalorder %s28, 0
      %p181 = por %p179, %p180
      %p182 = scmp.ne.s32.totalorder %s170, %s171
      %p183 = scmp.eq.s32.totalorder %s29, 3
      %p184 = por %p182, %p183
      %p186 = scmp.ne.s32.totalorder %s171, %s185
      %p187 = scmp.eq.s32.totalorder %s29, 0
      %p188 = por %p186, %p187
      %s190 = sadd.s32 %s189, 1
      %p193 = scmp.eq.s32.totalorder %s23, 3
      %p194 = scmp.ne.s32.totalorder %s189, %s191
      %p195 = scmp.eq.s32.totalorder %s23, 0
      %p196 = por %p194, %p195
      %p197 = scmp.ne.s32.totalorder %s189, %s191
      %p198 = scmp.eq.s32.totalorder %s28, 3
      %p199 = por %p197, %p198
      %p200 = scmp.ne.s32.totalorder %s191, %s192
      %p201 = scmp.eq.s32.totalorder %s28, 0
      %p202 = por %p200, %p201
      %p203 = scmp.ne.s32.totalorder %s191, %s192
      %p204 = scmp.eq.s32.totalorder %s29, 3
      %p205 = por %p203, %p204
      %p207 = scmp.ne.s32.totalorder %s192, %s206
      %p208 = scmp.eq.s32.totalorder %s29, 0
      %p209 = por %p207, %p208
      %s211 = sadd.s32 %s210, 1
      %p214 = scmp.eq.s32.totalorder %s23, 3
      %p215 = scmp.ne.s32.totalorder %s210, %s212
      %p216 = scmp.eq.s32.totalorder %s23, 0
      %p217 = por %p215, %p216
      %p218 = scmp.ne.s32.totalorder %s210, %s212
      %p219 = scmp.eq.s32.totalorder %s28, 3
      %p220 = por %p218, %p219
      %p221 = scmp.ne.s32.totalorder %s212, %s213
      %p222 = scmp.eq.s32.totalorder %s28, 0
      %p223 = por %p221, %p222
      %p224 = scmp.ne.s32.totalorder %s212, %s213
      %p225 = scmp.eq.s32.totalorder %s29, 3
      %p226 = por %p224, %p225
      %p228 = scmp.ne.s32.totalorder %s213, %s227
      %p229 = scmp.eq.s32.totalorder %s29, 0
      %p230 = por %p228, %p229
      %s232 = sadd.s32 %s231, 1
      %p235 = scmp.eq.s32.totalorder %s23, 3
      %p236 = scmp.ne.s32.totalorder %s231, %s233
      %p237 = scmp.eq.s32.totalorder %s23, 0
      %p238 = por %p236, %p237
      %p239 = scmp.ne.s32.totalorder %s231, %s233
      %p240 = scmp.eq.s32.totalorder %s28, 3
      %p241 = por %p239, %p240
      %p242 = scmp.ne.s32.totalorder %s233, %s234
      %p243 = scmp.eq.s32.totalorder %s28, 0
      %p244 = por %p242, %p243
      %p245 = scmp.ne.s32.totalorder %s233, %s234
      %p246 = scmp.eq.s32.totalorder %s29, 3
      %p247 = por %p245, %p246
      %p249 = scmp.ne.s32.totalorder %s234, %s248
      %p250 = scmp.eq.s32.totalorder %s29, 0
      %p251 = por %p249, %p250
      %s253 = sadd.s32 %s252, 1
      %p256 = scmp.eq.s32.totalorder %s23, 3
      %p257 = scmp.ne.s32.totalorder %s252, %s254
      %p258 = scmp.eq.s32.totalorder %s23, 0
      %p259 = por %p257, %p258
      %p260 = scmp.ne.s32.totalorder %s252, %s254
      %p261 = scmp.eq.s32.totalorder %s28, 3
      %p262 = por %p260, %p261
      %p263 = scmp.ne.s32.totalorder %s254, %s255
      %p264 = scmp.eq.s32.totalorder %s28, 0
      %p265 = por %p263, %p264
      %p266 = scmp.ne.s32.totalorder %s254, %s255
      %p267 = scmp.eq.s32.totalorder %s29, 3
      %p268 = por %p266, %p267
      %p270 = scmp.ne.s32.totalorder %s255, %s269
      %p271 = scmp.eq.s32.totalorder %s29, 0
      %p272 = por %p270, %p271
      %s274 = sadd.s32 %s273, 1
      %p277 = scmp.eq.s32.totalorder %s23, 3
      %p278 = scmp.ne.s32.totalorder %s273, %s275
      %p279 = scmp.eq.s32.totalorder %s23, 0
      %p280 = por %p278, %p279
      %p281 = scmp.ne.s32.totalorder %s273, %s275
      %p282 = scmp.eq.s32.totalorder %s28, 3
      %p283 = por %p281, %p282
      %p284 = scmp.ne.s32.totalorder %s275, %s276
      %p285 = scmp.eq.s32.totalorder %s28, 0
      %p286 = por %p284, %p285
      %p287 = scmp.ne.s32.totalorder %s275, %s276
      %p288 = scmp.eq.s32.totalorder %s29, 3
      %p289 = por %p287, %p288
      %p291 = scmp.ne.s32.totalorder %s276, %s290
      %p292 = scmp.eq.s32.totalorder %s29, 0
      %p293 = por %p291, %p292
      %s295 = sadd.s32 %s294, 1
      %p298 = scmp.eq.s32.totalorder %s23, 3
      %p299 = scmp.ne.s32.totalorder %s294, %s296
      %p300 = scmp.eq.s32.totalorder %s23, 0
      %p301 = por %p299, %p300
      %p302 = scmp.ne.s32.totalorder %s294, %s296
      %p303 = scmp.eq.s32.totalorder %s28, 3
      %p304 = por %p302, %p303
      %p305 = scmp.ne.s32.totalorder %s296, %s297
      %p306 = scmp.eq.s32.totalorder %s28, 0
      %p307 = por %p305, %p306
      %p308 = scmp.ne.s32.totalorder %s296, %s297
      %p309 = scmp.eq.s32.totalorder %s29, 3
      %p310 = por %p308, %p309
      %p312 = scmp.ne.s32.totalorder %s297, %s311
      %p313 = scmp.eq.s32.totalorder %s29, 0
      %p314 = por %p312, %p313
      %s316 = sadd.s32 %s315, 1
      %p319 = scmp.eq.s32.totalorder %s23, 3
      %p320 = scmp.ne.s32.totalorder %s315, %s317
      %p321 = scmp.eq.s32.totalorder %s23, 0
      %p322 = por %p320, %p321
      %p323 = scmp.ne.s32.totalorder %s315, %s317
      %p324 = scmp.eq.s32.totalorder %s28, 3
      %p325 = por %p323, %p324
      %p326 = scmp.ne.s32.totalorder %s317, %s318
      %p327 = scmp.eq.s32.totalorder %s28, 0
      %p328 = por %p326, %p327
      %p329 = scmp.ne.s32.totalorder %s317, %s318
      %p330 = scmp.eq.s32.totalorder %s29, 3
      %p331 = por %p329, %p330
      %p333 = scmp.ne.s32.totalorder %s318, %s332
      %p334 = scmp.eq.s32.totalorder %s29, 0
      %p335 = por %p333, %p334
      %s337 = sadd.s32 %s336, 1
      %p340 = scmp.eq.s32.totalorder %s23, 3
      %p341 = scmp.ne.s32.totalorder %s336, %s338
      %p342 = scmp.eq.s32.totalorder %s23, 0
      %p343 = por %p341, %p342
      %p344 = scmp.ne.s32.totalorder %s336, %s338
      %p345 = scmp.eq.s32.totalorder %s28, 3
      %p346 = por %p344, %p345
      %p347 = scmp.ne.s32.totalorder %s338, %s339
      %p348 = scmp.eq.s32.totalorder %s28, 0
      %p349 = por %p347, %p348
      %p350 = scmp.ne.s32.totalorder %s338, %s339
      %p351 = scmp.eq.s32.totalorder %s29, 3
      %p352 = por %p350, %p351
      %p354 = scmp.ne.s32.totalorder %s339, %s353
      %p355 = scmp.eq.s32.totalorder %s29, 0
      %p356 = por %p354, %p355
      %s357 = ssub.s32 %s30, %s42
      %p358 = scmp.eq.s32.totalorder %s357, 0
      %s360 = sadd.s32 %s359, 1
      %s361 = scalar_select %p358, %s359, %s360
      %p364 = pneg %p358
      %p365 = scmp.eq.s32.totalorder %s23, 3
      %p366 = por %p364, %p365
      %p367 = scmp.ne.s32.totalorder %s359, %s362
      %p368 = scmp.eq.s32.totalorder %s23, 0
      %p369 = por %p367, %p368
      %p370 = scmp.ne.s32.totalorder %s359, %s362
      %p371 = scmp.eq.s32.totalorder %s28, 3
      %p372 = por %p370, %p371
      %p373 = scmp.ne.s32.totalorder %s362, %s363
      %p374 = scmp.eq.s32.totalorder %s28, 0
      %p375 = por %p373, %p374
      %p376 = scmp.ne.s32.totalorder %s362, %s363
      %p377 = scmp.eq.s32.totalorder %s29, 3
      %p378 = por %p376, %p377
      %p380 = scmp.ne.s32.totalorder %s363, %s379
      %p381 = scmp.eq.s32.totalorder %s29, 0
      %p382 = por %p380, %p381
      %p383 = scmp.le.s32.totalorder 1, %s23
      %p384 = scmp.lt.s32.totalorder %s23, 5
      %p385 = pnand %p383, %p384
      %p386 = pneg %p385
      // Predicated region
      $region9: #{tree_like_forward.1} parent=5 // pred_check
        _
      $region10: #{tree_like_forward.1} parent=5 // pred_check_branch
        %388 = sbr.rel (%p385) target = $region12
      $region11: #{tree_like_forward.1} parent=5 // pred_region
        %s389 = ssub.s32 %s23, 1
        // Predicated region
        $region13: #{tree_like_forward.1} parent=11 // pred_check
          %p390 = pneg %p160
        $region14: #{tree_like_forward.1} parent=11 // pred_check_branch
          %392 = sbr.rel (%p390) target = $region16
        $region15: #{tree_like_forward.1} parent=11 // pred_region
          _
        $region16: #{tree_like_forward.1} parent=11 // pred_fallthru
          _
        // Predicated region
        $region17: #{tree_like_forward.1} parent=11 // pred_check
          %p393 = pneg %p181
        $region18: #{tree_like_forward.1} parent=11 // pred_check_branch
          %395 = sbr.rel (%p393) target = $region20
        $region19: #{tree_like_forward.1} parent=11 // pred_region
          _
        $region20: #{tree_like_forward.1} parent=11 // pred_fallthru
          _
        // Predicated region
        $region21: #{tree_like_forward.1} parent=11 // pred_check
          %p396 = pneg %p202
        $region22: #{tree_like_forward.1} parent=11 // pred_check_branch
          %398 = sbr.rel (%p396) target = $region24
        $region23: #{tree_like_forward.1} parent=11 // pred_region
          _
        $region24: #{tree_like_forward.1} parent=11 // pred_fallthru
          _
        // Predicated region
        $region25: #{tree_like_forward.1} parent=11 // pred_check
          %p399 = pneg %p223
        $region26: #{tree_like_forward.1} parent=11 // pred_check_branch
          %401 = sbr.rel (%p399) target = $region28
        $region27: #{tree_like_forward.1} parent=11 // pred_region
          _
        $region28: #{tree_like_forward.1} parent=11 // pred_fallthru
          _
        // Predicated region
        $region29: #{tree_like_forward.1} parent=11 // pred_check
          %p402 = pneg %p244
        $region30: #{tree_like_forward.1} parent=11 // pred_check_branch
          %404 = sbr.rel (%p402) target = $region32
        $region31: #{tree_like_forward.1} parent=11 // pred_region
          %406 = vsyncadd [#allocation4], 0
          %s407 = sshll.u32 %s8, 4
          %s408 = int_to_ptr.hbm [resolvable:$true] %s407
          %s409 = sshll.u32 [#allocation3], 4
          %s410 = int_to_ptr.vmem [resolvable:$true] %s409
          %415 = dma.hbm_to_vmem [thread:$0]  %s408, 2048, %s410, [#allocation4], 128, 128, 8
        $region32: #{tree_like_forward.1} parent=11 // pred_fallthru
          _
        // Predicated region
        $region33: #{tree_like_forward.1} parent=11 // pred_check
          %p416 = pneg %p265
        $region34: #{tree_like_forward.1} parent=11 // pred_check_branch
          %418 = sbr.rel (%p416) target = $region36
        $region35: #{tree_like_forward.1} parent=11 // pred_region
          _
        $region36: #{tree_like_forward.1} parent=11 // pred_fallthru
          _
        // Predicated region
        $region37: #{tree_like_forward.1} parent=11 // pred_check
          %p419 = pneg %p286
        $region38: #{tree_like_forward.1} parent=11 // pred_check_branch
          %421 = sbr.rel (%p419) target = $region40
        $region39: #{tree_like_forward.1} parent=11 // pred_region
          %423 = vsyncadd [#allocation6], 0
          %s424 = sshll.u32 %s10, 4
          %s425 = int_to_ptr.hbm [resolvable:$true] %s424
          %s426 = sshll.u32 [#allocation5], 4
          %s427 = int_to_ptr.vmem [resolvable:$true] %s426
          %432 = dma.hbm_to_vmem [thread:$0]  %s425, 1024, %s427, [#allocation6], 64, 64, 4
        $region40: #{tree_like_forward.1} parent=11 // pred_fallthru
          _
        // Predicated region
        $region41: #{tree_like_forward.1} parent=11 // pred_check
          %p433 = pneg %p307
        $region42: #{tree_like_forward.1} parent=11 // pred_check_branch
          %435 = sbr.rel (%p433) target = $region44
        $region43: #{tree_like_forward.1} parent=11 // pred_region
          _
        $region44: #{tree_like_forward.1} parent=11 // pred_fallthru
          _
        // Predicated region
        $region45: #{tree_like_forward.1} parent=11 // pred_check
          %p436 = pneg %p328
        $region46: #{tree_like_forward.1} parent=11 // pred_check_branch
          %438 = sbr.rel (%p436) target = $region48
        $region47: #{tree_like_forward.1} parent=11 // pred_region
          %440 = vsyncadd [#allocation6], 0
          %s442 = sshll.u32 %s12, 4
          %s443 = int_to_ptr.hbm [resolvable:$true] %s442
          %s444 = sshll.u32 [#allocation7], 4
          %s445 = int_to_ptr.vmem [resolvable:$true] %s444
          %447 = dma.hbm_to_vmem [thread:$0]  %s443, 128, %s445, [#allocation6]
        $region48: #{tree_like_forward.1} parent=11 // pred_fallthru
          _
        // Predicated region
        $region49: #{tree_like_forward.1} parent=11 // pred_check
          %p448 = pneg %p349
        $region50: #{tree_like_forward.1} parent=11 // pred_check_branch
          %450 = sbr.rel (%p448) target = $region52
        $region51: #{tree_like_forward.1} parent=11 // pred_region
          %452 = vsyncadd [#allocation9], 0
          %s454 = sshll.u32 %s13, 4
          %s455 = int_to_ptr.hbm [resolvable:$true] %s454
          %s456 = sshll.u32 [#allocation8], 4
          %s457 = int_to_ptr.vmem [resolvable:$true] %s456
          %459 = dma.hbm_to_vmem [thread:$0]  %s455, 128, %s457, [#allocation9]
        $region52: #{tree_like_forward.1} parent=11 // pred_fallthru
          _
      $region12: #{tree_like_forward.1} parent=5 // pred_fallthru
        _
      %p460 = scmp.lt.s32.totalorder %s23, 4
      // Predicated region
      $region53: #{tree_like_forward.1} parent=5 // pred_check
        %p461 = pneg %p460
      $region54: #{tree_like_forward.1} parent=5 // pred_check_branch
        %463 = sbr.rel (%p461) target = $region56
      $region55: #{tree_like_forward.1} parent=5 // pred_region
        // Predicated region
        $region57: #{tree_like_forward.1} parent=55 // pred_check
          %p464 = pneg %p55
        $region58: #{tree_like_forward.1} parent=55 // pred_check_branch
          %466 = sbr.rel (%p464) target = $region60
        $region59: #{tree_like_forward.1} parent=55 // pred_region
          %s467 = smul.u32 2, %s30
          %p468 = scmp.lt.s32.totalorder %s467, 3
          %s469 = scalar_select %p468, %s467, 3
          %s470 = smul.addr %s469, 8
          %s471 = scalar_lea.vmem %s0, %s470
          %s472 = smul.u32 2, %s30
        $region60: #{tree_like_forward.1} parent=55 // pred_fallthru
          _
        // Predicated region
        $region61: #{tree_like_forward.1} parent=55 // pred_check
          %p473 = pneg %p81
        $region62: #{tree_like_forward.1} parent=55 // pred_check_branch
          %475 = sbr.rel (%p473) target = $region64
        $region63: #{tree_like_forward.1} parent=55 // pred_region
          %s476 = smul.u32 2, %s30
          %p477 = scmp.lt.s32.totalorder %s476, 3
          %s478 = scalar_select %p477, %s476, 3
          %s479 = smul.addr %s478, 8
          %s480 = scalar_lea.vmem %s1, %s479
          %s481 = smul.u32 2, %s30
        $region64: #{tree_like_forward.1} parent=55 // pred_fallthru
          _
        // Predicated region
        $region65: #{tree_like_forward.1} parent=55 // pred_check
          %p482 = pneg %p107
        $region66: #{tree_like_forward.1} parent=55 // pred_check_branch
          %484 = sbr.rel (%p482) target = $region68
        $region67: #{tree_like_forward.1} parent=55 // pred_region
          %s485 = smul.u32 2, %s30
          %p486 = scmp.lt.s32.totalorder %s485, 3
          %s487 = scalar_select %p486, %s485, 3
          %s488 = smul.addr %s487, 4
          %s489 = scalar_lea.vmem %s2, %s488
          %s490 = smul.u32 2, %s30
        $region68: #{tree_like_forward.1} parent=55 // pred_fallthru
          _
        // Predicated region
        $region69: #{tree_like_forward.1} parent=55 // pred_check
          %p491 = pneg %p133
        $region70: #{tree_like_forward.1} parent=55 // pred_check_branch
          %493 = sbr.rel (%p491) target = $region72
        $region71: #{tree_like_forward.1} parent=55 // pred_region
          %s494 = smul.u32 2, %s30
          %p495 = scmp.lt.s32.totalorder %s494, 3
          %s496 = scalar_select %p495, %s494, 3
          %s497 = smul.addr %s496, 4
          %s498 = scalar_lea.vmem %s3, %s497
          %s499 = smul.u32 2, %s30
        $region72: #{tree_like_forward.1} parent=55 // pred_fallthru
          _
      $region56: #{tree_like_forward.1} parent=5 // pred_fallthru
        _
      %p500 = scmp.le.s32.totalorder 1, %s23
      %p501 = scmp.lt.s32.totalorder %s23, 5
      %p502 = pnand %p500, %p501
      %p503 = pneg %p502
      // Predicated region
      $region73: #{tree_like_forward.1} parent=5 // pred_check
        _
      $region74: #{tree_like_forward.1} parent=5 // pred_check_branch
        %505 = sbr.rel (%p502) target = $region76
      $region75: #{tree_like_forward.1} parent=5 // pred_region
        %s506 = ssub.s32 %s23, 1
        // Predicated region
        $region77: #{tree_like_forward.1} parent=75 // pred_check
          %p507 = pneg %p244
        $region78: #{tree_like_forward.1} parent=75 // pred_check_branch
          %509 = sbr.rel (%p507) target = $region80
        $region79: #{tree_like_forward.1} parent=75 // pred_region
          %511 = dma.done [#allocation4], 2048
        $region80: #{tree_like_forward.1} parent=75 // pred_fallthru
          _
        // Predicated region
        $region81: #{tree_like_forward.1} parent=75 // pred_check
          %p512 = pneg %p286
        $region82: #{tree_like_forward.1} parent=75 // pred_check_branch
          %514 = sbr.rel (%p512) target = $region84
        $region83: #{tree_like_forward.1} parent=75 // pred_region
          %516 = dma.done [#allocation6], 1024
        $region84: #{tree_like_forward.1} parent=75 // pred_fallthru
          _
        // Predicated region
        $region85: #{tree_like_forward.1} parent=75 // pred_check
          %p517 = pneg %p328
        $region86: #{tree_like_forward.1} parent=75 // pred_check_branch
          %519 = sbr.rel (%p517) target = $region88
        $region87: #{tree_like_forward.1} parent=75 // pred_region
          %521 = dma.done [#allocation6], 128
        $region88: #{tree_like_forward.1} parent=75 // pred_fallthru
          _
        // Predicated region
        $region89: #{tree_like_forward.1} parent=75 // pred_check
          %p522 = pneg %p349
        $region90: #{tree_like_forward.1} parent=75 // pred_check_branch
          %524 = sbr.rel (%p522) target = $region92
        $region91: #{tree_like_forward.1} parent=75 // pred_region
          %526 = dma.done [#allocation9], 128
        $region92: #{tree_like_forward.1} parent=75 // pred_fallthru
          _
        %s527 = smul.u32 2, %s32
        %p528 = scmp.lt.s32.totalorder %s527, 3
        %s529 = scalar_select %p528, %s527, 3
        %s530 = smul.addr %s529, 8
        %s531 = scalar_lea.vmem %s0, %s530
        %p532 = pneg %p61
        %p533 = pneg %p58
        %s534 = smul.u32 2, %s32
        %p535 = scmp.lt.s32.totalorder %s534, 3
        %s536 = scalar_select %p535, %s534, 3
        %s537 = smul.addr %s536, 8
        %s538 = scalar_lea.vmem %s1, %s537
        %p539 = pneg %p87
        %p540 = pneg %p84
        %s541 = smul.u32 2, %s32
        %p542 = scmp.lt.s32.totalorder %s541, 3
        %s543 = scalar_select %p542, %s541, 3
        %s544 = smul.addr %s543, 4
        %s545 = scalar_lea.vmem %s2, %s544
        %p546 = pneg %p113
        %p547 = pneg %p110
        %s548 = smul.u32 2, %s32
        %p549 = scmp.lt.s32.totalorder %s548, 3
        %s550 = scalar_select %p549, %s548, 3
        %s551 = smul.addr %s550, 4
        %s552 = scalar_lea.vmem %s3, %s551
        %p553 = pneg %p139
        %p554 = pneg %p136
        %p555 = pneg %p160
        %p556 = pneg %p157
        %p557 = pneg %p181
        %p558 = pneg %p178
        %p559 = pneg %p202
        %p560 = pneg %p199
        %p561 = pneg %p223
        %p562 = pneg %p220
        %p563 = pneg %p244
        %p564 = pneg %p241
        %p565 = pneg %p265
        %p566 = pneg %p262
        %p567 = pneg %p286
        %p568 = pneg %p283
        %p569 = pneg %p307
        %p570 = pneg %p304
        %p571 = pneg %p328
        %p572 = pneg %p325
        %p573 = pneg %p349
        %p574 = pneg %p346
        %p575 = pneg %p375
        %p576 = pneg %p372
        %s577 = smul.u32 2, %s32
        %p578 = scmp.lt.s32.totalorder %s577, 3
        %s579 = scalar_select %p578, %s577, 3
        %s580 = smul.addr %s579, 8
        %s581 = scalar_lea.vmem %s14, %s580
        %s582 = smul.u32 2, %s32
        %p583 = scmp.lt.s32.totalorder %s582, 3
        %s584 = scalar_select %p583, %s582, 3
        %s585 = smul.addr %s584, 8
        %s586 = scalar_lea.vmem %s0, %s585
        %s587 = smul.u32 2, %s32
        %s588 = smul.u32 2, %s32
        %p589 = scmp.lt.s32.totalorder %s588, 3
        %s590 = scalar_select %p589, %s588, 3
        %s591 = smul.addr %s590, 8
        %s592 = scalar_lea.vmem %s1, %s591
        %s593 = smul.u32 2, %s32
        %s594 = smul.u32 2, %s32
        %p595 = scmp.lt.s32.totalorder %s594, 3
        %s596 = scalar_select %p595, %s594, 3
        %s597 = smul.addr %s596, 4
        %s598 = scalar_lea.vmem %s2, %s597
        %s599 = smul.u32 2, %s32
        %s600 = smul.u32 2, %s32
        %p601 = scmp.lt.s32.totalorder %s600, 3
        %s602 = scalar_select %p601, %s600, 3
        %s603 = smul.addr %s602, 4
        %s604 = scalar_lea.vmem %s3, %s603
        %s605 = smul.u32 2, %s32
        %s606 = smul.u32 2, %s32
        %p607 = scmp.lt.s32.totalorder %s606, 3
        %s608 = scalar_select %p607, %s606, 3
        %s609 = smul.addr %s608, 8
        %s610 = scalar_lea.vmem %s14, %s609
        %s611 = smul.u32 2, %s32
        %p612 = scmp.eq.s32.totalorder %s33, 1
        // Predicated region
        $region93: #{tree_like_forward.1} parent=75 // pred_check
          %p613 = pneg %p612
        $region94: #{tree_like_forward.1} parent=75 // pred_check_branch
          %615 = sbr.rel (%p613) target = $region96
        $region95: #{tree_like_forward.1} parent=75 // pred_region
          %v616 = vld [vmem:[#allocation2] sm:$0xf]
          %v617 = vld [vmem:[#allocation2 + $0x4] sm:$0xf]
          %v618 = vld [vmem:[%s586] sm:$0xff]
          %v619 = vld [vmem:[%s586 + $0x8] sm:$0xff]
          %vm620 = vcmp.ne.f32.partialorder %v618, 0.0
          %vm621 = vcmp.ne.f32.partialorder %v619, 0.0
          %v622 = vld [vmem:[%s598] sm:$0xf]
          %v623 = vld [vmem:[%s598 + $0x4] sm:$0xf]
          %v624 = vsel %vm620, 1, 0
          %v625 = vsel %vm621, 1, 0
          %626 = vset.pattern.permute.xlu0 0
          %627 = vperm.xlu0 %626, %v624
          %v628 = vpop.permute.xlu0 %627
          %629 = vset.pattern.permute.xlu0 0
          %630 = vperm.xlu0 %629, %v625
          %v631 = vpop.permute.xlu0 %630
          %vm632 = vcmp.eq.s32.totalorder %v628, 1
          %vm633 = vcmp.eq.s32.totalorder %v631, 1
          %vm634 = vmpackc.low %vm632, %vm632
          %vm635 = vmpackc.low %vm633, %vm633
          %v636 = vsel %vm634, %v616, %v622
          %v637 = vsel %vm635, %v617, %v623
          %v638 = vld [vmem:[%s604] sm:$0xf]
          %v639 = vld [vmem:[%s604 + $0x4] sm:$0xf]
          %v640 = vsel %vm634, %v616, %v638
          %v641 = vsel %vm635, %v617, %v639
        $region96: #{tree_like_forward.1} parent=75 // pred_fallthru
          %v642 = vphi 0, %v636
          %v643 = vphi 0, %v637
          %v644 = vphi 0, %v640
          %v645 = vphi 0, %v641
        %p646 = pneg %p612
        // Predicated region
        $region97: #{tree_like_forward.1} parent=75 // pred_check
          _
        $region98: #{tree_like_forward.1} parent=75 // pred_check_branch
          %648 = sbr.rel (%p612) target = $region100
        $region99: #{tree_like_forward.1} parent=75 // pred_region
          %v649 = vld [vmem:[%s598] sm:$0xf]
          %v650 = vld [vmem:[%s598 + $0x4] sm:$0xf]
          %v651 = vld [vmem:[%s604] sm:$0xf]
          %v652 = vld [vmem:[%s604 + $0x4] sm:$0xf]
        $region100: #{tree_like_forward.1} parent=75 // pred_fallthru
          %v653 = vphi %v642, %v649
          %v654 = vphi %v643, %v650
          %v655 = vphi %v644, %v651
          %v656 = vphi %v645, %v652
        %v657 = vld [vmem:[#allocation7] sm:$0x1f]
        %v658 = vld [vmem:[#allocation8] sm:$0x1f]
        %v659 = vld [vmem:[%s4] sm:$0xff]
        %v660 = vld [vmem:[%s4 + $0x8] sm:$0xff]
        %v661 = vld [vmem:[%s4 + $0x10] sm:$0xff]
        %v662 = vld [vmem:[%s4 + $0x18] sm:$0xff]
        %v663 = vld [vmem:[%s4 + $0x20] sm:$0xff]
        %v664 = vld [vmem:[%s4 + $0x28] sm:$0xff]
        %v665 = vld [vmem:[%s4 + $0x30] sm:$0xff]
        %v666 = vld [vmem:[%s4 + $0x38] sm:$0xff]
        %v667 = vld [vmem:[%s4 + $0x40] sm:$0xff]
        %v668 = vld [vmem:[%s4 + $0x48] sm:$0xff]
        %v669 = vld [vmem:[%s4 + $0x50] sm:$0xff]
        %v670 = vld [vmem:[%s4 + $0x58] sm:$0xff]
        %v671 = vld [vmem:[%s4 + $0x60] sm:$0xff]
        %v672 = vld [vmem:[%s4 + $0x68] sm:$0xff]
        %v673 = vld [vmem:[%s4 + $0x70] sm:$0xff]
        %v674 = vld [vmem:[%s4 + $0x78] sm:$0xff]
        %v675 = vld [vmem:[%s5] sm:$0x3]
        %v677 = vperm.slane %v675, 0
        %v678 = vperm.slane %v675, 1
        %v683 = vunpack.c.l.b16 %v653
        %v684 = vunpack.c.l.b16 %v654
        %v685 = vpack.c.b16 %v684, %v683
        %v703 = vunpack.c.l.b16 %v659
        %v704 = vunpack.c.h.b16 %v659
        %v705 = vunpack.c.l.b16 %v660
        %v706 = vunpack.c.h.b16 %v660
        %v707 = vunpack.c.l.b16 %v661
        %v708 = vunpack.c.h.b16 %v661
        %v709 = vunpack.c.l.b16 %v662
        %v710 = vunpack.c.h.b16 %v662
        %v711 = vunpack.c.l.b16 %v663
        %v712 = vunpack.c.h.b16 %v663
        %v713 = vunpack.c.l.b16 %v664
        %v714 = vunpack.c.h.b16 %v664
        %v715 = vunpack.c.l.b16 %v665
        %v716 = vunpack.c.h.b16 %v665
        %v717 = vunpack.c.l.b16 %v666
        %v718 = vunpack.c.h.b16 %v666
        %v719 = vunpack.c.l.b16 %v667
        %v720 = vunpack.c.h.b16 %v667
        %v721 = vunpack.c.l.b16 %v668
        %v722 = vunpack.c.h.b16 %v668
        %v723 = vunpack.c.l.b16 %v669
        %v724 = vunpack.c.h.b16 %v669
        %v725 = vunpack.c.l.b16 %v670
        %v726 = vunpack.c.h.b16 %v670
        %v727 = vunpack.c.l.b16 %v671
        %v728 = vunpack.c.h.b16 %v671
        %v729 = vunpack.c.l.b16 %v672
        %v730 = vunpack.c.h.b16 %v672
        %v731 = vunpack.c.l.b16 %v673
        %v732 = vunpack.c.h.b16 %v673
        %v733 = vunpack.c.l.b16 %v674
        %v734 = vunpack.c.h.b16 %v674
        %v735 = vpack.c.b16 %v705, %v703
        %v736 = vpack.c.b16 %v706, %v704
        %v737 = vpack.c.b16 %v709, %v707
        %v738 = vpack.c.b16 %v710, %v708
        %v739 = vpack.c.b16 %v713, %v711
        %v740 = vpack.c.b16 %v714, %v712
        %v741 = vpack.c.b16 %v717, %v715
        %v742 = vpack.c.b16 %v718, %v716
        %v743 = vpack.c.b16 %v721, %v719
        %v744 = vpack.c.b16 %v722, %v720
        %v745 = vpack.c.b16 %v725, %v723
        %v746 = vpack.c.b16 %v726, %v724
        %v747 = vpack.c.b16 %v729, %v727
        %v748 = vpack.c.b16 %v730, %v728
        %v749 = vpack.c.b16 %v733, %v731
        %v750 = vpack.c.b16 %v734, %v732
        %767 = vmatpush.bf16.msra.mxu0 %v749
        %768 = vmatpush.bf16.msra.mxu0 %v747
        %769 = vmatpush.bf16.msra.mxu0 %v745
        %770 = vmatpush.bf16.msra.mxu0 %v743
        %771 = vmatpush.bf16.msra.mxu0 %v741
        %772 = vmatpush.bf16.msra.mxu0 %v739
        %773 = vmatpush.bf16.msra.mxu0 %v737
        %774 = vmatpush.bf16.msra.mxu0 %v735
        %775 = vmatmul.bf16.gmra.mxu0 %v685
        %v776 = vpop.f32.mrf.mxu0
        %v777 = vadd.f32 %v677, %v776
        %v778 = vpop.f32.mrf.mxu0
        %v779 = vadd.f32 %v677, %v778
        %780 = vdwg.mxu0
        %781 = vmatpush.bf16.msra.mxu0 %v750
        %782 = vmatpush.bf16.msra.mxu0 %v748
        %783 = vmatpush.bf16.msra.mxu0 %v746
        %784 = vmatpush.bf16.msra.mxu0 %v744
        %785 = vmatpush.bf16.msra.mxu0 %v742
        %786 = vmatpush.bf16.msra.mxu0 %v740
        %787 = vmatpush.bf16.msra.mxu0 %v738
        %788 = vmatpush.bf16.msra.mxu0 %v736
        %789 = vmatmul.bf16.gmra.mxu0 %v685
        %v790 = vpop.f32.mrf.mxu0
        %v791 = vadd.f32 %v678, %v790
        %v792 = vpop.f32.mrf.mxu0
        %v793 = vadd.f32 %v678, %v792
        %794 = vdwg.mxu0
        %v795 = vld [vmem:[%s6] sm:$0xff]
        %v796 = vld [vmem:[%s6 + $0x8] sm:$0xff]
        %v797 = vld [vmem:[%s6 + $0x10] sm:$0xff]
        %v798 = vld [vmem:[%s6 + $0x18] sm:$0xff]
        %v799 = vld [vmem:[%s6 + $0x20] sm:$0xff]
        %v800 = vld [vmem:[%s6 + $0x28] sm:$0xff]
        %v801 = vld [vmem:[%s6 + $0x30] sm:$0xff]
        %v802 = vld [vmem:[%s6 + $0x38] sm:$0xff]
        %v803 = vld [vmem:[%s6 + $0x40] sm:$0xff]
        %v804 = vld [vmem:[%s6 + $0x48] sm:$0xff]
        %v805 = vld [vmem:[%s6 + $0x50] sm:$0xff]
        %v806 = vld [vmem:[%s6 + $0x58] sm:$0xff]
        %v807 = vld [vmem:[%s6 + $0x60] sm:$0xff]
        %v808 = vld [vmem:[%s6 + $0x68] sm:$0xff]
        %v809 = vld [vmem:[%s6 + $0x70] sm:$0xff]
        %v810 = vld [vmem:[%s6 + $0x78] sm:$0xff]
        %v811 = vld [vmem:[%s7] sm:$0x3]
        %v813 = vperm.slane %v811, 0
        %v814 = vperm.slane %v811, 1
        %v819 = vunpack.c.l.b16 %v655
        %v820 = vunpack.c.l.b16 %v656
        %v821 = vpack.c.b16 %v820, %v819
        %v839 = vunpack.c.l.b16 %v795
        %v840 = vunpack.c.h.b16 %v795
        %v841 = vunpack.c.l.b16 %v796
        %v842 = vunpack.c.h.b16 %v796
        %v843 = vunpack.c.l.b16 %v797
        %v844 = vunpack.c.h.b16 %v797
        %v845 = vunpack.c.l.b16 %v798
        %v846 = vunpack.c.h.b16 %v798
        %v847 = vunpack.c.l.b16 %v799
        %v848 = vunpack.c.h.b16 %v799
        %v849 = vunpack.c.l.b16 %v800
        %v850 = vunpack.c.h.b16 %v800
        %v851 = vunpack.c.l.b16 %v801
        %v852 = vunpack.c.h.b16 %v801
        %v853 = vunpack.c.l.b16 %v802
        %v854 = vunpack.c.h.b16 %v802
        %v855 = vunpack.c.l.b16 %v803
        %v856 = vunpack.c.h.b16 %v803
        %v857 = vunpack.c.l.b16 %v804
        %v858 = vunpack.c.h.b16 %v804
        %v859 = vunpack.c.l.b16 %v805
        %v860 = vunpack.c.h.b16 %v805
        %v861 = vunpack.c.l.b16 %v806
        %v862 = vunpack.c.h.b16 %v806
        %v863 = vunpack.c.l.b16 %v807
        %v864 = vunpack.c.h.b16 %v807
        %v865 = vunpack.c.l.b16 %v808
        %v866 = vunpack.c.h.b16 %v808
        %v867 = vunpack.c.l.b16 %v809
        %v868 = vunpack.c.h.b16 %v809
        %v869 = vunpack.c.l.b16 %v810
        %v870 = vunpack.c.h.b16 %v810
        %v871 = vpack.c.b16 %v841, %v839
        %v872 = vpack.c.b16 %v842, %v840
        %v873 = vpack.c.b16 %v845, %v843
        %v874 = vpack.c.b16 %v846, %v844
        %v875 = vpack.c.b16 %v849, %v847
        %v876 = vpack.c.b16 %v850, %v848
        %v877 = vpack.c.b16 %v853, %v851
        %v878 = vpack.c.b16 %v854, %v852
        %v879 = vpack.c.b16 %v857, %v855
        %v880 = vpack.c.b16 %v858, %v856
        %v881 = vpack.c.b16 %v861, %v859
        %v882 = vpack.c.b16 %v862, %v860
        %v883 = vpack.c.b16 %v865, %v863
        %v884 = vpack.c.b16 %v866, %v864
        %v885 = vpack.c.b16 %v869, %v867
        %v886 = vpack.c.b16 %v870, %v868
        %903 = vmatpush.bf16.msra.mxu0 %v885
        %904 = vmatpush.bf16.msra.mxu0 %v883
        %905 = vmatpush.bf16.msra.mxu0 %v881
        %906 = vmatpush.bf16.msra.mxu0 %v879
        %907 = vmatpush.bf16.msra.mxu0 %v877
        %908 = vmatpush.bf16.msra.mxu0 %v875
        %909 = vmatpush.bf16.msra.mxu0 %v873
        %910 = vmatpush.bf16.msra.mxu0 %v871
        %911 = vmatmul.bf16.gmra.mxu0 %v821
        %v912 = vpop.f32.mrf.mxu0
        %v913 = vadd.f32 %v813, %v912
        %v914 = vpop.f32.mrf.mxu0
        %v915 = vadd.f32 %v813, %v914
        %916 = vdwg.mxu0
        %917 = vmatpush.bf16.msra.mxu0 %v886
        %918 = vmatpush.bf16.msra.mxu0 %v884
        %919 = vmatpush.bf16.msra.mxu0 %v882
        %920 = vmatpush.bf16.msra.mxu0 %v880
        %921 = vmatpush.bf16.msra.mxu0 %v878
        %922 = vmatpush.bf16.msra.mxu0 %v876
        %923 = vmatpush.bf16.msra.mxu0 %v874
        %924 = vmatpush.bf16.msra.mxu0 %v872
        %925 = vmatmul.bf16.gmra.mxu0 %v821
        %v926 = vpop.f32.mrf.mxu0
        %v927 = vadd.f32 %v814, %v926
        %v928 = vpop.f32.mrf.mxu0
        %v929 = vadd.f32 %v814, %v928
        %930 = vdwg.mxu0
        %v931 = vmul.f32 %v913, %v777
        %v932 = vmul.f32 %v915, %v779
        %v933 = vpack.c.bf16 %v932, %v931
        %v934 = vld [vmem:[#allocation3] sm:$0xff]
        %v935 = vld [vmem:[#allocation3 + $0x8] sm:$0xff]
        %v936 = vld [vmem:[#allocation3 + $0x10] sm:$0xff]
        %v937 = vld [vmem:[#allocation3 + $0x18] sm:$0xff]
        %v938 = vld [vmem:[#allocation3 + $0x20] sm:$0xff]
        %v939 = vld [vmem:[#allocation3 + $0x28] sm:$0xff]
        %v940 = vld [vmem:[#allocation3 + $0x30] sm:$0xff]
        %v941 = vld [vmem:[#allocation3 + $0x38] sm:$0xff]
        %v942 = vld [vmem:[#allocation3 + $0x40] sm:$0xff]
        %v943 = vld [vmem:[#allocation3 + $0x48] sm:$0xff]
        %v944 = vld [vmem:[#allocation3 + $0x50] sm:$0xff]
        %v945 = vld [vmem:[#allocation3 + $0x58] sm:$0xff]
        %v946 = vld [vmem:[#allocation3 + $0x60] sm:$0xff]
        %v947 = vld [vmem:[#allocation3 + $0x68] sm:$0xff]
        %v948 = vld [vmem:[#allocation3 + $0x70] sm:$0xff]
        %v949 = vld [vmem:[#allocation3 + $0x78] sm:$0xff]
        %v950 = vld [vmem:[%s9] sm:$0x3]
        %v952 = vperm.slane %v950, 0
        %v953 = vperm.slane %v950, 1
        %v972 = vunpack.c.l.b16 %v934
        %v973 = vunpack.c.h.b16 %v934
        %v974 = vunpack.c.l.b16 %v935
        %v975 = vunpack.c.h.b16 %v935
        %v976 = vunpack.c.l.b16 %v936
        %v977 = vunpack.c.h.b16 %v936
        %v978 = vunpack.c.l.b16 %v937
        %v979 = vunpack.c.h.b16 %v937
        %v980 = vunpack.c.l.b16 %v938
        %v981 = vunpack.c.h.b16 %v938
        %v982 = vunpack.c.l.b16 %v939
        %v983 = vunpack.c.h.b16 %v939
        %v984 = vunpack.c.l.b16 %v940
        %v985 = vunpack.c.h.b16 %v940
        %v986 = vunpack.c.l.b16 %v941
        %v987 = vunpack.c.h.b16 %v941
        %v988 = vunpack.c.l.b16 %v942
        %v989 = vunpack.c.h.b16 %v942
        %v990 = vunpack.c.l.b16 %v943
        %v991 = vunpack.c.h.b16 %v943
        %v992 = vunpack.c.l.b16 %v944
        %v993 = vunpack.c.h.b16 %v944
        %v994 = vunpack.c.l.b16 %v945
        %v995 = vunpack.c.h.b16 %v945
        %v996 = vunpack.c.l.b16 %v946
        %v997 = vunpack.c.h.b16 %v946
        %v998 = vunpack.c.l.b16 %v947
        %v999 = vunpack.c.h.b16 %v947
        %v1000 = vunpack.c.l.b16 %v948
        %v1001 = vunpack.c.h.b16 %v948
        %v1002 = vunpack.c.l.b16 %v949
        %v1003 = vunpack.c.h.b16 %v949
        %v1004 = vpack.c.b16 %v974, %v972
        %v1005 = vpack.c.b16 %v975, %v973
        %v1006 = vpack.c.b16 %v978, %v976
        %v1007 = vpack.c.b16 %v979, %v977
        %v1008 = vpack.c.b16 %v982, %v980
        %v1009 = vpack.c.b16 %v983, %v981
        %v1010 = vpack.c.b16 %v986, %v984
        %v1011 = vpack.c.b16 %v987, %v985
        %v1012 = vpack.c.b16 %v990, %v988
        %v1013 = vpack.c.b16 %v991, %v989
        %v1014 = vpack.c.b16 %v994, %v992
        %v1015 = vpack.c.b16 %v995, %v993
        %v1016 = vpack.c.b16 %v998, %v996
        %v1017 = vpack.c.b16 %v999, %v997
        %v1018 = vpack.c.b16 %v1002, %v1000
        %v1019 = vpack.c.b16 %v1003, %v1001
        %1036 = vmatpush.bf16.msra.mxu0 %v1018
        %1037 = vmatpush.bf16.msra.mxu0 %v1016
        %1038 = vmatpush.bf16.msra.mxu0 %v1014
        %1039 = vmatpush.bf16.msra.mxu0 %v1012
        %1040 = vmatpush.bf16.msra.mxu0 %v1010
        %1041 = vmatpush.bf16.msra.mxu0 %v1008
        %1042 = vmatpush.bf16.msra.mxu0 %v1006
        %1043 = vmatpush.bf16.msra.mxu0 %v1004
        %1044 = vmatmul.bf16.gmra.mxu0 %v933
        %v1045 = vpop.f32.mrf.mxu0
        %v1046 = vadd.f32 %v952, %v1045
        %v1047 = vpop.f32.mrf.mxu0
        %v1048 = vadd.f32 %v952, %v1047
        %1049 = vdwg.mxu0
        %1050 = vmatpush.bf16.msra.mxu0 %v1019
        %1051 = vmatpush.bf16.msra.mxu0 %v1017
        %1052 = vmatpush.bf16.msra.mxu0 %v1015
        %1053 = vmatpush.bf16.msra.mxu0 %v1013
        %1054 = vmatpush.bf16.msra.mxu0 %v1011
        %1055 = vmatpush.bf16.msra.mxu0 %v1009
        %1056 = vmatpush.bf16.msra.mxu0 %v1007
        %1057 = vmatpush.bf16.msra.mxu0 %v1005
        %1058 = vmatmul.bf16.gmra.mxu0 %v933
        %v1059 = vpop.f32.mrf.mxu0
        %v1060 = vadd.f32 %v953, %v1059
        %v1061 = vpop.f32.mrf.mxu0
        %v1062 = vadd.f32 %v953, %v1061
        %1063 = vdwg.mxu0
        %1064 = vadd.xlane.f32.xlu0 %v1046
        %v1065 = vpop.xlane.xlu0 %1064
        %1066 = vadd.xlane.f32.xlu0 %v1048
        %v1067 = vpop.xlane.xlu0 %1066
        %v1068 = vmul.f32 %v1046, %v1046
        %v1069 = vmul.f32 %v1048, %v1048
        %1070 = vadd.xlane.f32.xlu0 %v1068
        %v1071 = vpop.xlane.xlu0 %1070
        %1072 = vadd.xlane.f32.xlu0 %v1069
        %v1073 = vpop.xlane.xlu0 %1072
        %v1074 = vmul.f32 %v1065, 0.015625
        %v1075 = vmul.f32 %v1067, 0.015625
        %v1076 = vmul.f32 %v1071, 0.015625
        %v1077 = vmul.f32 %v1073, 0.015625
        %v1078 = vmul.f32 %v1074, %v1074
        %v1079 = vmul.f32 %v1075, %v1075
        %v1080 = vsub.f32 %v1076, %v1078
        %v1081 = vsub.f32 %v1077, %v1079
        %v1082 = vmax.f32 %v1080, 0.0
        %v1083 = vmax.f32 %v1081, 0.0
        %v1084 = vsub.f32 %v1046, %v1074
        %v1085 = vsub.f32 %v1048, %v1075
        %v1086 = vadd.f32 %v1082, 1e-05
        %v1087 = vadd.f32 %v1083, 1e-05
        %v1088 = vrsqrt.pop %v1086
        %v1089 = vmul.f32 %v1088, %v1086
        %v1090 = vmul.f32 %v1089, %v1088
        %v1091 = vmul.f32 0.5, %v1090
        %v1092 = vsub.f32 1.5, %v1091
        %v1093 = vmul.f32 %v1088, %v1092
        %vm1094 = vweird.f32 %v1086
        %vm1095 = vweird.f32 %v1088
        %vm1096 = vmor %vm1094, %vm1095
        %v1097 = vsel %vm1096, %v1088, %v1093
        %v1098 = vrsqrt.pop %v1087
        %v1099 = vmul.f32 %v1098, %v1087
        %v1100 = vmul.f32 %v1099, %v1098
        %v1101 = vmul.f32 0.5, %v1100
        %v1102 = vsub.f32 1.5, %v1101
        %v1103 = vmul.f32 %v1098, %v1102
        %vm1104 = vweird.f32 %v1087
        %vm1105 = vweird.f32 %v1098
        %vm1106 = vmor %vm1104, %vm1105
        %v1107 = vsel %vm1106, %v1098, %v1103
        %v1108 = vmul.f32 %v1084, %v1097
        %v1109 = vmul.f32 %v1085, %v1107
        %v1110 = vperm.slane %v657, 0
        %v1111 = vmul.f32 %v1108, %v1110
        %v1112 = vmul.f32 %v1109, %v1110
        %v1113 = vperm.slane %v658, 0
        %v1114 = vadd.f32 %v1111, %v1113
        %v1115 = vadd.f32 %v1112, %v1113
        %v1116 = vxor.u32 %v1114, 2147483648
        %v1117 = vxor.u32 %v1115, 2147483648
        %v1118 = vmul.f32 %v1116, 1.442695
        %v1119 = vpow.pop %v1118
        %v1120 = vmul.f32 %v1117, 1.442695
        %v1121 = vpow.pop %v1120
        %v1122 = vadd.f32 %v1119, 1.0
        %v1123 = vadd.f32 %v1121, 1.0
        %v1124 = vrcp.pop %v1122
        %v1125 = vmul.f32 %v1122, %v1124
        %v1126 = vsub.f32 1.0, %v1125
        %v1127 = vmul.f32 %v1124, %v1126
        %v1128 = vadd.f32 %v1124, %v1127
        %vm1129 = vweird.f32 %v1122
        %vm1130 = vweird.f32 %v1124
        %vm1131 = vmor %vm1129, %vm1130
        %v1132 = vsel %vm1131, %v1124, %v1128
        %v1133 = vand.u32 2147483647, %v1122
        %vm1134 = vcmp.eq.f32.partialorder %v1133, 8.507059e+37
        %v1135 = vand.u32 %v1122, 2147483648
        %v1136 = vor.u32 1.1754944e-38, %v1135
        %v1137 = vsel %vm1134, %v1136, %v1132
        %v1138 = vmul.f32 1.0, %v1137
        %v1139 = vrcp.pop %v1123
        %v1140 = vmul.f32 %v1123, %v1139
        %v1141 = vsub.f32 1.0, %v1140
        %v1142 = vmul.f32 %v1139, %v1141
        %v1143 = vadd.f32 %v1139, %v1142
        %vm1144 = vweird.f32 %v1123
        %vm1145 = vweird.f32 %v1139
        %vm1146 = vmor %vm1144, %vm1145
        %v1147 = vsel %vm1146, %v1139, %v1143
        %v1148 = vand.u32 2147483647, %v1123
        %vm1149 = vcmp.eq.f32.partialorder %v1148, 8.507059e+37
        %v1150 = vand.u32 %v1123, 2147483648
        %v1151 = vor.u32 1.1754944e-38, %v1150
        %v1152 = vsel %vm1149, %v1151, %v1147
        %v1153 = vmul.f32 1.0, %v1152
        %1154 = vadd.xlane.f32.xlu0 %v1060
        %v1155 = vpop.xlane.xlu0 %1154
        %1156 = vadd.xlane.f32.xlu0 %v1062
        %v1157 = vpop.xlane.xlu0 %1156
        %v1158 = vmul.f32 %v1060, %v1060
        %v1159 = vmul.f32 %v1062, %v1062
        %1160 = vadd.xlane.f32.xlu0 %v1158
        %v1161 = vpop.xlane.xlu0 %1160
        %1162 = vadd.xlane.f32.xlu0 %v1159
        %v1163 = vpop.xlane.xlu0 %1162
        %v1164 = vmul.f32 %v1155, 0.015625
        %v1165 = vmul.f32 %v1157, 0.015625
        %v1166 = vmul.f32 %v1161, 0.015625
        %v1167 = vmul.f32 %v1163, 0.015625
        %v1168 = vmul.f32 %v1164, %v1164
        %v1169 = vmul.f32 %v1165, %v1165
        %v1170 = vsub.f32 %v1166, %v1168
        %v1171 = vsub.f32 %v1167, %v1169
        %v1172 = vmax.f32 %v1170, 0.0
        %v1173 = vmax.f32 %v1171, 0.0
        %v1174 = vsub.f32 %v1060, %v1164
        %v1175 = vsub.f32 %v1062, %v1165
        %v1176 = vadd.f32 %v1172, 1e-05
        %v1177 = vadd.f32 %v1173, 1e-05
        %v1178 = vrsqrt.pop %v1176
        %v1179 = vmul.f32 %v1178, %v1176
        %v1180 = vmul.f32 %v1179, %v1178
        %v1181 = vmul.f32 0.5, %v1180
        %v1182 = vsub.f32 1.5, %v1181
        %v1183 = vmul.f32 %v1178, %v1182
        %vm1184 = vweird.f32 %v1176
        %vm1185 = vweird.f32 %v1178
        %vm1186 = vmor %vm1184, %vm1185
        %v1187 = vsel %vm1186, %v1178, %v1183
        %v1188 = vrsqrt.pop %v1177
        %v1189 = vmul.f32 %v1188, %v1177
        %v1190 = vmul.f32 %v1189, %v1188
        %v1191 = vmul.f32 0.5, %v1190
        %v1192 = vsub.f32 1.5, %v1191
        %v1193 = vmul.f32 %v1188, %v1192
        %vm1194 = vweird.f32 %v1177
        %vm1195 = vweird.f32 %v1188
        %vm1196 = vmor %vm1194, %vm1195
        %v1197 = vsel %vm1196, %v1188, %v1193
        %v1198 = vmul.f32 %v1174, %v1187
        %v1199 = vmul.f32 %v1175, %v1197
        %v1200 = vperm.slane %v657, 1
        %v1201 = vmul.f32 %v1198, %v1200
        %v1202 = vmul.f32 %v1199, %v1200
        %v1203 = vperm.slane %v658, 1
        %v1204 = vadd.f32 %v1201, %v1203
        %v1205 = vadd.f32 %v1202, %v1203
        %v1206 = vxor.u32 %v1204, 2147483648
        %v1207 = vxor.u32 %v1205, 2147483648
        %v1208 = vmul.f32 %v1206, 1.442695
        %v1209 = vpow.pop %v1208
        %v1210 = vmul.f32 %v1207, 1.442695
        %v1211 = vpow.pop %v1210
        %v1212 = vadd.f32 %v1209, 1.0
        %v1213 = vadd.f32 %v1211, 1.0
        %v1214 = vrcp.pop %v1212
        %v1215 = vmul.f32 %v1212, %v1214
        %v1216 = vsub.f32 1.0, %v1215
        %v1217 = vmul.f32 %v1214, %v1216
        %v1218 = vadd.f32 %v1214, %v1217
        %vm1219 = vweird.f32 %v1212
        %vm1220 = vweird.f32 %v1214
        %vm1221 = vmor %vm1219, %vm1220
        %v1222 = vsel %vm1221, %v1214, %v1218
        %v1223 = vand.u32 2147483647, %v1212
        %vm1224 = vcmp.eq.f32.partialorder %v1223, 8.507059e+37
        %v1225 = vand.u32 %v1212, 2147483648
        %v1226 = vor.u32 1.1754944e-38, %v1225
        %v1227 = vsel %vm1224, %v1226, %v1222
        %v1228 = vmul.f32 1.0, %v1227
        %v1229 = vrcp.pop %v1213
        %v1230 = vmul.f32 %v1213, %v1229
        %v1231 = vsub.f32 1.0, %v1230
        %v1232 = vmul.f32 %v1229, %v1231
        %v1233 = vadd.f32 %v1229, %v1232
        %vm1234 = vweird.f32 %v1213
        %vm1235 = vweird.f32 %v1229
        %vm1236 = vmor %vm1234, %vm1235
        %v1237 = vsel %vm1236, %v1229, %v1233
        %v1238 = vand.u32 2147483647, %v1213
        %vm1239 = vcmp.eq.f32.partialorder %v1238, 8.507059e+37
        %v1240 = vand.u32 %v1213, 2147483648
        %v1241 = vor.u32 1.1754944e-38, %v1240
        %v1242 = vsel %vm1239, %v1241, %v1237
        %v1243 = vmul.f32 1.0, %v1242
        %1244 = vadd.xlane.f32.xlu0 %v791
        %v1245 = vpop.xlane.xlu0 %1244
        %1246 = vadd.xlane.f32.xlu0 %v793
        %v1247 = vpop.xlane.xlu0 %1246
        %v1248 = vmul.f32 %v791, %v791
        %v1249 = vmul.f32 %v793, %v793
        %1250 = vadd.xlane.f32.xlu0 %v1248
        %v1251 = vpop.xlane.xlu0 %1250
        %1252 = vadd.xlane.f32.xlu0 %v1249
        %v1253 = vpop.xlane.xlu0 %1252
        %v1254 = vmul.f32 %v1245, 0.015625
        %v1255 = vmul.f32 %v1247, 0.015625
        %v1256 = vmul.f32 %v1251, 0.015625
        %v1257 = vmul.f32 %v1253, 0.015625
        %v1258 = vmul.f32 %v1254, %v1254
        %v1259 = vmul.f32 %v1255, %v1255
        %v1260 = vsub.f32 %v1256, %v1258
        %v1261 = vsub.f32 %v1257, %v1259
        %v1262 = vmax.f32 %v1260, 0.0
        %v1263 = vmax.f32 %v1261, 0.0
        %v1264 = vsub.f32 %v791, %v1254
        %v1265 = vsub.f32 %v793, %v1255
        %v1266 = vadd.f32 %v1262, 1e-05
        %v1267 = vadd.f32 %v1263, 1e-05
        %v1268 = vrsqrt.pop %v1266
        %v1269 = vmul.f32 %v1268, %v1266
        %v1270 = vmul.f32 %v1269, %v1268
        %v1271 = vmul.f32 0.5, %v1270
        %v1272 = vsub.f32 1.5, %v1271
        %v1273 = vmul.f32 %v1268, %v1272
        %vm1274 = vweird.f32 %v1266
        %vm1275 = vweird.f32 %v1268
        %vm1276 = vmor %vm1274, %vm1275
        %v1277 = vsel %vm1276, %v1268, %v1273
        %v1278 = vrsqrt.pop %v1267
        %v1279 = vmul.f32 %v1278, %v1267
        %v1280 = vmul.f32 %v1279, %v1278
        %v1281 = vmul.f32 0.5, %v1280
        %v1282 = vsub.f32 1.5, %v1281
        %v1283 = vmul.f32 %v1278, %v1282
        %vm1284 = vweird.f32 %v1267
        %vm1285 = vweird.f32 %v1278
        %vm1286 = vmor %vm1284, %vm1285
        %v1287 = vsel %vm1286, %v1278, %v1283
        %v1288 = vmul.f32 %v1264, %v1277
        %v1289 = vmul.f32 %v1265, %v1287
        %v1290 = vperm.slane %v657, 2
        %v1291 = vmul.f32 %v1288, %v1290
        %v1292 = vmul.f32 %v1289, %v1290
        %v1293 = vperm.slane %v658, 2
        %v1294 = vadd.f32 %v1291, %v1293
        %v1295 = vadd.f32 %v1292, %v1293
        %1296 = vadd.xlane.f32.xlu0 %v927
        %v1297 = vpop.xlane.xlu0 %1296
        %1298 = vadd.xlane.f32.xlu0 %v929
        %v1299 = vpop.xlane.xlu0 %1298
        %v1300 = vmul.f32 %v927, %v927
        %v1301 = vmul.f32 %v929, %v929
        %1302 = vadd.xlane.f32.xlu0 %v1300
        %v1303 = vpop.xlane.xlu0 %1302
        %1304 = vadd.xlane.f32.xlu0 %v1301
        %v1305 = vpop.xlane.xlu0 %1304
        %v1306 = vmul.f32 %v1297, 0.015625
        %v1307 = vmul.f32 %v1299, 0.015625
        %v1308 = vmul.f32 %v1303, 0.015625
        %v1309 = vmul.f32 %v1305, 0.015625
        %v1310 = vmul.f32 %v1306, %v1306
        %v1311 = vmul.f32 %v1307, %v1307
        %v1312 = vsub.f32 %v1308, %v1310
        %v1313 = vsub.f32 %v1309, %v1311
        %v1314 = vmax.f32 %v1312, 0.0
        %v1315 = vmax.f32 %v1313, 0.0
        %v1316 = vsub.f32 %v927, %v1306
        %v1317 = vsub.f32 %v929, %v1307
        %v1318 = vadd.f32 %v1314, 1e-05
        %v1319 = vadd.f32 %v1315, 1e-05
        %v1320 = vrsqrt.pop %v1318
        %v1321 = vmul.f32 %v1320, %v1318
        %v1322 = vmul.f32 %v1321, %v1320
        %v1323 = vmul.f32 0.5, %v1322
        %v1324 = vsub.f32 1.5, %v1323
        %v1325 = vmul.f32 %v1320, %v1324
        %vm1326 = vweird.f32 %v1318
        %vm1327 = vweird.f32 %v1320
        %vm1328 = vmor %vm1326, %vm1327
        %v1329 = vsel %vm1328, %v1320, %v1325
        %v1330 = vrsqrt.pop %v1319
        %v1331 = vmul.f32 %v1330, %v1319
        %v1332 = vmul.f32 %v1331, %v1330
        %v1333 = vmul.f32 0.5, %v1332
        %v1334 = vsub.f32 1.5, %v1333
        %v1335 = vmul.f32 %v1330, %v1334
        %vm1336 = vweird.f32 %v1319
        %vm1337 = vweird.f32 %v1330
        %vm1338 = vmor %vm1336, %vm1337
        %v1339 = vsel %vm1338, %v1330, %v1335
        %v1340 = vmul.f32 %v1316, %v1329
        %v1341 = vmul.f32 %v1317, %v1339
        %v1342 = vperm.slane %v657, 3
        %v1343 = vmul.f32 %v1340, %v1342
        %v1344 = vmul.f32 %v1341, %v1342
        %v1345 = vperm.slane %v658, 3
        %v1346 = vadd.f32 %v1343, %v1345
        %v1347 = vadd.f32 %v1344, %v1345
        %v1348 = vmul.f32 %v1228, %v1294
        %v1349 = vmul.f32 %v1243, %v1295
        %v1350 = vmul.f32 %v1138, %v1346
        %v1351 = vmul.f32 %v1153, %v1347
        %v1352 = vadd.f32 %v1348, %v1350
        %v1353 = vadd.f32 %v1349, %v1351
        %v1354 = vpack.c.bf16 %v1353, %v1352
        %v1355 = vld [vmem:[#allocation5] sm:$0xf]
        %v1356 = vld [vmem:[#allocation5 + $0x4] sm:$0xf]
        %v1357 = vld [vmem:[#allocation5 + $0x8] sm:$0xf]
        %v1358 = vld [vmem:[#allocation5 + $0xc] sm:$0xf]
        %v1359 = vld [vmem:[#allocation5 + $0x10] sm:$0xf]
        %v1360 = vld [vmem:[#allocation5 + $0x14] sm:$0xf]
        %v1361 = vld [vmem:[#allocation5 + $0x18] sm:$0xf]
        %v1362 = vld [vmem:[#allocation5 + $0x1c] sm:$0xf]
        %v1363 = vld [vmem:[#allocation5 + $0x20] sm:$0xf]
        %v1364 = vld [vmem:[#allocation5 + $0x24] sm:$0xf]
        %v1365 = vld [vmem:[#allocation5 + $0x28] sm:$0xf]
        %v1366 = vld [vmem:[#allocation5 + $0x2c] sm:$0xf]
        %v1367 = vld [vmem:[#allocation5 + $0x30] sm:$0xf]
        %v1368 = vld [vmem:[#allocation5 + $0x34] sm:$0xf]
        %v1369 = vld [vmem:[#allocation5 + $0x38] sm:$0xf]
        %v1370 = vld [vmem:[#allocation5 + $0x3c] sm:$0xf]
        %v1371 = vld [vmem:[%s11] sm:$0x1]
        %v1373 = vperm.slane %v1371, 0
        %v1391 = vunpack.c.l.b16 %v1355
        %v1392 = vunpack.c.l.b16 %v1356
        %v1393 = vunpack.c.l.b16 %v1357
        %v1394 = vunpack.c.l.b16 %v1358
        %v1395 = vunpack.c.l.b16 %v1359
        %v1396 = vunpack.c.l.b16 %v1360
        %v1397 = vunpack.c.l.b16 %v1361
        %v1398 = vunpack.c.l.b16 %v1362
        %v1399 = vunpack.c.l.b16 %v1363
        %v1400 = vunpack.c.l.b16 %v1364
        %v1401 = vunpack.c.l.b16 %v1365
        %v1402 = vunpack.c.l.b16 %v1366
        %v1403 = vunpack.c.l.b16 %v1367
        %v1404 = vunpack.c.l.b16 %v1368
        %v1405 = vunpack.c.l.b16 %v1369
        %v1406 = vunpack.c.l.b16 %v1370
        %v1407 = vpack.c.b16 %v1392, %v1391
        %v1408 = vpack.c.b16 %v1394, %v1393
        %v1409 = vpack.c.b16 %v1396, %v1395
        %v1410 = vpack.c.b16 %v1398, %v1397
        %v1411 = vpack.c.b16 %v1400, %v1399
        %v1412 = vpack.c.b16 %v1402, %v1401
        %v1413 = vpack.c.b16 %v1404, %v1403
        %v1414 = vpack.c.b16 %v1406, %v1405
        %1423 = vmatpush.bf16.msra.mxu0 %v1414
        %1424 = vmatpush.bf16.msra.mxu0 %v1413
        %1425 = vmatpush.bf16.msra.mxu0 %v1412
        %1426 = vmatpush.bf16.msra.mxu0 %v1411
        %1427 = vmatpush.bf16.msra.mxu0 %v1410
        %1428 = vmatpush.bf16.msra.mxu0 %v1409
        %1429 = vmatpush.bf16.msra.mxu0 %v1408
        %1430 = vmatpush.bf16.msra.mxu0 %v1407
        %1431 = vmatmul.bf16.gmra.mxu0 %v1354
        %v1432 = vpop.f32.mrf.mxu0
        %v1433 = vadd.f32 %v1373, %v1432
        %v1434 = vpop.f32.mrf.mxu0
        %v1435 = vadd.f32 %v1373, %v1434
        %1436 = vdwg.mxu0
        %1437 = vadd.xlane.f32.xlu0 %v1433
        %v1438 = vpop.xlane.xlu0 %1437
        %1439 = vadd.xlane.f32.xlu0 %v1435
        %v1440 = vpop.xlane.xlu0 %1439
        %v1441 = vmul.f32 %v1433, %v1433
        %v1442 = vmul.f32 %v1435, %v1435
        %1443 = vadd.xlane.f32.xlu0 %v1441
        %v1444 = vpop.xlane.xlu0 %1443
        %1445 = vadd.xlane.f32.xlu0 %v1442
        %v1446 = vpop.xlane.xlu0 %1445
        %v1447 = vmul.f32 %v1438, 0.015625
        %v1448 = vmul.f32 %v1440, 0.015625
        %v1449 = vmul.f32 %v1444, 0.015625
        %v1450 = vmul.f32 %v1446, 0.015625
        %v1451 = vmul.f32 %v1447, %v1447
        %v1452 = vmul.f32 %v1448, %v1448
        %v1453 = vsub.f32 %v1449, %v1451
        %v1454 = vsub.f32 %v1450, %v1452
        %v1455 = vmax.f32 %v1453, 0.0
        %v1456 = vmax.f32 %v1454, 0.0
        %v1457 = vsub.f32 %v1433, %v1447
        %v1458 = vsub.f32 %v1435, %v1448
        %v1459 = vadd.f32 %v1455, 1e-05
        %v1460 = vadd.f32 %v1456, 1e-05
        %v1461 = vrsqrt.pop %v1459
        %v1462 = vmul.f32 %v1461, %v1459
        %v1463 = vmul.f32 %v1462, %v1461
        %v1464 = vmul.f32 0.5, %v1463
        %v1465 = vsub.f32 1.5, %v1464
        %v1466 = vmul.f32 %v1461, %v1465
        %vm1467 = vweird.f32 %v1459
        %vm1468 = vweird.f32 %v1461
        %vm1469 = vmor %vm1467, %vm1468
        %v1470 = vsel %vm1469, %v1461, %v1466
        %v1471 = vrsqrt.pop %v1460
        %v1472 = vmul.f32 %v1471, %v1460
        %v1473 = vmul.f32 %v1472, %v1471
        %v1474 = vmul.f32 0.5, %v1473
        %v1475 = vsub.f32 1.5, %v1474
        %v1476 = vmul.f32 %v1471, %v1475
        %vm1477 = vweird.f32 %v1460
        %vm1478 = vweird.f32 %v1471
        %vm1479 = vmor %vm1477, %vm1478
        %v1480 = vsel %vm1479, %v1471, %v1476
        %v1481 = vmul.f32 %v1457, %v1470
        %v1482 = vmul.f32 %v1458, %v1480
        %v1483 = vperm.slane %v657, 4
        %v1484 = vmul.f32 %v1481, %v1483
        %v1485 = vmul.f32 %v1482, %v1483
        %v1486 = vperm.slane %v658, 4
        %v1487 = vadd.f32 %v1484, %v1486
        %v1488 = vadd.f32 %v1485, %v1486
        %v1489 = vmax.f32 %v1487, 0.0
        %v1490 = vmax.f32 %v1488, 0.0
        %p1491 = scmp.eq.s32.totalorder %s33, 0
        // Predicated region
        $region101: #{tree_like_forward.1} parent=75 // pred_check
          %p1492 = pneg %p1491
        $region102: #{tree_like_forward.1} parent=75 // pred_check_branch
          %1494 = sbr.rel (%p1492) target = $region104
        $region103: #{tree_like_forward.1} parent=75 // pred_region
          %v1495 = vpack.c.bf16 %v1489, %v1489
          %v1496 = vpack.c.bf16 %v1490, %v1490
          %1497 = vst [vmem:[#allocation2] sm:$0xf] %v1495
          %1498 = vst [vmem:[#allocation2 + $0x4] sm:$0xf] %v1496
          %1499 = vst [vmem:[%s610] sm:$0xff] %v1489
          %1500 = vst [vmem:[%s610 + $0x8] sm:$0xff] %v1490
        $region104: #{tree_like_forward.1} parent=75 // pred_fallthru
          _
        // Predicated region
        $region105: #{tree_like_forward.1} parent=75 // pred_check
          %p1501 = pneg %p612
        $region106: #{tree_like_forward.1} parent=75 // pred_check_branch
          %1503 = sbr.rel (%p1501) target = $region108
        $region107: #{tree_like_forward.1} parent=75 // pred_region
          %v1504 = vld [vmem:[%s592] sm:$0xff]
          %v1505 = vld [vmem:[%s592 + $0x8] sm:$0xff]
          %vm1506 = vcmp.ne.f32.partialorder %v1504, 0.0
          %vm1507 = vcmp.ne.f32.partialorder %v1505, 0.0
          %v1508 = vld [vmem:[%s610] sm:$0xff]
          %v1509 = vld [vmem:[%s610 + $0x8] sm:$0xff]
          %v1510 = vsel %vm1506, 1, 0
          %v1511 = vsel %vm1507, 1, 0
          %1512 = vset.pattern.permute.xlu0 0
          %1513 = vperm.xlu0 %1512, %v1510
          %v1514 = vpop.permute.xlu0 %1513
          %1515 = vset.pattern.permute.xlu0 0
          %1516 = vperm.xlu0 %1515, %v1511
          %v1517 = vpop.permute.xlu0 %1516
          %vm1518 = vcmp.eq.s32.totalorder %v1514, 1
          %vm1519 = vcmp.eq.s32.totalorder %v1517, 1
          %v1520 = vsel %vm1518, %v1508, %v1489
          %v1521 = vsel %vm1519, %v1509, %v1490
          %1522 = vst [vmem:[%s610] sm:$0xff] %v1520
          %1523 = vst [vmem:[%s610 + $0x8] sm:$0xff] %v1521
        $region108: #{tree_like_forward.1} parent=75 // pred_fallthru
          _
        %s1524 = smul.u32 2, %s32
        %p1525 = scmp.lt.s32.totalorder %s1524, 3
        %s1526 = scalar_select %p1525, %s1524, 3
        %s1527 = smul.addr %s1526, 8
        %s1528 = scalar_lea.vmem %s14, %s1527
        // Predicated region
        $region109: #{tree_like_forward.1} parent=75 // pred_check
          %p1529 = pneg %p372
        $region110: #{tree_like_forward.1} parent=75 // pred_check_branch
          %1531 = sbr.rel (%p1529) target = $region112
        $region111: #{tree_like_forward.1} parent=75 // pred_region
          %s1532 = smul.u32 2, %s32
        $region112: #{tree_like_forward.1} parent=75 // pred_fallthru
          _
      $region76: #{tree_like_forward.1} parent=5 // pred_fallthru
        _
      %p1533 = scmp.le.s32.totalorder 2, %s23
      // Predicated region
      $region113: #{tree_like_forward.1} parent=5 // pred_check
        %p1534 = pneg %p1533
      $region114: #{tree_like_forward.1} parent=5 // pred_check_branch
        %1536 = sbr.rel (%p1534) target = $region116
      $region115: #{tree_like_forward.1} parent=5 // pred_region
        %s1537 = ssub.s32 %s23, 2
        // Predicated region
        $region117: #{tree_like_forward.1} parent=115 // pred_check
          %p1538 = pneg %p378
        $region118: #{tree_like_forward.1} parent=115 // pred_check_branch
          %1540 = sbr.rel (%p1538) target = $region120
        $region119: #{tree_like_forward.1} parent=115 // pred_region
          %s1541 = smul.u32 2, %s34
          %p1542 = scmp.lt.s32.totalorder %s1541, 3
          %s1543 = scalar_select %p1542, %s1541, 3
          %s1544 = smul.addr %s1543, 8
          %s1545 = scalar_lea.vmem %s14, %s1544
        $region120: #{tree_like_forward.1} parent=115 // pred_fallthru
          _
      $region116: #{tree_like_forward.1} parent=5 // pred_fallthru
        _
    $region6: #{tree_like_forward.1} parent=1 // loop_footer
      %s27 = sadd.s32 1, %s23
    $region7: #{tree_like_forward.1} parent=1 // loop_footer_branch
      %22 = sbr.rel target = $region3
    $region8: #{tree_like_forward.1} parent=1 // loop_exit
      _
    %1546 = vsyncpa [#allocation4], 1
    %s1547 = scalar_lea.sflag [#allocation4], 1
    %1548 = vsyncpa %s1547, 1
    %1549 = vsyncpa [#allocation6], 1
    %1550 = vsyncpa [#allocation9], 1

</llo_original>
